<compile_context>
chip_gen: v7x
topology: tpu7x:2x2x1
jax: 0.10.0
libtpu: 0.0.40
codegen_flags: <defaults>
</compile_context>

<pallas_src>
import functools

import numpy as np

import jax
import jax.numpy as jnp
from jax.experimental import pallas as pl
from jax.experimental.pallas import tpu as pltpu


_KH = 4
_KW = 4
_STRIDE = 2
_LEAKY_SLOPE = 0.2
_LAYER_PADS = (1, 1, 1, 1, 0)  # conv1..conv4 use pad=1, final conv uses pad=0


def _round_up(x, m):
    return ((x + m - 1) // m) * m


# ---------------------------------------------------------------------------
# Parameter init (PyTorch-default-style uniform), kept in OIHW layout so the
# pure-JAX reference below consumes the exact same tensors.
# ---------------------------------------------------------------------------
def init_discriminator_params(key, channel_img, features_d):
    def conv_param(k, cout, cin, ksz, bias):
        kw_, kb_ = jax.random.split(k)
        fan_in = cin * ksz * ksz
        bound = 1.0 / float(np.sqrt(fan_in))
        w = jax.random.uniform(kw_, (cout, cin, ksz, ksz), jnp.float32, -bound, bound)
        b = (jax.random.uniform(kb_, (cout,), jnp.float32, -bound, bound)
             if bias else None)
        return w, b

    keys = jax.random.split(key, 5)
    f = features_d
    return [
        conv_param(keys[0], f, channel_img, 4, bias=True),        # conv1
        conv_param(keys[1], f * 2, f, 4, bias=False),              # block1
        conv_param(keys[2], f * 4, f * 2, 4, bias=False),          # block2
        conv_param(keys[3], f * 8, f * 4, 4, bias=False),          # block3
        conv_param(keys[4], 1, f * 8, 4, bias=True),               # final
    ]


# ---------------------------------------------------------------------------
# One-time preprocessing: PyTorch OIHW conv weights -> matrices consumed by the
# fused kernel (done on host with numpy, never re-built per forward call).
# ---------------------------------------------------------------------------
def prepare_discriminator(params, height, width):
    f32 = np.float32

    # geometry of the 5 stride-2 convs
    hs, ws = [height], [width]
    for pad in _LAYER_PADS:
        hs.append((hs[-1] + 2 * pad - _KH) // _STRIDE + 1)
        ws.append((ws[-1] + 2 * pad - _KW) // _STRIDE + 1)
    assert hs[-1] == 1 and ws[-1] == 1, (
        "DCGAN discriminator geometry needs a 64x64-style input to reach 1x1")

    cin0 = params[0][0].shape[1]
    lane_in = _round_up(ws[0] * cin0, 128)  # layer-1 input lanes (padded to 128)

    S_list, W_list = [], []
    for li in range(4):
        w = np.asarray(params[li][0], f32)              # (Cout, Cin, 4, 4)
        cout, cin, kh, kw = w.shape
        pad = _LAYER_PADS[li]
        hin, win = hs[li], ws[li]
        hout, wout = hs[li + 1], ws[li + 1]
        k_in = lane_in

        S = np.zeros((kh, hout, hin), f32)               # row selection (pad folded)
        W1 = np.zeros((kh, k_in, wout * cout), f32)      # row-conv weight (pad folded)
        for ki in range(kh):
            for oh in range(hout):
                r = _STRIDE * oh + ki - pad
                if 0 <= r < hin:
                    S[ki, oh, r] = 1.0
            for kj in range(kw):
                wk = w[:, :, ki, kj].T                   # (Cin, Cout)
                for ow in range(wout):
                    c = _STRIDE * ow + kj - pad
                    if 0 <= c < win:
                        W1[ki, c * cin:(c + 1) * cin,
                           ow * cout:(ow + 1) * cout] = wk

        S_list.append(jnp.asarray(S, jnp.bfloat16))
        W_list.append(jnp.asarray(W1, jnp.bfloat16))
        lane_in = wout * cout                            # next layer's input lanes

    # layer-1 bias tiled across output columns -> one lane-dense (1, Wout*Cout) row
    b1 = np.asarray(params[0][1], f32)
    b1_row = np.tile(b1[None, :], (ws[1], 1)).reshape(1, ws[1] * b1.shape[0])

    # final 4x4 valid conv == one dense dot product per image
    w5 = np.asarray(params[4][0], f32)[0]                # (Cin, 4, 4)
    W5 = np.transpose(w5, (1, 2, 0)).reshape(hs[4], ws[4] * w5.shape[0])
    b5 = np.asarray(params[4][1], f32).reshape(1, 1)

    return {
        "S": tuple(S_list),
        "W": tuple(W_list),
        "b1": jnp.asarray(b1_row, jnp.float32),
        "W5": jnp.asarray(W5, jnp.float32),
        "b5": jnp.asarray(b5, jnp.float32),
    }


# ---------------------------------------------------------------------------
# The fused kernel: one grid step == one image through all 5 layers.
# ---------------------------------------------------------------------------
def _disc_kernel(x_ref,
                 s1_ref, s2_ref, s3_ref, s4_ref,
                 w1_ref, w2_ref, w3_ref, w4_ref,
                 b1_ref, w5_ref, b5_ref,
                 o_ref):

    def conv_block(x, s_ref, w_ref, bias_row):
        # x: (Hin, Kin) bf16; out: (Hout, Wout*Cout) bf16 after LeakyReLU(0.2)
        acc = None
        for ki in range(_KH):
            # row selection via a tiny 0/1 matmul (exact), then the row-conv dot
            xs = jnp.dot(s_ref[ki], x, preferred_element_type=jnp.float32)
            part = jnp.dot(xs.astype(jnp.bfloat16), w_ref[ki],
                           preferred_element_type=jnp.float32)
            acc = part if acc is None else acc + part
        if bias_row is not None:
            acc = acc + bias_row
        acc = jnp.where(acc > 0, acc, _LEAKY_SLOPE * acc)
        return acc.astype(jnp.bfloat16)

    h = x_ref[0]                                   # (H, W*C) bf16, lane-padded
    h = conv_block(h, s1_ref, w1_ref, b1_ref[...])   # 64x64x3  -> 32x32xf
    h = conv_block(h, s2_ref, w2_ref, None)          # -> 16x16x2f
    h = conv_block(h, s3_ref, w3_ref, None)          # -> 8x8x4f
    h = conv_block(h, s4_ref, w4_ref, None)          # -> 4x4x8f
    # final 4x4 valid conv -> scalar logit, + bias, sigmoid
    logit = jnp.sum(h.astype(jnp.float32) * w5_ref[...], axis=(0, 1), keepdims=True)
    o_ref[0] = jax.nn.sigmoid(logit + b5_ref[...])


def discriminator_forward(prepared, x):
    """x: (N, C, H, W) float32 (PyTorch NCHW). Returns (N, 1, 1, 1) float32."""
    n, c, hgt, wdt = x.shape
    lane_raw = wdt * c
    lane_pad = prepared["W"][0].shape[1]           # layer-1 K dim (128-aligned)

    # single boundary transform: NCHW -> (N, H, W*C), lane-pad, bf16
    xh = jnp.transpose(x, (0, 2, 3, 1)).reshape(n, hgt, lane_raw)
    xh = jnp.pad(xh, ((0, 0), (0, 0), (0, lane_pad - lane_raw))).astype(jnp.bfloat16)

    s1, s2, s3, s4 = prepared["S"]
    w1, w2, w3, w4 = prepared["W"]
    b1, w5, b5 = prepared["b1"], prepared["W5"], prepared["b5"]

    grid_spec = pltpu.PrefetchScalarGridSpec(
        num_scalar_prefetch=0,
        grid=(n,),                                  # one image per grid step
        in_specs=[
            pl.BlockSpec((1, hgt, lane_pad), lambda i: (i, 0, 0)),
            pl.BlockSpec(s1.shape, lambda i: (0, 0, 0)),
            pl.BlockSpec(s2.shape, lambda i: (0, 0, 0)),
            pl.BlockSpec(s3.shape, lambda i: (0, 0, 0)),
            pl.BlockSpec(s4.shape, lambda i: (0, 0, 0)),
            pl.BlockSpec(w1.shape, lambda i: (0, 0, 0)),
            pl.BlockSpec(w2.shape, lambda i: (0, 0, 0)),
            pl.BlockSpec(w3.shape, lambda i: (0, 0, 0)),
            pl.BlockSpec(w4.shape, lambda i: (0, 0, 0)),
            pl.BlockSpec(b1.shape, lambda i: (0, 0)),
            pl.BlockSpec(w5.shape, lambda i: (0, 0)),
            pl.BlockSpec(b5.shape, lambda i: (0, 0)),
        ],
        out_specs=pl.BlockSpec((1, 1, 1), lambda i: (i, 0, 0)),
    )

    out = pl.pallas_call(
        _disc_kernel,
        out_shape=jax.ShapeDtypeStruct((n, 1, 1), jnp.float32),
        grid_spec=grid_spec,
        compiler_params=pltpu.CompilerParams(
            dimension_semantics=("parallel",)),      # v7x: one image per TC
    )(xh, s1, s2, s3, s4, w1, w2, w3, w4, b1, w5, b5)

    return out.reshape(n, 1, 1, 1)


# ---------------------------------------------------------------------------
# Pure-JAX f32 reference (lax.conv) for the correctness check.
# ---------------------------------------------------------------------------
def _reference_forward(params, x):
    def conv(h, w, b, stride, padding):
        out = jax.lax.conv_general_dilated(
            h, w, window_strides=(stride, stride),
            padding=[(padding, padding), (padding, padding)],
            dimension_numbers=("NCHW", "OIHW", "NCHW"))
        if b is not None:
            out = out + b[None, :, None, None]
        return out

    h = x
    for i in range(4):
        w, b = params[i]
        h = conv(h, w, b, 2, 1)
        h = jnp.where(h > 0, h, _LEAKY_SLOPE * h)
    w, b = params[4]
    h = conv(h, w, b, 2, 0)
    return jax.nn.sigmoid(h)


if __name__ == "__main__":
    key = jax.random.PRNGKey(0)
    k_x, k_p = jax.random.split(key)

    channel_img = 3
    features_d = 8
    batch = 2
    # DCGAN discriminator geometry requires 64x64 input to reach a 1x1 output.
    x = jax.random.normal(k_x, (batch, channel_img, 64, 64), jnp.float32)

    params = init_discriminator_params(k_p, channel_img, features_d)
    prepared = prepare_discriminator(params, 64, 64)     # built ONCE

    fwd = jax.jit(discriminator_forward)
    out = jax.block_until_ready(fwd(prepared, x))

    assert out.shape == (batch, 1, 1, 1), out.shape
    assert bool(jnp.all((out >= 0.0) & (out <= 1.0)))

    ref = _reference_forward(params, x)
    # bf16 operand/intermediate rounding vs f32 reference -> loose tolerance.
    assert bool(jnp.allclose(out, ref, atol=0.1)), (out, ref)

    print("KERNEL_OK")
</pallas_src>

<mosaic_0001>
module attributes {stable_mosaic.version = 11 : i64} {
  func.func @_disc_kernel(%arg0: i32, %arg1: memref<1x64x256xbf16, #tpu.memory_space<vmem>>, %arg2: memref<4x32x64xbf16, #tpu.memory_space<vmem>>, %arg3: memref<4x16x32xbf16, #tpu.memory_space<vmem>>, %arg4: memref<4x8x16xbf16, #tpu.memory_space<vmem>>, %arg5: memref<4x4x8xbf16, #tpu.memory_space<vmem>>, %arg6: memref<4x256x256xbf16, #tpu.memory_space<vmem>>, %arg7: memref<4x256x256xbf16, #tpu.memory_space<vmem>>, %arg8: memref<4x256x256xbf16, #tpu.memory_space<vmem>>, %arg9: memref<4x256x256xbf16, #tpu.memory_space<vmem>>, %arg10: memref<1x256xf32, #tpu.memory_space<vmem>>, %arg11: memref<4x256xf32, #tpu.memory_space<vmem>>, %arg12: memref<1x1xf32, #tpu.memory_space<vmem>>, %arg13: memref<1x1x1xf32, #tpu.memory_space<vmem>>) attributes {dimension_semantics = [#tpu.dimension_semantics<parallel>], iteration_bounds = array<i64: 2>, scalar_prefetch = 0 : i64, scratch_operands = 0 : i64, tpu.core_type = #tpu.core_type<tc>, window_params = [{transform_indices = @transform_0, window_bounds = array<i64: 1, 64, 256>}, {pipeline_mode = #tpu.pipeline_mode<synchronous>, transform_indices = @transform_1, window_bounds = array<i64: 4, 32, 64>}, {pipeline_mode = #tpu.pipeline_mode<synchronous>, transform_indices = @transform_2, window_bounds = array<i64: 4, 16, 32>}, {pipeline_mode = #tpu.pipeline_mode<synchronous>, transform_indices = @transform_3, window_bounds = array<i64: 4, 8, 16>}, {pipeline_mode = #tpu.pipeline_mode<synchronous>, transform_indices = @transform_4, window_bounds = array<i64: 4, 4, 8>}, {pipeline_mode = #tpu.pipeline_mode<synchronous>, transform_indices = @transform_5, window_bounds = array<i64: 4, 256, 256>}, {pipeline_mode = #tpu.pipeline_mode<synchronous>, transform_indices = @transform_6, window_bounds = array<i64: 4, 256, 256>}, {pipeline_mode = #tpu.pipeline_mode<synchronous>, transform_indices = @transform_7, window_bounds = array<i64: 4, 256, 256>}, {pipeline_mode = #tpu.pipeline_mode<synchronous>, transform_indices = @transform_8, window_bounds = array<i64: 4, 256, 256>}, {pipeline_mode = #tpu.pipeline_mode<synchronous>, transform_indices = @transform_9, window_bounds = array<i64: 1, 256>}, {pipeline_mode = #tpu.pipeline_mode<synchronous>, transform_indices = @transform_10, window_bounds = array<i64: 4, 256>}, {pipeline_mode = #tpu.pipeline_mode<synchronous>, transform_indices = @transform_11, window_bounds = array<i64: 1, 1>}, {transform_indices = @transform_12, window_bounds = array<i64: 1, 1, 1>}]} {
    %c0 = arith.constant 0 : index
    %c0_0 = arith.constant 0 : index
    %c0_1 = arith.constant 0 : index
    %0 = vector.load %arg1[%c0, %c0_0, %c0_1] : memref<1x64x256xbf16, #tpu.memory_space<vmem>>, vector<1x64x256xbf16>
    %1 = vector.shape_cast %0 : vector<1x64x256xbf16> to vector<64x256xbf16>
    %c0_2 = arith.constant 0 : index
    %c0_3 = arith.constant 0 : index
    %2 = vector.load %arg10[%c0_2, %c0_3] : memref<1x256xf32, #tpu.memory_space<vmem>>, vector<1x256xf32>
    %c0_4 = arith.constant 0 : index
    %c0_5 = arith.constant 0 : index
    %c0_6 = arith.constant 0 : index
    %3 = vector.load %arg2[%c0_4, %c0_5, %c0_6] : memref<4x32x64xbf16, #tpu.memory_space<vmem>>, vector<1x32x64xbf16>
    %4 = vector.shape_cast %3 : vector<1x32x64xbf16> to vector<32x64xbf16>
    %cst = arith.constant dense<0.000000e+00> : vector<32x256xf32>
    %5 = tpu.matmul %4, %1, %cst {dimension_numbers = #tpu.dot_dimension_numbers<[1], [0], [0], [1], [0, 0, 1, 1], [], []>} : vector<32x64xbf16>, vector<64x256xbf16>, vector<32x256xf32> -> vector<32x256xf32>
    %6 = arith.truncf %5 : vector<32x256xf32> to vector<32x256xbf16>
    %c0_7 = arith.constant 0 : index
    %c0_8 = arith.constant 0 : index
    %c0_9 = arith.constant 0 : index
    %7 = vector.load %arg6[%c0_7, %c0_8, %c0_9] : memref<4x256x256xbf16, #tpu.memory_space<vmem>>, vector<1x256x256xbf16>
    %8 = vector.shape_cast %7 : vector<1x256x256xbf16> to vector<256x256xbf16>
    %cst_10 = arith.constant dense<0.000000e+00> : vector<32x256xf32>
    %9 = tpu.matmul %6, %8, %cst_10 {dimension_numbers = #tpu.dot_dimension_numbers<[1], [0], [0], [1], [0, 0, 1, 1], [], []>} : vector<32x256xbf16>, vector<256x256xbf16>, vector<32x256xf32> -> vector<32x256xf32>
    %c1 = arith.constant 1 : index
    %c0_11 = arith.constant 0 : index
    %c0_12 = arith.constant 0 : index
    %10 = vector.load %arg2[%c1, %c0_11, %c0_12] : memref<4x32x64xbf16, #tpu.memory_space<vmem>>, vector<1x32x64xbf16>
    %11 = vector.shape_cast %10 : vector<1x32x64xbf16> to vector<32x64xbf16>
    %cst_13 = arith.constant dense<0.000000e+00> : vector<32x256xf32>
    %12 = tpu.matmul %11, %1, %cst_13 {dimension_numbers = #tpu.dot_dimension_numbers<[1], [0], [0], [1], [0, 0, 1, 1], [], []>} : vector<32x64xbf16>, vector<64x256xbf16>, vector<32x256xf32> -> vector<32x256xf32>
    %13 = arith.truncf %12 : vector<32x256xf32> to vector<32x256xbf16>
    %c1_14 = arith.constant 1 : index
    %c0_15 = arith.constant 0 : index
    %c0_16 = arith.constant 0 : index
    %14 = vector.load %arg6[%c1_14, %c0_15, %c0_16] : memref<4x256x256xbf16, #tpu.memory_space<vmem>>, vector<1x256x256xbf16>
    %15 = vector.shape_cast %14 : vector<1x256x256xbf16> to vector<256x256xbf16>
    %cst_17 = arith.constant dense<0.000000e+00> : vector<32x256xf32>
    %16 = tpu.matmul %13, %15, %cst_17 {dimension_numbers = #tpu.dot_dimension_numbers<[1], [0], [0], [1], [0, 0, 1, 1], [], []>} : vector<32x256xbf16>, vector<256x256xbf16>, vector<32x256xf32> -> vector<32x256xf32>
    %17 = arith.addf %9, %16 : vector<32x256xf32>
    %c2 = arith.constant 2 : index
    %c0_18 = arith.constant 0 : index
    %c0_19 = arith.constant 0 : index
    %18 = vector.load %arg2[%c2, %c0_18, %c0_19] : memref<4x32x64xbf16, #tpu.memory_space<vmem>>, vector<1x32x64xbf16>
    %19 = vector.shape_cast %18 : vector<1x32x64xbf16> to vector<32x64xbf16>
    %cst_20 = arith.constant dense<0.000000e+00> : vector<32x256xf32>
    %20 = tpu.matmul %19, %1, %cst_20 {dimension_numbers = #tpu.dot_dimension_numbers<[1], [0], [0], [1], [0, 0, 1, 1], [], []>} : vector<32x64xbf16>, vector<64x256xbf16>, vector<32x256xf32> -> vector<32x256xf32>
    %21 = arith.truncf %20 : vector<32x256xf32> to vector<32x256xbf16>
    %c2_21 = arith.constant 2 : index
    %c0_22 = arith.constant 0 : index
    %c0_23 = arith.constant 0 : index
    %22 = vector.load %arg6[%c2_21, %c0_22, %c0_23] : memref<4x256x256xbf16, #tpu.memory_space<vmem>>, vector<1x256x256xbf16>
    %23 = vector.shape_cast %22 : vector<1x256x256xbf16> to vector<256x256xbf16>
    %cst_24 = arith.constant dense<0.000000e+00> : vector<32x256xf32>
    %24 = tpu.matmul %21, %23, %cst_24 {dimension_numbers = #tpu.dot_dimension_numbers<[1], [0], [0], [1], [0, 0, 1, 1], [], []>} : vector<32x256xbf16>, vector<256x256xbf16>, vector<32x256xf32> -> vector<32x256xf32>
    %25 = arith.addf %17, %24 : vector<32x256xf32>
    %c3 = arith.constant 3 : index
    %c0_25 = arith.constant 0 : index
    %c0_26 = arith.constant 0 : index
    %26 = vector.load %arg2[%c3, %c0_25, %c0_26] : memref<4x32x64xbf16, #tpu.memory_space<vmem>>, vector<1x32x64xbf16>
    %27 = vector.shape_cast %26 : vector<1x32x64xbf16> to vector<32x64xbf16>
    %cst_27 = arith.constant dense<0.000000e+00> : vector<32x256xf32>
    %28 = tpu.matmul %27, %1, %cst_27 {dimension_numbers = #tpu.dot_dimension_numbers<[1], [0], [0], [1], [0, 0, 1, 1], [], []>} : vector<32x64xbf16>, vector<64x256xbf16>, vector<32x256xf32> -> vector<32x256xf32>
    %29 = arith.truncf %28 : vector<32x256xf32> to vector<32x256xbf16>
    %c3_28 = arith.constant 3 : index
    %c0_29 = arith.constant 0 : index
    %c0_30 = arith.constant 0 : index
    %30 = vector.load %arg6[%c3_28, %c0_29, %c0_30] : memref<4x256x256xbf16, #tpu.memory_space<vmem>>, vector<1x256x256xbf16>
    %31 = vector.shape_cast %30 : vector<1x256x256xbf16> to vector<256x256xbf16>
    %cst_31 = arith.constant dense<0.000000e+00> : vector<32x256xf32>
    %32 = tpu.matmul %29, %31, %cst_31 {dimension_numbers = #tpu.dot_dimension_numbers<[1], [0], [0], [1], [0, 0, 1, 1], [], []>} : vector<32x256xbf16>, vector<256x256xbf16>, vector<32x256xf32> -> vector<32x256xf32>
    %33 = arith.addf %25, %32 : vector<32x256xf32>
    %34 = vector.broadcast %2 : vector<1x256xf32> to vector<32x256xf32>
    %35 = arith.addf %33, %34 : vector<32x256xf32>
    %cst_32 = arith.constant 0.000000e+00 : f32
    %36 = vector.broadcast %cst_32 : f32 to vector<32x256xf32>
    %37 = arith.cmpf ogt, %35, %36 : vector<32x256xf32>
    %cst_33 = arith.constant 2.000000e-01 : f32
    %38 = vector.broadcast %cst_33 : f32 to vector<32x256xf32>
    %39 = arith.mulf %38, %35 : vector<32x256xf32>
    %40 = arith.select %37, %35, %39 : vector<32x256xi1>, vector<32x256xf32>
    %41 = arith.truncf %40 : vector<32x256xf32> to vector<32x256xbf16>
    %c0_34 = arith.constant 0 : index
    %c0_35 = arith.constant 0 : index
    %c0_36 = arith.constant 0 : index
    %42 = vector.load %arg3[%c0_34, %c0_35, %c0_36] : memref<4x16x32xbf16, #tpu.memory_space<vmem>>, vector<1x16x32xbf16>
    %43 = vector.shape_cast %42 : vector<1x16x32xbf16> to vector<16x32xbf16>
    %cst_37 = arith.constant dense<0.000000e+00> : vector<16x256xf32>
    %44 = tpu.matmul %43, %41, %cst_37 {dimension_numbers = #tpu.dot_dimension_numbers<[1], [0], [0], [1], [0, 0, 1, 1], [], []>} : vector<16x32xbf16>, vector<32x256xbf16>, vector<16x256xf32> -> vector<16x256xf32>
    %45 = arith.truncf %44 : vector<16x256xf32> to vector<16x256xbf16>
    %c0_38 = arith.constant 0 : index
    %c0_39 = arith.constant 0 : index
    %c0_40 = arith.constant 0 : index
    %46 = vector.load %arg7[%c0_38, %c0_39, %c0_40] : memref<4x256x256xbf16, #tpu.memory_space<vmem>>, vector<1x256x256xbf16>
    %47 = vector.shape_cast %46 : vector<1x256x256xbf16> to vector<256x256xbf16>
    %cst_41 = arith.constant dense<0.000000e+00> : vector<16x256xf32>
    %48 = tpu.matmul %45, %47, %cst_41 {dimension_numbers = #tpu.dot_dimension_numbers<[1], [0], [0], [1], [0, 0, 1, 1], [], []>} : vector<16x256xbf16>, vector<256x256xbf16>, vector<16x256xf32> -> vector<16x256xf32>
    %c1_42 = arith.constant 1 : index
    %c0_43 = arith.constant 0 : index
    %c0_44 = arith.constant 0 : index
    %49 = vector.load %arg3[%c1_42, %c0_43, %c0_44] : memref<4x16x32xbf16, #tpu.memory_space<vmem>>, vector<1x16x32xbf16>
    %50 = vector.shape_cast %49 : vector<1x16x32xbf16> to vector<16x32xbf16>
    %cst_45 = arith.constant dense<0.000000e+00> : vector<16x256xf32>
    %51 = tpu.matmul %50, %41, %cst_45 {dimension_numbers = #tpu.dot_dimension_numbers<[1], [0], [0], [1], [0, 0, 1, 1], [], []>} : vector<16x32xbf16>, vector<32x256xbf16>, vector<16x256xf32> -> vector<16x256xf32>
    %52 = arith.truncf %51 : vector<16x256xf32> to vector<16x256xbf16>
    %c1_46 = arith.constant 1 : index
    %c0_47 = arith.constant 0 : index
    %c0_48 = arith.constant 0 : index
    %53 = vector.load %arg7[%c1_46, %c0_47, %c0_48] : memref<4x256x256xbf16, #tpu.memory_space<vmem>>, vector<1x256x256xbf16>
    %54 = vector.shape_cast %53 : vector<1x256x256xbf16> to vector<256x256xbf16>
    %cst_49 = arith.constant dense<0.000000e+00> : vector<16x256xf32>
    %55 = tpu.matmul %52, %54, %cst_49 {dimension_numbers = #tpu.dot_dimension_numbers<[1], [0], [0], [1], [0, 0, 1, 1], [], []>} : vector<16x256xbf16>, vector<256x256xbf16>, vector<16x256xf32> -> vector<16x256xf32>
    %56 = arith.addf %48, %55 : vector<16x256xf32>
    %c2_50 = arith.constant 2 : index
    %c0_51 = arith.constant 0 : index
    %c0_52 = arith.constant 0 : index
    %57 = vector.load %arg3[%c2_50, %c0_51, %c0_52] : memref<4x16x32xbf16, #tpu.memory_space<vmem>>, vector<1x16x32xbf16>
    %58 = vector.shape_cast %57 : vector<1x16x32xbf16> to vector<16x32xbf16>
    %cst_53 = arith.constant dense<0.000000e+00> : vector<16x256xf32>
    %59 = tpu.matmul %58, %41, %cst_53 {dimension_numbers = #tpu.dot_dimension_numbers<[1], [0], [0], [1], [0, 0, 1, 1], [], []>} : vector<16x32xbf16>, vector<32x256xbf16>, vector<16x256xf32> -> vector<16x256xf32>
    %60 = arith.truncf %59 : vector<16x256xf32> to vector<16x256xbf16>
    %c2_54 = arith.constant 2 : index
    %c0_55 = arith.constant 0 : index
    %c0_56 = arith.constant 0 : index
    %61 = vector.load %arg7[%c2_54, %c0_55, %c0_56] : memref<4x256x256xbf16, #tpu.memory_space<vmem>>, vector<1x256x256xbf16>
    %62 = vector.shape_cast %61 : vector<1x256x256xbf16> to vector<256x256xbf16>
    %cst_57 = arith.constant dense<0.000000e+00> : vector<16x256xf32>
    %63 = tpu.matmul %60, %62, %cst_57 {dimension_numbers = #tpu.dot_dimension_numbers<[1], [0], [0], [1], [0, 0, 1, 1], [], []>} : vector<16x256xbf16>, vector<256x256xbf16>, vector<16x256xf32> -> vector<16x256xf32>
    %64 = arith.addf %56, %63 : vector<16x256xf32>
    %c3_58 = arith.constant 3 : index
    %c0_59 = arith.constant 0 : index
    %c0_60 = arith.constant 0 : index
    %65 = vector.load %arg3[%c3_58, %c0_59, %c0_60] : memref<4x16x32xbf16, #tpu.memory_space<vmem>>, vector<1x16x32xbf16>
    %66 = vector.shape_cast %65 : vector<1x16x32xbf16> to vector<16x32xbf16>
    %cst_61 = arith.constant dense<0.000000e+00> : vector<16x256xf32>
    %67 = tpu.matmul %66, %41, %cst_61 {dimension_numbers = #tpu.dot_dimension_numbers<[1], [0], [0], [1], [0, 0, 1, 1], [], []>} : vector<16x32xbf16>, vector<32x256xbf16>, vector<16x256xf32> -> vector<16x256xf32>
    %68 = arith.truncf %67 : vector<16x256xf32> to vector<16x256xbf16>
    %c3_62 = arith.constant 3 : index
    %c0_63 = arith.constant 0 : index
    %c0_64 = arith.constant 0 : index
    %69 = vector.load %arg7[%c3_62, %c0_63, %c0_64] : memref<4x256x256xbf16, #tpu.memory_space<vmem>>, vector<1x256x256xbf16>
    %70 = vector.shape_cast %69 : vector<1x256x256xbf16> to vector<256x256xbf16>
    %cst_65 = arith.constant dense<0.000000e+00> : vector<16x256xf32>
    %71 = tpu.matmul %68, %70, %cst_65 {dimension_numbers = #tpu.dot_dimension_numbers<[1], [0], [0], [1], [0, 0, 1, 1], [], []>} : vector<16x256xbf16>, vector<256x256xbf16>, vector<16x256xf32> -> vector<16x256xf32>
    %72 = arith.addf %64, %71 : vector<16x256xf32>
    %cst_66 = arith.constant 0.000000e+00 : f32
    %73 = vector.broadcast %cst_66 : f32 to vector<16x256xf32>
    %74 = arith.cmpf ogt, %72, %73 : vector<16x256xf32>
    %cst_67 = arith.constant 2.000000e-01 : f32
    %75 = vector.broadcast %cst_67 : f32 to vector<16x256xf32>
    %76 = arith.mulf %75, %72 : vector<16x256xf32>
    %77 = arith.select %74, %72, %76 : vector<16x256xi1>, vector<16x256xf32>
    %78 = arith.truncf %77 : vector<16x256xf32> to vector<16x256xbf16>
    %c0_68 = arith.constant 0 : index
    %c0_69 = arith.constant 0 : index
    %c0_70 = arith.constant 0 : index
    %79 = vector.load %arg4[%c0_68, %c0_69, %c0_70] : memref<4x8x16xbf16, #tpu.memory_space<vmem>>, vector<1x8x16xbf16>
    %80 = vector.shape_cast %79 : vector<1x8x16xbf16> to vector<8x16xbf16>
    %cst_71 = arith.constant dense<0.000000e+00> : vector<8x256xf32>
    %81 = tpu.matmul %80, %78, %cst_71 {dimension_numbers = #tpu.dot_dimension_numbers<[1], [0], [0], [1], [0, 0, 1, 1], [], []>} : vector<8x16xbf16>, vector<16x256xbf16>, vector<8x256xf32> -> vector<8x256xf32>
    %82 = arith.truncf %81 : vector<8x256xf32> to vector<8x256xbf16>
    %c0_72 = arith.constant 0 : index
    %c0_73 = arith.constant 0 : index
    %c0_74 = arith.constant 0 : index
    %83 = vector.load %arg8[%c0_72, %c0_73, %c0_74] : memref<4x256x256xbf16, #tpu.memory_space<vmem>>, vector<1x256x256xbf16>
    %84 = vector.shape_cast %83 : vector<1x256x256xbf16> to vector<256x256xbf16>
    %cst_75 = arith.constant dense<0.000000e+00> : vector<8x256xf32>
    %85 = tpu.matmul %82, %84, %cst_75 {dimension_numbers = #tpu.dot_dimension_numbers<[1], [0], [0], [1], [0, 0, 1, 1], [], []>} : vector<8x256xbf16>, vector<256x256xbf16>, vector<8x256xf32> -> vector<8x256xf32>
    %c1_76 = arith.constant 1 : index
    %c0_77 = arith.constant 0 : index
    %c0_78 = arith.constant 0 : index
    %86 = vector.load %arg4[%c1_76, %c0_77, %c0_78] : memref<4x8x16xbf16, #tpu.memory_space<vmem>>, vector<1x8x16xbf16>
    %87 = vector.shape_cast %86 : vector<1x8x16xbf16> to vector<8x16xbf16>
    %cst_79 = arith.constant dense<0.000000e+00> : vector<8x256xf32>
    %88 = tpu.matmul %87, %78, %cst_79 {dimension_numbers = #tpu.dot_dimension_numbers<[1], [0], [0], [1], [0, 0, 1, 1], [], []>} : vector<8x16xbf16>, vector<16x256xbf16>, vector<8x256xf32> -> vector<8x256xf32>
    %89 = arith.truncf %88 : vector<8x256xf32> to vector<8x256xbf16>
    %c1_80 = arith.constant 1 : index
    %c0_81 = arith.constant 0 : index
    %c0_82 = arith.constant 0 : index
    %90 = vector.load %arg8[%c1_80, %c0_81, %c0_82] : memref<4x256x256xbf16, #tpu.memory_space<vmem>>, vector<1x256x256xbf16>
    %91 = vector.shape_cast %90 : vector<1x256x256xbf16> to vector<256x256xbf16>
    %cst_83 = arith.constant dense<0.000000e+00> : vector<8x256xf32>
    %92 = tpu.matmul %89, %91, %cst_83 {dimension_numbers = #tpu.dot_dimension_numbers<[1], [0], [0], [1], [0, 0, 1, 1], [], []>} : vector<8x256xbf16>, vector<256x256xbf16>, vector<8x256xf32> -> vector<8x256xf32>
    %93 = arith.addf %85, %92 : vector<8x256xf32>
    %c2_84 = arith.constant 2 : index
    %c0_85 = arith.constant 0 : index
    %c0_86 = arith.constant 0 : index
    %94 = vector.load %arg4[%c2_84, %c0_85, %c0_86] : memref<4x8x16xbf16, #tpu.memory_space<vmem>>, vector<1x8x16xbf16>
    %95 = vector.shape_cast %94 : vector<1x8x16xbf16> to vector<8x16xbf16>
    %cst_87 = arith.constant dense<0.000000e+00> : vector<8x256xf32>
    %96 = tpu.matmul %95, %78, %cst_87 {dimension_numbers = #tpu.dot_dimension_numbers<[1], [0], [0], [1], [0, 0, 1, 1], [], []>} : vector<8x16xbf16>, vector<16x256xbf16>, vector<8x256xf32> -> vector<8x256xf32>
    %97 = arith.truncf %96 : vector<8x256xf32> to vector<8x256xbf16>
    %c2_88 = arith.constant 2 : index
    %c0_89 = arith.constant 0 : index
    %c0_90 = arith.constant 0 : index
    %98 = vector.load %arg8[%c2_88, %c0_89, %c0_90] : memref<4x256x256xbf16, #tpu.memory_space<vmem>>, vector<1x256x256xbf16>
    %99 = vector.shape_cast %98 : vector<1x256x256xbf16> to vector<256x256xbf16>
    %cst_91 = arith.constant dense<0.000000e+00> : vector<8x256xf32>
    %100 = tpu.matmul %97, %99, %cst_91 {dimension_numbers = #tpu.dot_dimension_numbers<[1], [0], [0], [1], [0, 0, 1, 1], [], []>} : vector<8x256xbf16>, vector<256x256xbf16>, vector<8x256xf32> -> vector<8x256xf32>
    %101 = arith.addf %93, %100 : vector<8x256xf32>
    %c3_92 = arith.constant 3 : index
    %c0_93 = arith.constant 0 : index
    %c0_94 = arith.constant 0 : index
    %102 = vector.load %arg4[%c3_92, %c0_93, %c0_94] : memref<4x8x16xbf16, #tpu.memory_space<vmem>>, vector<1x8x16xbf16>
    %103 = vector.shape_cast %102 : vector<1x8x16xbf16> to vector<8x16xbf16>
    %cst_95 = arith.constant dense<0.000000e+00> : vector<8x256xf32>
    %104 = tpu.matmul %103, %78, %cst_95 {dimension_numbers = #tpu.dot_dimension_numbers<[1], [0], [0], [1], [0, 0, 1, 1], [], []>} : vector<8x16xbf16>, vector<16x256xbf16>, vector<8x256xf32> -> vector<8x256xf32>
    %105 = arith.truncf %104 : vector<8x256xf32> to vector<8x256xbf16>
    %c3_96 = arith.constant 3 : index
    %c0_97 = arith.constant 0 : index
    %c0_98 = arith.constant 0 : index
    %106 = vector.load %arg8[%c3_96, %c0_97, %c0_98] : memref<4x256x256xbf16, #tpu.memory_space<vmem>>, vector<1x256x256xbf16>
    %107 = vector.shape_cast %106 : vector<1x256x256xbf16> to vector<256x256xbf16>
    %cst_99 = arith.constant dense<0.000000e+00> : vector<8x256xf32>
    %108 = tpu.matmul %105, %107, %cst_99 {dimension_numbers = #tpu.dot_dimension_numbers<[1], [0], [0], [1], [0, 0, 1, 1], [], []>} : vector<8x256xbf16>, vector<256x256xbf16>, vector<8x256xf32> -> vector<8x256xf32>
    %109 = arith.addf %101, %108 : vector<8x256xf32>
    %cst_100 = arith.constant 0.000000e+00 : f32
    %110 = vector.broadcast %cst_100 : f32 to vector<8x256xf32>
    %111 = arith.cmpf ogt, %109, %110 : vector<8x256xf32>
    %cst_101 = arith.constant 2.000000e-01 : f32
    %112 = vector.broadcast %cst_101 : f32 to vector<8x256xf32>
    %113 = arith.mulf %112, %109 : vector<8x256xf32>
    %114 = arith.select %111, %109, %113 : vector<8x256xi1>, vector<8x256xf32>
    %115 = arith.truncf %114 : vector<8x256xf32> to vector<8x256xbf16>
    %c0_102 = arith.constant 0 : index
    %c0_103 = arith.constant 0 : index
    %c0_104 = arith.constant 0 : index
    %116 = vector.load %arg5[%c0_102, %c0_103, %c0_104] : memref<4x4x8xbf16, #tpu.memory_space<vmem>>, vector<1x4x8xbf16>
    %117 = vector.shape_cast %116 : vector<1x4x8xbf16> to vector<4x8xbf16>
    %cst_105 = arith.constant dense<0.000000e+00> : vector<4x256xf32>
    %118 = tpu.matmul %117, %115, %cst_105 {dimension_numbers = #tpu.dot_dimension_numbers<[1], [0], [0], [1], [0, 0, 1, 1], [], []>} : vector<4x8xbf16>, vector<8x256xbf16>, vector<4x256xf32> -> vector<4x256xf32>
    %119 = arith.truncf %118 : vector<4x256xf32> to vector<4x256xbf16>
    %c0_106 = arith.constant 0 : index
    %c0_107 = arith.constant 0 : index
    %c0_108 = arith.constant 0 : index
    %120 = vector.load %arg9[%c0_106, %c0_107, %c0_108] : memref<4x256x256xbf16, #tpu.memory_space<vmem>>, vector<1x256x256xbf16>
    %121 = vector.shape_cast %120 : vector<1x256x256xbf16> to vector<256x256xbf16>
    %cst_109 = arith.constant dense<0.000000e+00> : vector<4x256xf32>
    %122 = tpu.matmul %119, %121, %cst_109 {dimension_numbers = #tpu.dot_dimension_numbers<[1], [0], [0], [1], [0, 0, 1, 1], [], []>} : vector<4x256xbf16>, vector<256x256xbf16>, vector<4x256xf32> -> vector<4x256xf32>
    %c1_110 = arith.constant 1 : index
    %c0_111 = arith.constant 0 : index
    %c0_112 = arith.constant 0 : index
    %123 = vector.load %arg5[%c1_110, %c0_111, %c0_112] : memref<4x4x8xbf16, #tpu.memory_space<vmem>>, vector<1x4x8xbf16>
    %124 = vector.shape_cast %123 : vector<1x4x8xbf16> to vector<4x8xbf16>
    %cst_113 = arith.constant dense<0.000000e+00> : vector<4x256xf32>
    %125 = tpu.matmul %124, %115, %cst_113 {dimension_numbers = #tpu.dot_dimension_numbers<[1], [0], [0], [1], [0, 0, 1, 1], [], []>} : vector<4x8xbf16>, vector<8x256xbf16>, vector<4x256xf32> -> vector<4x256xf32>
    %126 = arith.truncf %125 : vector<4x256xf32> to vector<4x256xbf16>
    %c1_114 = arith.constant 1 : index
    %c0_115 = arith.constant 0 : index
    %c0_116 = arith.constant 0 : index
    %127 = vector.load %arg9[%c1_114, %c0_115, %c0_116] : memref<4x256x256xbf16, #tpu.memory_space<vmem>>, vector<1x256x256xbf16>
    %128 = vector.shape_cast %127 : vector<1x256x256xbf16> to vector<256x256xbf16>
    %cst_117 = arith.constant dense<0.000000e+00> : vector<4x256xf32>
    %129 = tpu.matmul %126, %128, %cst_117 {dimension_numbers = #tpu.dot_dimension_numbers<[1], [0], [0], [1], [0, 0, 1, 1], [], []>} : vector<4x256xbf16>, vector<256x256xbf16>, vector<4x256xf32> -> vector<4x256xf32>
    %130 = arith.addf %122, %129 : vector<4x256xf32>
    %c2_118 = arith.constant 2 : index
    %c0_119 = arith.constant 0 : index
    %c0_120 = arith.constant 0 : index
    %131 = vector.load %arg5[%c2_118, %c0_119, %c0_120] : memref<4x4x8xbf16, #tpu.memory_space<vmem>>, vector<1x4x8xbf16>
    %132 = vector.shape_cast %131 : vector<1x4x8xbf16> to vector<4x8xbf16>
    %cst_121 = arith.constant dense<0.000000e+00> : vector<4x256xf32>
    %133 = tpu.matmul %132, %115, %cst_121 {dimension_numbers = #tpu.dot_dimension_numbers<[1], [0], [0], [1], [0, 0, 1, 1], [], []>} : vector<4x8xbf16>, vector<8x256xbf16>, vector<4x256xf32> -> vector<4x256xf32>
    %134 = arith.truncf %133 : vector<4x256xf32> to vector<4x256xbf16>
    %c2_122 = arith.constant 2 : index
    %c0_123 = arith.constant 0 : index
    %c0_124 = arith.constant 0 : index
    %135 = vector.load %arg9[%c2_122, %c0_123, %c0_124] : memref<4x256x256xbf16, #tpu.memory_space<vmem>>, vector<1x256x256xbf16>
    %136 = vector.shape_cast %135 : vector<1x256x256xbf16> to vector<256x256xbf16>
    %cst_125 = arith.constant dense<0.000000e+00> : vector<4x256xf32>
    %137 = tpu.matmul %134, %136, %cst_125 {dimension_numbers = #tpu.dot_dimension_numbers<[1], [0], [0], [1], [0, 0, 1, 1], [], []>} : vector<4x256xbf16>, vector<256x256xbf16>, vector<4x256xf32> -> vector<4x256xf32>
    %138 = arith.addf %130, %137 : vector<4x256xf32>
    %c3_126 = arith.constant 3 : index
    %c0_127 = arith.constant 0 : index
    %c0_128 = arith.constant 0 : index
    %139 = vector.load %arg5[%c3_126, %c0_127, %c0_128] : memref<4x4x8xbf16, #tpu.memory_space<vmem>>, vector<1x4x8xbf16>
    %140 = vector.shape_cast %139 : vector<1x4x8xbf16> to vector<4x8xbf16>
    %cst_129 = arith.constant dense<0.000000e+00> : vector<4x256xf32>
    %141 = tpu.matmul %140, %115, %cst_129 {dimension_numbers = #tpu.dot_dimension_numbers<[1], [0], [0], [1], [0, 0, 1, 1], [], []>} : vector<4x8xbf16>, vector<8x256xbf16>, vector<4x256xf32> -> vector<4x256xf32>
    %142 = arith.truncf %141 : vector<4x256xf32> to vector<4x256xbf16>
    %c3_130 = arith.constant 3 : index
    %c0_131 = arith.constant 0 : index
    %c0_132 = arith.constant 0 : index
    %143 = vector.load %arg9[%c3_130, %c0_131, %c0_132] : memref<4x256x256xbf16, #tpu.memory_space<vmem>>, vector<1x256x256xbf16>
    %144 = vector.shape_cast %143 : vector<1x256x256xbf16> to vector<256x256xbf16>
    %cst_133 = arith.constant dense<0.000000e+00> : vector<4x256xf32>
    %145 = tpu.matmul %142, %144, %cst_133 {dimension_numbers = #tpu.dot_dimension_numbers<[1], [0], [0], [1], [0, 0, 1, 1], [], []>} : vector<4x256xbf16>, vector<256x256xbf16>, vector<4x256xf32> -> vector<4x256xf32>
    %146 = arith.addf %138, %145 : vector<4x256xf32>
    %cst_134 = arith.constant 0.000000e+00 : f32
    %147 = vector.broadcast %cst_134 : f32 to vector<4x256xf32>
    %148 = arith.cmpf ogt, %146, %147 : vector<4x256xf32>
    %cst_135 = arith.constant 2.000000e-01 : f32
    %149 = vector.broadcast %cst_135 : f32 to vector<4x256xf32>
    %150 = arith.mulf %149, %146 : vector<4x256xf32>
    %151 = arith.select %148, %146, %150 : vector<4x256xi1>, vector<4x256xf32>
    %152 = arith.truncf %151 : vector<4x256xf32> to vector<4x256xbf16>
    %153 = arith.extf %152 : vector<4x256xbf16> to vector<4x256xf32>
    %c0_136 = arith.constant 0 : index
    %c0_137 = arith.constant 0 : index
    %154 = vector.load %arg11[%c0_136, %c0_137] : memref<4x256xf32, #tpu.memory_space<vmem>>, vector<4x256xf32>
    %155 = arith.mulf %153, %154 : vector<4x256xf32>
    %156 = vector.shape_cast %155 : vector<4x256xf32> to vector<1x4x256xf32>
    %cst_138 = arith.constant dense<0.000000e+00> : vector<1xf32>
    %157 = vector.multi_reduction <add>, %156, %cst_138 [1, 2] : vector<1x4x256xf32> to vector<1xf32>
    %158 = vector.shape_cast %157 : vector<1xf32> to vector<1x1x1xf32>
    %159 = vector.extract %158[0, 0, 0] : f32 from vector<1x1x1xf32>
    %160 = vector.broadcast %159 : f32 to vector<1x1xf32>
    %c0_139 = arith.constant 0 : index
    %c0_140 = arith.constant 0 : index
    %161 = vector.load %arg12[%c0_139, %c0_140] : memref<1x1xf32, #tpu.memory_space<vmem>>, vector<1x1xf32>
    %162 = arith.addf %160, %161 : vector<1x1xf32>
    %163 = arith.negf %162 : vector<1x1xf32>
    %164 = math.exp %163 : vector<1x1xf32>
    %cst_141 = arith.constant 1.000000e+00 : f32
    %165 = vector.broadcast %cst_141 : f32 to vector<1x1xf32>
    %166 = arith.addf %165, %164 : vector<1x1xf32>
    %167 = arith.divf %165, %166 : vector<1x1xf32>
    %c0_142 = arith.constant 0 : index
    %c0_143 = arith.constant 0 : index
    %c0_144 = arith.constant 0 : index
    %168 = vector.load %arg13[%c0_142, %c0_143, %c0_144] : memref<1x1x1xf32, #tpu.memory_space<vmem>>, vector<1x1x1xf32>
    %169 = vector.shape_cast %168 : vector<1x1x1xf32> to vector<1x1xf32>
    %170 = vector.shape_cast %167 : vector<1x1xf32> to vector<1x1x1xf32>
    tpu.vector_store %arg13[%c0_142, %c0_143, %c0_144], %170 {strides = array<i32>} : memref<1x1x1xf32, #tpu.memory_space<vmem>>, vector<1x1x1xf32>,
    return
  }
  func.func @transform_0(%arg0: i32) -> (i32, i32, i32) {
    %c0_i32 = arith.constant 0 : i32
    %c0_i32_0 = arith.constant 0 : i32
    %c0_i32_1 = arith.constant 0 : i32
    return %arg0, %c0_i32, %c0_i32_0 : i32, i32, i32
  }
  func.func @transform_1(%arg0: i32) -> (i32, i32, i32) {
    %c0_i32 = arith.constant 0 : i32
    %c0_i32_0 = arith.constant 0 : i32
    %c0_i32_1 = arith.constant 0 : i32
    %c0_i32_2 = arith.constant 0 : i32
    return %c0_i32, %c0_i32_0, %c0_i32_1 : i32, i32, i32
  }
  func.func @transform_2(%arg0: i32) -> (i32, i32, i32) {
    %c0_i32 = arith.constant 0 : i32
    %c0_i32_0 = arith.constant 0 : i32
    %c0_i32_1 = arith.constant 0 : i32
    %c0_i32_2 = arith.constant 0 : i32
    return %c0_i32, %c0_i32_0, %c0_i32_1 : i32, i32, i32
  }
  func.func @transform_3(%arg0: i32) -> (i32, i32, i32) {
    %c0_i32 = arith.constant 0 : i32
    %c0_i32_0 = arith.constant 0 : i32
    %c0_i32_1 = arith.constant 0 : i32
    %c0_i32_2 = arith.constant 0 : i32
    return %c0_i32, %c0_i32_0, %c0_i32_1 : i32, i32, i32
  }
  func.func @transform_4(%arg0: i32) -> (i32, i32, i32) {
    %c0_i32 = arith.constant 0 : i32
    %c0_i32_0 = arith.constant 0 : i32
    %c0_i32_1 = arith.constant 0 : i32
    %c0_i32_2 = arith.constant 0 : i32
    return %c0_i32, %c0_i32_0, %c0_i32_1 : i32, i32, i32
  }
  func.func @transform_5(%arg0: i32) -> (i32, i32, i32) {
    %c0_i32 = arith.constant 0 : i32
    %c0_i32_0 = arith.constant 0 : i32
    %c0_i32_1 = arith.constant 0 : i32
    %c0_i32_2 = arith.constant 0 : i32
    return %c0_i32, %c0_i32_0, %c0_i32_1 : i32, i32, i32
  }
  func.func @transform_6(%arg0: i32) -> (i32, i32, i32) {
    %c0_i32 = arith.constant 0 : i32
    %c0_i32_0 = arith.constant 0 : i32
    %c0_i32_1 = arith.constant 0 : i32
    %c0_i32_2 = arith.constant 0 : i32
    return %c0_i32, %c0_i32_0, %c0_i32_1 : i32, i32, i32
  }
  func.func @transform_7(%arg0: i32) -> (i32, i32, i32) {
    %c0_i32 = arith.constant 0 : i32
    %c0_i32_0 = arith.constant 0 : i32
    %c0_i32_1 = arith.constant 0 : i32
    %c0_i32_2 = arith.constant 0 : i32
    return %c0_i32, %c0_i32_0, %c0_i32_1 : i32, i32, i32
  }
  func.func @transform_8(%arg0: i32) -> (i32, i32, i32) {
    %c0_i32 = arith.constant 0 : i32
    %c0_i32_0 = arith.constant 0 : i32
    %c0_i32_1 = arith.constant 0 : i32
    %c0_i32_2 = arith.constant 0 : i32
    return %c0_i32, %c0_i32_0, %c0_i32_1 : i32, i32, i32
  }
  func.func @transform_9(%arg0: i32) -> (i32, i32) {
    %c0_i32 = arith.constant 0 : i32
    %c0_i32_0 = arith.constant 0 : i32
    %c0_i32_1 = arith.constant 0 : i32
    return %c0_i32, %c0_i32_0 : i32, i32
  }
  func.func @transform_10(%arg0: i32) -> (i32, i32) {
    %c0_i32 = arith.constant 0 : i32
    %c0_i32_0 = arith.constant 0 : i32
    %c0_i32_1 = arith.constant 0 : i32
    return %c0_i32, %c0_i32_0 : i32, i32
  }
  func.func @transform_11(%arg0: i32) -> (i32, i32) {
    %c0_i32 = arith.constant 0 : i32
    %c0_i32_0 = arith.constant 0 : i32
    %c0_i32_1 = arith.constant 0 : i32
    return %c0_i32, %c0_i32_0 : i32, i32
  }
  func.func @transform_12(%arg0: i32) -> (i32, i32, i32) {
    %c0_i32 = arith.constant 0 : i32
    %c0_i32_0 = arith.constant 0 : i32
    %c0_i32_1 = arith.constant 0 : i32
    return %arg0, %c0_i32, %c0_i32_0 : i32, i32, i32
  }
}

</mosaic_0001>

<llo_original>
// kernel: discriminator_forward.1
$region0: #{discriminator_forward.1}
  #allocation0 [shape = 'u32[]', space=smem, size = 0x4, offset = 0x4, fixed_abs, tag = 'smem constant byte address 0x4 - core index']
  #allocation1 [shape = 'u32[144,128]{1,0:T(1,128)}', space=vmem, size = 0x12000, scoped, tag = 'internal scratch']
  #allocation2 [shape = 'f32[1,1]{1,0:T(1,128)S(1)}', space=vmem, size = 0x200, scoped, tag = 'scoped memory for discriminator_forward.1']
  %s0 = inlined_call_operand.vmem [shape: bf16[2,64,256], index: 0, kind: input, shape index: {}]
  %s1 = inlined_call_operand.vmem [shape: bf16[4,32,64], index: 1, kind: input, shape index: {}]
  %s2 = inlined_call_operand.vmem [shape: bf16[4,16,32], index: 2, kind: input, shape index: {}]
  %s3 = inlined_call_operand.vmem [shape: bf16[4,8,16], index: 3, kind: input, shape index: {}]
  %s4 = inlined_call_operand.vmem [shape: bf16[4,4,8], index: 4, kind: input, shape index: {}]
  %s5 = inlined_call_operand.vmem [shape: bf16[4,256,256], index: 5, kind: input, shape index: {}]
  %s6 = inlined_call_operand.hbm [shape: bf16[4,256,256], index: 6, kind: input, shape index: {}]
  %s7 = inlined_call_operand.hbm [shape: bf16[4,256,256], index: 7, kind: input, shape index: {}]
  %s8 = inlined_call_operand.hbm [shape: bf16[4,256,256], index: 8, kind: input, shape index: {}]
  %s9 = inlined_call_operand.vmem [shape: f32[1,256], index: 9, kind: input, shape index: {}]
  %s10 = inlined_call_operand.vmem [shape: f32[4,256], index: 10, kind: input, shape index: {}]
  %s11 = inlined_call_operand.<no memory space> [shape: f32[1,1], index: 11, kind: input, shape index: {}]
  %s12 = inlined_call_operand.vmem [shape: f32[2,1,1], index: 12, kind: output, shape index: {}]
  %s13 = sld [smem:[#allocation0]]
  $region93: #{discriminator_forward.1} parent=0
    _
  %s15 = ssub.s32 1, %s13
  %s16 = scalar_select 0, %s15, %s13
  %v17 = vstv %s11
  %18 = vst [vmem:[#allocation2] sm:$0x1] %v17
  $region1: #{discriminator_forward.1} parent=0
    #allocation3 [shape = 'u8[524288]{0}', space=vmem, size = 0x80000, scoped, tag = 'input window, operand 6, single buffered']
    #allocation4 [shape = 's32[2]{0}', space=sflag, size = 0x8, scoped, tag = 'scoped memory for discriminator_forward.1']
    #allocation5 [shape = 'u8[524288]{0}', space=vmem, size = 0x80000, scoped, tag = 'input window, operand 7, single buffered']
    #allocation6 [shape = 's32[1]{0}', space=sflag, size = 0x4, scoped, tag = 'scoped memory for discriminator_forward.1']
    #allocation7 [shape = 'u8[524288]{0}', space=vmem, size = 0x80000, scoped, tag = 'input window, operand 8, single buffered']
    %19 = vsyncpa [#allocation4], 0
    %20 = vsyncpa [#allocation6], 0
    loop: start=0, step=1, limit=4
    $region2: #{discriminator_forward.1} parent=1 // loop_pre_header
      _
    $region3: #{discriminator_forward.1} parent=1 // loop_header
      %s22 = sphi 0, %s26
      %p23 = scmp.ge.s32.totalorder %s22, 4
      %s32 = sphi 0, %s34
      %s35 = sphi 0, %s32
      %s36 = sphi 0, %s35
      %s52 = sphi 0, %s36
      %s56 = sphi 0, %s56
      %s58 = sphi 0, %s56
      %s59 = sphi 0, %s58
      %s73 = sphi 0, %s59
      %s77 = sphi 0, %s77
      %s79 = sphi 0, %s77
      %s80 = sphi 0, %s79
      %s94 = sphi 0, %s80
      %s98 = sphi 0, %s98
      %s100 = sphi 0, %s98
      %s101 = sphi 0, %s100
      %s115 = sphi 0, %s101
      %s119 = sphi 0, %s119
      %s121 = sphi 0, %s119
      %s122 = sphi 0, %s121
      %s136 = sphi 0, %s122
      %s140 = sphi 0, %s140
      %s142 = sphi 0, %s140
      %s143 = sphi 0, %s142
      %s157 = sphi 0, %s143
      %s161 = sphi 0, %s161
      %s163 = sphi 0, %s161
      %s164 = sphi 0, %s163
      %s178 = sphi 0, %s164
      %s182 = sphi 0, %s182
      %s184 = sphi 0, %s182
      %s185 = sphi 0, %s184
      %s199 = sphi 0, %s185
      %s203 = sphi 0, %s203
      %s205 = sphi 0, %s203
      %s206 = sphi 0, %s205
      %s220 = sphi 0, %s206
      %s224 = sphi 0, %s224
      %s226 = sphi 0, %s224
      %s227 = sphi 0, %s226
      %s241 = sphi 0, %s227
      %s245 = sphi 0, %s245
      %s247 = sphi 0, %s245
      %s248 = sphi 0, %s247
      %s262 = sphi 0, %s248
      %s266 = sphi 0, %s266
      %s268 = sphi 0, %s266
      %s269 = sphi 0, %s268
      %s283 = sphi 0, %s269
      %s289 = sphi 0, %s291
      %s292 = sphi 0, %s289
      %s293 = sphi 0, %s292
      %s309 = sphi 0, %s293
    $region4: #{discriminator_forward.1} parent=1 // loop_header_branch
      %25 = sbr.rel (%p23) target = $region8
    $region5: #{discriminator_forward.1} parent=1 // loop_body
      %s27 = ssub.s32 %s22, 1
      %s28 = ssub.s32 %s22, 2
      %s29 = sadd.s32 %s22, 1
      %s30 = ssub.s32 %s22, %s29
      %p31 = scmp.eq.s32.totalorder %s30, 0
      %s33 = sadd.s32 %s32, 1
      %s34 = scalar_select %p31, %s32, %s33
      %p37 = pneg %p31
      %p38 = scmp.eq.s32.totalorder %s22, 1
      %p39 = por %p37, %p38
      %p40 = scmp.ne.s32.totalorder %s32, %s35
      %p41 = scmp.eq.s32.totalorder %s22, 0
      %p42 = por %p40, %p41
      %p43 = scmp.ne.s32.totalorder %s32, %s35
      %p44 = scmp.eq.s32.totalorder %s27, 1
      %p45 = por %p43, %p44
      %p46 = scmp.ne.s32.totalorder %s35, %s36
      %p47 = scmp.eq.s32.totalorder %s27, 0
      %p48 = por %p46, %p47
      %p49 = scmp.ne.s32.totalorder %s35, %s36
      %p50 = scmp.eq.s32.totalorder %s28, 1
      %p51 = por %p49, %p50
      %p53 = scmp.ne.s32.totalorder %s36, %s52
      %p54 = scmp.eq.s32.totalorder %s28, 0
      %p55 = por %p53, %p54
      %s57 = sadd.s32 %s56, 1
      %p60 = scmp.eq.s32.totalorder %s22, 1
      %p61 = scmp.ne.s32.totalorder %s56, %s58
      %p62 = scmp.eq.s32.totalorder %s22, 0
      %p63 = por %p61, %p62
      %p64 = scmp.ne.s32.totalorder %s56, %s58
      %p65 = scmp.eq.s32.totalorder %s27, 1
      %p66 = por %p64, %p65
      %p67 = scmp.ne.s32.totalorder %s58, %s59
      %p68 = scmp.eq.s32.totalorder %s27, 0
      %p69 = por %p67, %p68
      %p70 = scmp.ne.s32.totalorder %s58, %s59
      %p71 = scmp.eq.s32.totalorder %s28, 1
      %p72 = por %p70, %p71
      %p74 = scmp.ne.s32.totalorder %s59, %s73
      %p75 = scmp.eq.s32.totalorder %s28, 0
      %p76 = por %p74, %p75
      %s78 = sadd.s32 %s77, 1
      %p81 = scmp.eq.s32.totalorder %s22, 1
      %p82 = scmp.ne.s32.totalorder %s77, %s79
      %p83 = scmp.eq.s32.totalorder %s22, 0
      %p84 = por %p82, %p83
      %p85 = scmp.ne.s32.totalorder %s77, %s79
      %p86 = scmp.eq.s32.totalorder %s27, 1
      %p87 = por %p85, %p86
      %p88 = scmp.ne.s32.totalorder %s79, %s80
      %p89 = scmp.eq.s32.totalorder %s27, 0
      %p90 = por %p88, %p89
      %p91 = scmp.ne.s32.totalorder %s79, %s80
      %p92 = scmp.eq.s32.totalorder %s28, 1
      %p93 = por %p91, %p92
      %p95 = scmp.ne.s32.totalorder %s80, %s94
      %p96 = scmp.eq.s32.totalorder %s28, 0
      %p97 = por %p95, %p96
      %s99 = sadd.s32 %s98, 1
      %p102 = scmp.eq.s32.totalorder %s22, 1
      %p103 = scmp.ne.s32.totalorder %s98, %s100
      %p104 = scmp.eq.s32.totalorder %s22, 0
      %p105 = por %p103, %p104
      %p106 = scmp.ne.s32.totalorder %s98, %s100
      %p107 = scmp.eq.s32.totalorder %s27, 1
      %p108 = por %p106, %p107
      %p109 = scmp.ne.s32.totalorder %s100, %s101
      %p110 = scmp.eq.s32.totalorder %s27, 0
      %p111 = por %p109, %p110
      %p112 = scmp.ne.s32.totalorder %s100, %s101
      %p113 = scmp.eq.s32.totalorder %s28, 1
      %p114 = por %p112, %p113
      %p116 = scmp.ne.s32.totalorder %s101, %s115
      %p117 = scmp.eq.s32.totalorder %s28, 0
      %p118 = por %p116, %p117
      %s120 = sadd.s32 %s119, 1
      %p123 = scmp.eq.s32.totalorder %s22, 1
      %p124 = scmp.ne.s32.totalorder %s119, %s121
      %p125 = scmp.eq.s32.totalorder %s22, 0
      %p126 = por %p124, %p125
      %p127 = scmp.ne.s32.totalorder %s119, %s121
      %p128 = scmp.eq.s32.totalorder %s27, 1
      %p129 = por %p127, %p128
      %p130 = scmp.ne.s32.totalorder %s121, %s122
      %p131 = scmp.eq.s32.totalorder %s27, 0
      %p132 = por %p130, %p131
      %p133 = scmp.ne.s32.totalorder %s121, %s122
      %p134 = scmp.eq.s32.totalorder %s28, 1
      %p135 = por %p133, %p134
      %p137 = scmp.ne.s32.totalorder %s122, %s136
      %p138 = scmp.eq.s32.totalorder %s28, 0
      %p139 = por %p137, %p138
      %s141 = sadd.s32 %s140, 1
      %p144 = scmp.eq.s32.totalorder %s22, 1
      %p145 = scmp.ne.s32.totalorder %s140, %s142
      %p146 = scmp.eq.s32.totalorder %s22, 0
      %p147 = por %p145, %p146
      %p148 = scmp.ne.s32.totalorder %s140, %s142
      %p149 = scmp.eq.s32.totalorder %s27, 1
      %p150 = por %p148, %p149
      %p151 = scmp.ne.s32.totalorder %s142, %s143
      %p152 = scmp.eq.s32.totalorder %s27, 0
      %p153 = por %p151, %p152
      %p154 = scmp.ne.s32.totalorder %s142, %s143
      %p155 = scmp.eq.s32.totalorder %s28, 1
      %p156 = por %p154, %p155
      %p158 = scmp.ne.s32.totalorder %s143, %s157
      %p159 = scmp.eq.s32.totalorder %s28, 0
      %p160 = por %p158, %p159
      %s162 = sadd.s32 %s161, 1
      %p165 = scmp.eq.s32.totalorder %s22, 1
      %p166 = scmp.ne.s32.totalorder %s161, %s163
      %p167 = scmp.eq.s32.totalorder %s22, 0
      %p168 = por %p166, %p167
      %p169 = scmp.ne.s32.totalorder %s161, %s163
      %p170 = scmp.eq.s32.totalorder %s27, 1
      %p171 = por %p169, %p170
      %p172 = scmp.ne.s32.totalorder %s163, %s164
      %p173 = scmp.eq.s32.totalorder %s27, 0
      %p174 = por %p172, %p173
      %p175 = scmp.ne.s32.totalorder %s163, %s164
      %p176 = scmp.eq.s32.totalorder %s28, 1
      %p177 = por %p175, %p176
      %p179 = scmp.ne.s32.totalorder %s164, %s178
      %p180 = scmp.eq.s32.totalorder %s28, 0
      %p181 = por %p179, %p180
      %s183 = sadd.s32 %s182, 1
      %p186 = scmp.eq.s32.totalorder %s22, 1
      %p187 = scmp.ne.s32.totalorder %s182, %s184
      %p188 = scmp.eq.s32.totalorder %s22, 0
      %p189 = por %p187, %p188
      %p190 = scmp.ne.s32.totalorder %s182, %s184
      %p191 = scmp.eq.s32.totalorder %s27, 1
      %p192 = por %p190, %p191
      %p193 = scmp.ne.s32.totalorder %s184, %s185
      %p194 = scmp.eq.s32.totalorder %s27, 0
      %p195 = por %p193, %p194
      %p196 = scmp.ne.s32.totalorder %s184, %s185
      %p197 = scmp.eq.s32.totalorder %s28, 1
      %p198 = por %p196, %p197
      %p200 = scmp.ne.s32.totalorder %s185, %s199
      %p201 = scmp.eq.s32.totalorder %s28, 0
      %p202 = por %p200, %p201
      %s204 = sadd.s32 %s203, 1
      %p207 = scmp.eq.s32.totalorder %s22, 1
      %p208 = scmp.ne.s32.totalorder %s203, %s205
      %p209 = scmp.eq.s32.totalorder %s22, 0
      %p210 = por %p208, %p209
      %p211 = scmp.ne.s32.totalorder %s203, %s205
      %p212 = scmp.eq.s32.totalorder %s27, 1
      %p213 = por %p211, %p212
      %p214 = scmp.ne.s32.totalorder %s205, %s206
      %p215 = scmp.eq.s32.totalorder %s27, 0
      %p216 = por %p214, %p215
      %p217 = scmp.ne.s32.totalorder %s205, %s206
      %p218 = scmp.eq.s32.totalorder %s28, 1
      %p219 = por %p217, %p218
      %p221 = scmp.ne.s32.totalorder %s206, %s220
      %p222 = scmp.eq.s32.totalorder %s28, 0
      %p223 = por %p221, %p222
      %s225 = sadd.s32 %s224, 1
      %p228 = scmp.eq.s32.totalorder %s22, 1
      %p229 = scmp.ne.s32.totalorder %s224, %s226
      %p230 = scmp.eq.s32.totalorder %s22, 0
      %p231 = por %p229, %p230
      %p232 = scmp.ne.s32.totalorder %s224, %s226
      %p233 = scmp.eq.s32.totalorder %s27, 1
      %p234 = por %p232, %p233
      %p235 = scmp.ne.s32.totalorder %s226, %s227
      %p236 = scmp.eq.s32.totalorder %s27, 0
      %p237 = por %p235, %p236
      %p238 = scmp.ne.s32.totalorder %s226, %s227
      %p239 = scmp.eq.s32.totalorder %s28, 1
      %p240 = por %p238, %p239
      %p242 = scmp.ne.s32.totalorder %s227, %s241
      %p243 = scmp.eq.s32.totalorder %s28, 0
      %p244 = por %p242, %p243
      %s246 = sadd.s32 %s245, 1
      %p249 = scmp.eq.s32.totalorder %s22, 1
      %p250 = scmp.ne.s32.totalorder %s245, %s247
      %p251 = scmp.eq.s32.totalorder %s22, 0
      %p252 = por %p250, %p251
      %p253 = scmp.ne.s32.totalorder %s245, %s247
      %p254 = scmp.eq.s32.totalorder %s27, 1
      %p255 = por %p253, %p254
      %p256 = scmp.ne.s32.totalorder %s247, %s248
      %p257 = scmp.eq.s32.totalorder %s27, 0
      %p258 = por %p256, %p257
      %p259 = scmp.ne.s32.totalorder %s247, %s248
      %p260 = scmp.eq.s32.totalorder %s28, 1
      %p261 = por %p259, %p260
      %p263 = scmp.ne.s32.totalorder %s248, %s262
      %p264 = scmp.eq.s32.totalorder %s28, 0
      %p265 = por %p263, %p264
      %s267 = sadd.s32 %s266, 1
      %p270 = scmp.eq.s32.totalorder %s22, 1
      %p271 = scmp.ne.s32.totalorder %s266, %s268
      %p272 = scmp.eq.s32.totalorder %s22, 0
      %p273 = por %p271, %p272
      %p274 = scmp.ne.s32.totalorder %s266, %s268
      %p275 = scmp.eq.s32.totalorder %s27, 1
      %p276 = por %p274, %p275
      %p277 = scmp.ne.s32.totalorder %s268, %s269
      %p278 = scmp.eq.s32.totalorder %s27, 0
      %p279 = por %p277, %p278
      %p280 = scmp.ne.s32.totalorder %s268, %s269
      %p281 = scmp.eq.s32.totalorder %s28, 1
      %p282 = por %p280, %p281
      %p284 = scmp.ne.s32.totalorder %s269, %s283
      %p285 = scmp.eq.s32.totalorder %s28, 0
      %p286 = por %p284, %p285
      %s287 = ssub.s32 %s22, %s29
      %p288 = scmp.eq.s32.totalorder %s287, 0
      %s290 = sadd.s32 %s289, 1
      %s291 = scalar_select %p288, %s289, %s290
      %p294 = pneg %p288
      %p295 = scmp.eq.s32.totalorder %s22, 1
      %p296 = por %p294, %p295
      %p297 = scmp.ne.s32.totalorder %s289, %s292
      %p298 = scmp.eq.s32.totalorder %s22, 0
      %p299 = por %p297, %p298
      %p300 = scmp.ne.s32.totalorder %s289, %s292
      %p301 = scmp.eq.s32.totalorder %s27, 1
      %p302 = por %p300, %p301
      %p303 = scmp.ne.s32.totalorder %s292, %s293
      %p304 = scmp.eq.s32.totalorder %s27, 0
      %p305 = por %p303, %p304
      %p306 = scmp.ne.s32.totalorder %s292, %s293
      %p307 = scmp.eq.s32.totalorder %s28, 1
      %p308 = por %p306, %p307
      %p310 = scmp.ne.s32.totalorder %s293, %s309
      %p311 = scmp.eq.s32.totalorder %s28, 0
      %p312 = por %p310, %p311
      %p313 = scmp.le.s32.totalorder 1, %s22
      %p314 = scmp.lt.s32.totalorder %s22, 3
      %p315 = pnand %p313, %p314
      %p316 = pneg %p315
      // Predicated region
      $region9: #{discriminator_forward.1} parent=5 // pred_check
        _
      $region10: #{discriminator_forward.1} parent=5 // pred_check_branch
        %318 = sbr.rel (%p315) target = $region12
      $region11: #{discriminator_forward.1} parent=5 // pred_region
        %s319 = ssub.s32 %s22, 1
        // Predicated region
        $region13: #{discriminator_forward.1} parent=11 // pred_check
          %p320 = pneg %p69
        $region14: #{discriminator_forward.1} parent=11 // pred_check_branch
          %322 = sbr.rel (%p320) target = $region16
        $region15: #{discriminator_forward.1} parent=11 // pred_region
          _
        $region16: #{discriminator_forward.1} parent=11 // pred_fallthru
          _
        // Predicated region
        $region17: #{discriminator_forward.1} parent=11 // pred_check
          %p323 = pneg %p90
        $region18: #{discriminator_forward.1} parent=11 // pred_check_branch
          %325 = sbr.rel (%p323) target = $region20
        $region19: #{discriminator_forward.1} parent=11 // pred_region
          _
        $region20: #{discriminator_forward.1} parent=11 // pred_fallthru
          _
        // Predicated region
        $region21: #{discriminator_forward.1} parent=11 // pred_check
          %p326 = pneg %p111
        $region22: #{discriminator_forward.1} parent=11 // pred_check_branch
          %328 = sbr.rel (%p326) target = $region24
        $region23: #{discriminator_forward.1} parent=11 // pred_region
          _
        $region24: #{discriminator_forward.1} parent=11 // pred_fallthru
          _
        // Predicated region
        $region25: #{discriminator_forward.1} parent=11 // pred_check
          %p329 = pneg %p132
        $region26: #{discriminator_forward.1} parent=11 // pred_check_branch
          %331 = sbr.rel (%p329) target = $region28
        $region27: #{discriminator_forward.1} parent=11 // pred_region
          _
        $region28: #{discriminator_forward.1} parent=11 // pred_fallthru
          _
        // Predicated region
        $region29: #{discriminator_forward.1} parent=11 // pred_check
          %p332 = pneg %p153
        $region30: #{discriminator_forward.1} parent=11 // pred_check_branch
          %334 = sbr.rel (%p332) target = $region32
        $region31: #{discriminator_forward.1} parent=11 // pred_region
          _
        $region32: #{discriminator_forward.1} parent=11 // pred_fallthru
          _
        // Predicated region
        $region33: #{discriminator_forward.1} parent=11 // pred_check
          %p335 = pneg %p174
        $region34: #{discriminator_forward.1} parent=11 // pred_check_branch
          %337 = sbr.rel (%p335) target = $region36
        $region35: #{discriminator_forward.1} parent=11 // pred_region
          %s339 = ssub.s32 16384, 16384
          %340 = vsyncadd [#allocation4], %s339
          %s341 = sshll.u32 [#allocation3], 4
          %s342 = int_to_ptr.vmem [resolvable:$true] %s341
          %347 = dma.hbm_to_vmem [thread:$0]  %s6, 16384, %s342, [#allocation4], 128, 128, 8
        $region36: #{discriminator_forward.1} parent=11 // pred_fallthru
          _
        // Predicated region
        $region37: #{discriminator_forward.1} parent=11 // pred_check
          %p348 = pneg %p195
        $region38: #{discriminator_forward.1} parent=11 // pred_check_branch
          %350 = sbr.rel (%p348) target = $region40
        $region39: #{discriminator_forward.1} parent=11 // pred_region
          %s352 = ssub.s32 16384, 16384
          %353 = vsyncadd [#allocation6], %s352
          %s354 = sshll.u32 [#allocation5], 4
          %s355 = int_to_ptr.vmem [resolvable:$true] %s354
          %360 = dma.hbm_to_vmem [thread:$0]  %s7, 16384, %s355, [#allocation6], 128, 128, 8
        $region40: #{discriminator_forward.1} parent=11 // pred_fallthru
          _
        // Predicated region
        $region41: #{discriminator_forward.1} parent=11 // pred_check
          %p361 = pneg %p216
        $region42: #{discriminator_forward.1} parent=11 // pred_check_branch
          %363 = sbr.rel (%p361) target = $region44
        $region43: #{discriminator_forward.1} parent=11 // pred_region
          %s365 = ssub.s32 16384, 16384
          %366 = vsyncadd [#allocation6], %s365
          %s367 = sshll.u32 [#allocation7], 4
          %s368 = int_to_ptr.vmem [resolvable:$true] %s367
          %373 = dma.hbm_to_vmem [thread:$0]  %s8, 16384, %s368, [#allocation6], 128, 128, 8
        $region44: #{discriminator_forward.1} parent=11 // pred_fallthru
          _
        // Predicated region
        $region45: #{discriminator_forward.1} parent=11 // pred_check
          %p374 = pneg %p237
        $region46: #{discriminator_forward.1} parent=11 // pred_check_branch
          %376 = sbr.rel (%p374) target = $region48
        $region47: #{discriminator_forward.1} parent=11 // pred_region
          _
        $region48: #{discriminator_forward.1} parent=11 // pred_fallthru
          _
        // Predicated region
        $region49: #{discriminator_forward.1} parent=11 // pred_check
          %p377 = pneg %p258
        $region50: #{discriminator_forward.1} parent=11 // pred_check_branch
          %379 = sbr.rel (%p377) target = $region52
        $region51: #{discriminator_forward.1} parent=11 // pred_region
          _
        $region52: #{discriminator_forward.1} parent=11 // pred_fallthru
          _
        // Predicated region
        $region53: #{discriminator_forward.1} parent=11 // pred_check
          %p380 = pneg %p279
        $region54: #{discriminator_forward.1} parent=11 // pred_check_branch
          %382 = sbr.rel (%p380) target = $region56
        $region55: #{discriminator_forward.1} parent=11 // pred_region
          _
        $region56: #{discriminator_forward.1} parent=11 // pred_fallthru
          _
      $region12: #{discriminator_forward.1} parent=5 // pred_fallthru
        _
      %p383 = scmp.lt.s32.totalorder %s22, 2
      // Predicated region
      $region57: #{discriminator_forward.1} parent=5 // pred_check
        %p384 = pneg %p383
      $region58: #{discriminator_forward.1} parent=5 // pred_check_branch
        %386 = sbr.rel (%p384) target = $region60
      $region59: #{discriminator_forward.1} parent=5 // pred_region
        // Predicated region
        $region61: #{discriminator_forward.1} parent=59 // pred_check
          %p387 = pneg %p42
        $region62: #{discriminator_forward.1} parent=59 // pred_check_branch
          %389 = sbr.rel (%p387) target = $region64
        $region63: #{discriminator_forward.1} parent=59 // pred_region
          %p390 = scmp.lt.s32.totalorder %s22, 1
          %s391 = scalar_select %p390, %s22, 1
          %s392 = smul.addr %s391, 16
          %s393 = smul.addr %s392, 4
          %s394 = scalar_lea.vmem %s0, %s393
        $region64: #{discriminator_forward.1} parent=59 // pred_fallthru
          _
      $region60: #{discriminator_forward.1} parent=5 // pred_fallthru
        _
      %p395 = scmp.le.s32.totalorder 1, %s22
      %p396 = scmp.lt.s32.totalorder %s22, 3
      %p397 = pnand %p395, %p396
      %p398 = pneg %p397
      // Predicated region
      $region65: #{discriminator_forward.1} parent=5 // pred_check
        _
      $region66: #{discriminator_forward.1} parent=5 // pred_check_branch
        %400 = sbr.rel (%p397) target = $region68
      $region67: #{discriminator_forward.1} parent=5 // pred_region
        %s401 = ssub.s32 %s22, 1
        // Predicated region
        $region69: #{discriminator_forward.1} parent=67 // pred_check
          %p402 = pneg %p174
        $region70: #{discriminator_forward.1} parent=67 // pred_check_branch
          %404 = sbr.rel (%p402) target = $region72
        $region71: #{discriminator_forward.1} parent=67 // pred_region
          %405 = dma.done [#allocation4], 16384
        $region72: #{discriminator_forward.1} parent=67 // pred_fallthru
          _
        // Predicated region
        $region73: #{discriminator_forward.1} parent=67 // pred_check
          %p406 = pneg %p195
        $region74: #{discriminator_forward.1} parent=67 // pred_check_branch
          %408 = sbr.rel (%p406) target = $region76
        $region75: #{discriminator_forward.1} parent=67 // pred_region
          %409 = dma.done [#allocation6], 16384
        $region76: #{discriminator_forward.1} parent=67 // pred_fallthru
          _
        // Predicated region
        $region77: #{discriminator_forward.1} parent=67 // pred_check
          %p410 = pneg %p216
        $region78: #{discriminator_forward.1} parent=67 // pred_check_branch
          %412 = sbr.rel (%p410) target = $region80
        $region79: #{discriminator_forward.1} parent=67 // pred_region
          %413 = dma.done [#allocation6], 16384
        $region80: #{discriminator_forward.1} parent=67 // pred_fallthru
          _
        %p414 = scmp.lt.s32.totalorder %s27, 1
        %s415 = scalar_select %p414, %s27, 1
        %s416 = smul.addr %s415, 16
        %s417 = smul.addr %s416, 4
        %s418 = scalar_lea.vmem %s0, %s417
        %p419 = pneg %p48
        %p420 = pneg %p45
        %p421 = pneg %p69
        %p422 = pneg %p66
        %p423 = pneg %p90
        %p424 = pneg %p87
        %p425 = pneg %p111
        %p426 = pneg %p108
        %p427 = pneg %p132
        %p428 = pneg %p129
        %p429 = pneg %p153
        %p430 = pneg %p150
        %p431 = pneg %p174
        %p432 = pneg %p171
        %p433 = pneg %p195
        %p434 = pneg %p192
        %p435 = pneg %p216
        %p436 = pneg %p213
        %p437 = pneg %p237
        %p438 = pneg %p234
        %p439 = pneg %p258
        %p440 = pneg %p255
        %p441 = pneg %p279
        %p442 = pneg %p276
        %p443 = pneg %p305
        %p444 = pneg %p302
        %p445 = scmp.lt.s32.totalorder %s27, 1
        %s446 = scalar_select %p445, %s27, 1
        %s447 = scalar_lea.vmem %s12, %s446
        %p448 = scmp.lt.s32.totalorder %s27, 1
        %s449 = scalar_select %p448, %s27, 1
        %s450 = smul.addr %s449, 16
        %s451 = smul.addr %s450, 4
        %s452 = scalar_lea.vmem %s0, %s451
        %p453 = scmp.lt.s32.totalorder %s27, 1
        %s454 = scalar_select %p453, %s27, 1
        %s455 = scalar_lea.vmem %s12, %s454
        %v457 = vld [vmem:[%s452] sm:$0xff]
        %v458 = vld [vmem:[%s452 + $0x8] sm:$0xff]
        %v459 = vld [vmem:[%s452 + $0x10] sm:$0xff]
        %v460 = vld [vmem:[%s452 + $0x18] sm:$0xff]
        %v461 = vld [vmem:[%s452 + $0x20] sm:$0xff]
        %v462 = vld [vmem:[%s452 + $0x28] sm:$0xff]
        %v463 = vld [vmem:[%s452 + $0x30] sm:$0xff]
        %v464 = vld [vmem:[%s452 + $0x38] sm:$0xff]
        %v465 = vld [vmem:[%s9] sm:$0x3]
        %v466 = vld [vmem:[%s1] sm:$0xf]
        %v467 = vld [vmem:[%s1 + $0x4] sm:$0xf]
        %v468 = vld [vmem:[%s1 + $0x8] sm:$0xf]
        %v469 = vld [vmem:[%s1 + $0xc] sm:$0xf]
        %v474 = vunpack.c.l.b16 %v466
        %v475 = vunpack.c.l.b16 %v467
        %v476 = vunpack.c.l.b16 %v468
        %v477 = vunpack.c.l.b16 %v469
        %v478 = vpack.c.b16 %v475, %v474
        %v479 = vpack.c.b16 %v477, %v476
        %v488 = vunpack.c.l.b16 %v457
        %v489 = vunpack.c.h.b16 %v457
        %v490 = vunpack.c.l.b16 %v458
        %v491 = vunpack.c.h.b16 %v458
        %v492 = vunpack.c.l.b16 %v459
        %v493 = vunpack.c.h.b16 %v459
        %v494 = vunpack.c.l.b16 %v460
        %v495 = vunpack.c.h.b16 %v460
        %v496 = vunpack.c.l.b16 %v461
        %v497 = vunpack.c.h.b16 %v461
        %v498 = vunpack.c.l.b16 %v462
        %v499 = vunpack.c.h.b16 %v462
        %v500 = vunpack.c.l.b16 %v463
        %v501 = vunpack.c.h.b16 %v463
        %v502 = vunpack.c.l.b16 %v464
        %v503 = vunpack.c.h.b16 %v464
        %v504 = vpack.c.b16 %v490, %v488
        %v505 = vpack.c.b16 %v491, %v489
        %v506 = vpack.c.b16 %v494, %v492
        %v507 = vpack.c.b16 %v495, %v493
        %v508 = vpack.c.b16 %v498, %v496
        %v509 = vpack.c.b16 %v499, %v497
        %v510 = vpack.c.b16 %v502, %v500
        %v511 = vpack.c.b16 %v503, %v501
        %vm520 = vcmask 523264
        %v522 = vsel %vm520, %v478, 0
        %v525 = vsel %vm520, %v479, 0
        %527 = vmatprep.subr.bf16.mxu0 %v505
        %528 = vmatpush1.bf16.msra.mxu0 %v504
        %529 = vmatprep.subr.bf16.mxu0 %v507
        %530 = vmatpush1.bf16.msra.mxu0 %v506
        %531 = vmatprep.subr.bf16.mxu0 %v509
        %532 = vmatpush1.bf16.msra.mxu0 %v508
        %533 = vmatprep.subr.bf16.mxu0 %v511
        %534 = vmatpush1.bf16.msra.mxu0 %v510
        %535 = vmatprep.subr.bf16.mxu0 0
        %536 = vmatpush1.bf16.msra.mxu0 0
        %537 = vmatprep.subr.bf16.mxu0 0
        %538 = vmatpush1.bf16.msra.mxu0 0
        %539 = vmatprep.subr.bf16.mxu0 0
        %540 = vmatpush1.bf16.msra.mxu0 0
        %541 = vmatprep.subr.bf16.mxu0 0
        %542 = vmatpush1.bf16.msra.mxu0 0
        %543 = vmatprep.subr.bf16.mxu0 0
        %544 = vmatpush1.bf16.msra.mxu0 0
        %545 = vmatprep.subr.bf16.mxu0 0
        %546 = vmatpush1.bf16.msra.mxu0 0
        %547 = vmatprep.subr.bf16.mxu0 0
        %548 = vmatpush1.bf16.msra.mxu0 0
        %549 = vmatprep.subr.bf16.mxu0 0
        %550 = vmatpush1.bf16.msra.mxu0 0
        %551 = vmatprep.subr.bf16.mxu0 0
        %552 = vmatpush1.bf16.msra.mxu0 0
        %553 = vmatprep.subr.bf16.mxu0 0
        %554 = vmatpush1.bf16.msra.mxu0 0
        %555 = vmatprep.subr.bf16.mxu0 0
        %556 = vmatpush1.bf16.msra.mxu0 0
        %557 = vmatprep.subr.bf16.mxu0 0
        %558 = vmatpush1.bf16.msra.mxu0 0
        %559 = vmatprep.mubr.bf16.mxu0 0
        %560 = vmatmul.mubr.bf16.gmra.mrb[0].mxu0 %v522
        %v561 = vpop.f32.mrb[0].mxu0
        %v562 = vadd.f32 0.0, %v561
        %v563 = vpop.f32.mrb[0].mxu0
        %v564 = vadd.f32 0.0, %v563
        %v565 = vpop.f32.mrb[0].mxu0
        %v566 = vadd.f32 0.0, %v565
        %v567 = vpop.f32.mrb[0].mxu0
        %v568 = vadd.f32 0.0, %v567
        %569 = vmatprep.mubr.bf16.mxu0 0
        %570 = vmatmul.mubr.bf16.gmra.mrb[0].mxu0 %v525
        %v571 = vpop.f32.mrb[0].mxu0
        %v572 = vadd.f32 0.0, %v571
        %v573 = vpop.f32.mrb[0].mxu0
        %v574 = vadd.f32 0.0, %v573
        %v575 = vpop.f32.mrb[0].mxu0
        %v576 = vadd.f32 0.0, %v575
        %v577 = vpop.f32.mrb[0].mxu0
        %v578 = vadd.f32 0.0, %v577
        %579 = vdwg.mxu0
        %v580 = vpack.c.bf16 %v566, %v562
        %v581 = vpack.c.bf16 %v568, %v564
        %v582 = vpack.c.bf16 %v576, %v572
        %v583 = vpack.c.bf16 %v578, %v574
        %v584 = vld [vmem:[%s5] sm:$0xff]
        %v585 = vld [vmem:[%s5 + $0x8] sm:$0xff]
        %v586 = vld [vmem:[%s5 + $0x10] sm:$0xff]
        %v587 = vld [vmem:[%s5 + $0x18] sm:$0xff]
        %v588 = vld [vmem:[%s5 + $0x20] sm:$0xff]
        %v589 = vld [vmem:[%s5 + $0x28] sm:$0xff]
        %v590 = vld [vmem:[%s5 + $0x30] sm:$0xff]
        %v591 = vld [vmem:[%s5 + $0x38] sm:$0xff]
        %v592 = vld [vmem:[%s5 + $0x40] sm:$0xff]
        %v593 = vld [vmem:[%s5 + $0x48] sm:$0xff]
        %v594 = vld [vmem:[%s5 + $0x50] sm:$0xff]
        %v595 = vld [vmem:[%s5 + $0x58] sm:$0xff]
        %v596 = vld [vmem:[%s5 + $0x60] sm:$0xff]
        %v597 = vld [vmem:[%s5 + $0x68] sm:$0xff]
        %v598 = vld [vmem:[%s5 + $0x70] sm:$0xff]
        %v599 = vld [vmem:[%s5 + $0x78] sm:$0xff]
        %v600 = vld [vmem:[%s5 + $0x80] sm:$0xff]
        %v601 = vld [vmem:[%s5 + $0x88] sm:$0xff]
        %v602 = vld [vmem:[%s5 + $0x90] sm:$0xff]
        %v603 = vld [vmem:[%s5 + $0x98] sm:$0xff]
        %v604 = vld [vmem:[%s5 + $0xa0] sm:$0xff]
        %v605 = vld [vmem:[%s5 + $0xa8] sm:$0xff]
        %v606 = vld [vmem:[%s5 + $0xb0] sm:$0xff]
        %v607 = vld [vmem:[%s5 + $0xb8] sm:$0xff]
        %v608 = vld [vmem:[%s5 + $0xc0] sm:$0xff]
        %v609 = vld [vmem:[%s5 + $0xc8] sm:$0xff]
        %v610 = vld [vmem:[%s5 + $0xd0] sm:$0xff]
        %v611 = vld [vmem:[%s5 + $0xd8] sm:$0xff]
        %v612 = vld [vmem:[%s5 + $0xe0] sm:$0xff]
        %v613 = vld [vmem:[%s5 + $0xe8] sm:$0xff]
        %v614 = vld [vmem:[%s5 + $0xf0] sm:$0xff]
        %v615 = vld [vmem:[%s5 + $0xf8] sm:$0xff]
        %s616 = scalar_lea.vmem %s1, 16
        %v617 = vld [vmem:[%s616] sm:$0xf]
        %v618 = vld [vmem:[%s616 + $0x4] sm:$0xf]
        %v619 = vld [vmem:[%s616 + $0x8] sm:$0xf]
        %v620 = vld [vmem:[%s616 + $0xc] sm:$0xf]
        %v625 = vunpack.c.l.b16 %v617
        %v626 = vunpack.c.l.b16 %v618
        %v627 = vunpack.c.l.b16 %v619
        %v628 = vunpack.c.l.b16 %v620
        %v629 = vpack.c.b16 %v626, %v625
        %v630 = vpack.c.b16 %v628, %v627
        %v632 = vsel %vm520, %v629, 0
        %v635 = vsel %vm520, %v630, 0
        %637 = vmatprep.subr.bf16.mxu0 %v505
        %638 = vmatpush1.bf16.msra.mxu0 %v504
        %639 = vmatprep.subr.bf16.mxu0 %v507
        %640 = vmatpush1.bf16.msra.mxu0 %v506
        %641 = vmatprep.subr.bf16.mxu0 %v509
        %642 = vmatpush1.bf16.msra.mxu0 %v508
        %643 = vmatprep.subr.bf16.mxu0 %v511
        %644 = vmatpush1.bf16.msra.mxu0 %v510
        %645 = vmatprep.subr.bf16.mxu0 0
        %646 = vmatpush1.bf16.msra.mxu0 0
        %647 = vmatprep.subr.bf16.mxu0 0
        %648 = vmatpush1.bf16.msra.mxu0 0
        %649 = vmatprep.subr.bf16.mxu0 0
        %650 = vmatpush1.bf16.msra.mxu0 0
        %651 = vmatprep.subr.bf16.mxu0 0
        %652 = vmatpush1.bf16.msra.mxu0 0
        %653 = vmatprep.subr.bf16.mxu0 0
        %654 = vmatpush1.bf16.msra.mxu0 0
        %655 = vmatprep.subr.bf16.mxu0 0
        %656 = vmatpush1.bf16.msra.mxu0 0
        %657 = vmatprep.subr.bf16.mxu0 0
        %658 = vmatpush1.bf16.msra.mxu0 0
        %659 = vmatprep.subr.bf16.mxu0 0
        %660 = vmatpush1.bf16.msra.mxu0 0
        %661 = vmatprep.subr.bf16.mxu0 0
        %662 = vmatpush1.bf16.msra.mxu0 0
        %663 = vmatprep.subr.bf16.mxu0 0
        %664 = vmatpush1.bf16.msra.mxu0 0
        %665 = vmatprep.subr.bf16.mxu0 0
        %666 = vmatpush1.bf16.msra.mxu0 0
        %667 = vmatprep.subr.bf16.mxu0 0
        %668 = vmatpush1.bf16.msra.mxu0 0
        %669 = vmatprep.mubr.bf16.mxu0 0
        %670 = vmatmul.mubr.bf16.gmra.mrb[0].mxu0 %v632
        %v671 = vpop.f32.mrb[0].mxu0
        %v672 = vadd.f32 0.0, %v671
        %v673 = vpop.f32.mrb[0].mxu0
        %v674 = vadd.f32 0.0, %v673
        %v675 = vpop.f32.mrb[0].mxu0
        %v676 = vadd.f32 0.0, %v675
        %v677 = vpop.f32.mrb[0].mxu0
        %v678 = vadd.f32 0.0, %v677
        %679 = vmatprep.mubr.bf16.mxu0 0
        %680 = vmatmul.mubr.bf16.gmra.mrb[0].mxu0 %v635
        %v681 = vpop.f32.mrb[0].mxu0
        %v682 = vadd.f32 0.0, %v681
        %v683 = vpop.f32.mrb[0].mxu0
        %v684 = vadd.f32 0.0, %v683
        %v685 = vpop.f32.mrb[0].mxu0
        %v686 = vadd.f32 0.0, %v685
        %v687 = vpop.f32.mrb[0].mxu0
        %v688 = vadd.f32 0.0, %v687
        %689 = vdwg.mxu0
        %v690 = vpack.c.bf16 %v676, %v672
        %v691 = vpack.c.bf16 %v678, %v674
        %v692 = vpack.c.bf16 %v686, %v682
        %v693 = vpack.c.bf16 %v688, %v684
        %s694 = scalar_lea.vmem %s5, 256
        %v695 = vld [vmem:[%s694] sm:$0xff]
        %v696 = vld [vmem:[%s694 + $0x8] sm:$0xff]
        %v697 = vld [vmem:[%s694 + $0x10] sm:$0xff]
        %v698 = vld [vmem:[%s694 + $0x18] sm:$0xff]
        %v699 = vld [vmem:[%s694 + $0x20] sm:$0xff]
        %v700 = vld [vmem:[%s694 + $0x28] sm:$0xff]
        %v701 = vld [vmem:[%s694 + $0x30] sm:$0xff]
        %v702 = vld [vmem:[%s694 + $0x38] sm:$0xff]
        %v703 = vld [vmem:[%s694 + $0x40] sm:$0xff]
        %v704 = vld [vmem:[%s694 + $0x48] sm:$0xff]
        %v705 = vld [vmem:[%s694 + $0x50] sm:$0xff]
        %v706 = vld [vmem:[%s694 + $0x58] sm:$0xff]
        %v707 = vld [vmem:[%s694 + $0x60] sm:$0xff]
        %v708 = vld [vmem:[%s694 + $0x68] sm:$0xff]
        %v709 = vld [vmem:[%s694 + $0x70] sm:$0xff]
        %v710 = vld [vmem:[%s694 + $0x78] sm:$0xff]
        %v711 = vld [vmem:[%s694 + $0x80] sm:$0xff]
        %v712 = vld [vmem:[%s694 + $0x88] sm:$0xff]
        %v713 = vld [vmem:[%s694 + $0x90] sm:$0xff]
        %v714 = vld [vmem:[%s694 + $0x98] sm:$0xff]
        %v715 = vld [vmem:[%s694 + $0xa0] sm:$0xff]
        %v716 = vld [vmem:[%s694 + $0xa8] sm:$0xff]
        %v717 = vld [vmem:[%s694 + $0xb0] sm:$0xff]
        %v718 = vld [vmem:[%s694 + $0xb8] sm:$0xff]
        %v719 = vld [vmem:[%s694 + $0xc0] sm:$0xff]
        %v720 = vld [vmem:[%s694 + $0xc8] sm:$0xff]
        %v721 = vld [vmem:[%s694 + $0xd0] sm:$0xff]
        %v722 = vld [vmem:[%s694 + $0xd8] sm:$0xff]
        %v723 = vld [vmem:[%s694 + $0xe0] sm:$0xff]
        %v724 = vld [vmem:[%s694 + $0xe8] sm:$0xff]
        %v725 = vld [vmem:[%s694 + $0xf0] sm:$0xff]
        %v726 = vld [vmem:[%s694 + $0xf8] sm:$0xff]
        %v759 = vunpack.c.l.b16 %v695
        %v760 = vunpack.c.h.b16 %v695
        %v761 = vunpack.c.l.b16 %v696
        %v762 = vunpack.c.h.b16 %v696
        %v763 = vunpack.c.l.b16 %v697
        %v764 = vunpack.c.h.b16 %v697
        %v765 = vunpack.c.l.b16 %v698
        %v766 = vunpack.c.h.b16 %v698
        %v767 = vunpack.c.l.b16 %v699
        %v768 = vunpack.c.h.b16 %v699
        %v769 = vunpack.c.l.b16 %v700
        %v770 = vunpack.c.h.b16 %v700
        %v771 = vunpack.c.l.b16 %v701
        %v772 = vunpack.c.h.b16 %v701
        %v773 = vunpack.c.l.b16 %v702
        %v774 = vunpack.c.h.b16 %v702
        %v775 = vunpack.c.l.b16 %v703
        %v776 = vunpack.c.h.b16 %v703
        %v777 = vunpack.c.l.b16 %v704
        %v778 = vunpack.c.h.b16 %v704
        %v779 = vunpack.c.l.b16 %v705
        %v780 = vunpack.c.h.b16 %v705
        %v781 = vunpack.c.l.b16 %v706
        %v782 = vunpack.c.h.b16 %v706
        %v783 = vunpack.c.l.b16 %v707
        %v784 = vunpack.c.h.b16 %v707
        %v785 = vunpack.c.l.b16 %v708
        %v786 = vunpack.c.h.b16 %v708
        %v787 = vunpack.c.l.b16 %v709
        %v788 = vunpack.c.h.b16 %v709
        %v789 = vunpack.c.l.b16 %v710
        %v790 = vunpack.c.h.b16 %v710
        %v791 = vunpack.c.l.b16 %v711
        %v792 = vunpack.c.h.b16 %v711
        %v793 = vunpack.c.l.b16 %v712
        %v794 = vunpack.c.h.b16 %v712
        %v795 = vunpack.c.l.b16 %v713
        %v796 = vunpack.c.h.b16 %v713
        %v797 = vunpack.c.l.b16 %v714
        %v798 = vunpack.c.h.b16 %v714
        %v799 = vunpack.c.l.b16 %v715
        %v800 = vunpack.c.h.b16 %v715
        %v801 = vunpack.c.l.b16 %v716
        %v802 = vunpack.c.h.b16 %v716
        %v803 = vunpack.c.l.b16 %v717
        %v804 = vunpack.c.h.b16 %v717
        %v805 = vunpack.c.l.b16 %v718
        %v806 = vunpack.c.h.b16 %v718
        %v807 = vunpack.c.l.b16 %v719
        %v808 = vunpack.c.h.b16 %v719
        %v809 = vunpack.c.l.b16 %v720
        %v810 = vunpack.c.h.b16 %v720
        %v811 = vunpack.c.l.b16 %v721
        %v812 = vunpack.c.h.b16 %v721
        %v813 = vunpack.c.l.b16 %v722
        %v814 = vunpack.c.h.b16 %v722
        %v815 = vunpack.c.l.b16 %v723
        %v816 = vunpack.c.h.b16 %v723
        %v817 = vunpack.c.l.b16 %v724
        %v818 = vunpack.c.h.b16 %v724
        %v819 = vunpack.c.l.b16 %v725
        %v820 = vunpack.c.h.b16 %v725
        %v821 = vunpack.c.l.b16 %v726
        %v822 = vunpack.c.h.b16 %v726
        %v823 = vpack.c.b16 %v761, %v759
        %v824 = vpack.c.b16 %v762, %v760
        %v825 = vpack.c.b16 %v765, %v763
        %v826 = vpack.c.b16 %v766, %v764
        %v827 = vpack.c.b16 %v769, %v767
        %v828 = vpack.c.b16 %v770, %v768
        %v829 = vpack.c.b16 %v773, %v771
        %v830 = vpack.c.b16 %v774, %v772
        %v831 = vpack.c.b16 %v777, %v775
        %v832 = vpack.c.b16 %v778, %v776
        %v833 = vpack.c.b16 %v781, %v779
        %v834 = vpack.c.b16 %v782, %v780
        %v835 = vpack.c.b16 %v785, %v783
        %v836 = vpack.c.b16 %v786, %v784
        %v837 = vpack.c.b16 %v789, %v787
        %v838 = vpack.c.b16 %v790, %v788
        %v839 = vpack.c.b16 %v793, %v791
        %v840 = vpack.c.b16 %v794, %v792
        %v841 = vpack.c.b16 %v797, %v795
        %v842 = vpack.c.b16 %v798, %v796
        %v843 = vpack.c.b16 %v801, %v799
        %v844 = vpack.c.b16 %v802, %v800
        %v845 = vpack.c.b16 %v805, %v803
        %v846 = vpack.c.b16 %v806, %v804
        %v847 = vpack.c.b16 %v809, %v807
        %v848 = vpack.c.b16 %v810, %v808
        %v849 = vpack.c.b16 %v813, %v811
        %v850 = vpack.c.b16 %v814, %v812
        %v851 = vpack.c.b16 %v817, %v815
        %v852 = vpack.c.b16 %v818, %v816
        %v853 = vpack.c.b16 %v821, %v819
        %v854 = vpack.c.b16 %v822, %v820
        %887 = vmatprep.subr.bf16.mxu0 %v824
        %888 = vmatpush1.bf16.msra.mxu0 %v823
        %889 = vmatprep.subr.bf16.mxu0 %v826
        %890 = vmatpush1.bf16.msra.mxu0 %v825
        %891 = vmatprep.subr.bf16.mxu0 %v828
        %892 = vmatpush1.bf16.msra.mxu0 %v827
        %893 = vmatprep.subr.bf16.mxu0 %v830
        %894 = vmatpush1.bf16.msra.mxu0 %v829
        %895 = vmatprep.subr.bf16.mxu0 %v832
        %896 = vmatpush1.bf16.msra.mxu0 %v831
        %897 = vmatprep.subr.bf16.mxu0 %v834
        %898 = vmatpush1.bf16.msra.mxu0 %v833
        %899 = vmatprep.subr.bf16.mxu0 %v836
        %900 = vmatpush1.bf16.msra.mxu0 %v835
        %901 = vmatprep.subr.bf16.mxu0 %v838
        %902 = vmatpush1.bf16.msra.mxu0 %v837
        %903 = vmatprep.subr.bf16.mxu0 %v840
        %904 = vmatpush1.bf16.msra.mxu0 %v839
        %905 = vmatprep.subr.bf16.mxu0 %v842
        %906 = vmatpush1.bf16.msra.mxu0 %v841
        %907 = vmatprep.subr.bf16.mxu0 %v844
        %908 = vmatpush1.bf16.msra.mxu0 %v843
        %909 = vmatprep.subr.bf16.mxu0 %v846
        %910 = vmatpush1.bf16.msra.mxu0 %v845
        %911 = vmatprep.subr.bf16.mxu0 %v848
        %912 = vmatpush1.bf16.msra.mxu0 %v847
        %913 = vmatprep.subr.bf16.mxu0 %v850
        %914 = vmatpush1.bf16.msra.mxu0 %v849
        %915 = vmatprep.subr.bf16.mxu0 %v852
        %916 = vmatpush1.bf16.msra.mxu0 %v851
        %917 = vmatprep.subr.bf16.mxu0 %v854
        %918 = vmatpush1.bf16.msra.mxu0 %v853
        %919 = vmatprep.mubr.bf16.mxu0 %v691
        %920 = vmatmul.mubr.bf16.gmra.mrb[0].mxu0 %v690
        %v921 = vpop.f32.mrb[0].mxu0
        %v922 = vadd.f32 0.0, %v921
        %v923 = vpop.f32.mrb[0].mxu0
        %v924 = vadd.f32 0.0, %v923
        %v925 = vpop.f32.mrb[0].mxu0
        %v926 = vadd.f32 0.0, %v925
        %v927 = vpop.f32.mrb[0].mxu0
        %v928 = vadd.f32 0.0, %v927
        %929 = vmatprep.mubr.bf16.mxu0 %v693
        %930 = vmatmul.mubr.bf16.gmra.mrb[0].mxu0 %v692
        %v931 = vpop.f32.mrb[0].mxu0
        %v932 = vadd.f32 0.0, %v931
        %v933 = vpop.f32.mrb[0].mxu0
        %v934 = vadd.f32 0.0, %v933
        %v935 = vpop.f32.mrb[0].mxu0
        %v936 = vadd.f32 0.0, %v935
        %v937 = vpop.f32.mrb[0].mxu0
        %v938 = vadd.f32 0.0, %v937
        %939 = vdwg.mxu0
        %v972 = vunpack.c.l.b16 %v584
        %v973 = vunpack.c.h.b16 %v584
        %v974 = vunpack.c.l.b16 %v585
        %v975 = vunpack.c.h.b16 %v585
        %v976 = vunpack.c.l.b16 %v586
        %v977 = vunpack.c.h.b16 %v586
        %v978 = vunpack.c.l.b16 %v587
        %v979 = vunpack.c.h.b16 %v587
        %v980 = vunpack.c.l.b16 %v588
        %v981 = vunpack.c.h.b16 %v588
        %v982 = vunpack.c.l.b16 %v589
        %v983 = vunpack.c.h.b16 %v589
        %v984 = vunpack.c.l.b16 %v590
        %v985 = vunpack.c.h.b16 %v590
        %v986 = vunpack.c.l.b16 %v591
        %v987 = vunpack.c.h.b16 %v591
        %v988 = vunpack.c.l.b16 %v592
        %v989 = vunpack.c.h.b16 %v592
        %v990 = vunpack.c.l.b16 %v593
        %v991 = vunpack.c.h.b16 %v593
        %v992 = vunpack.c.l.b16 %v594
        %v993 = vunpack.c.h.b16 %v594
        %v994 = vunpack.c.l.b16 %v595
        %v995 = vunpack.c.h.b16 %v595
        %v996 = vunpack.c.l.b16 %v596
        %v997 = vunpack.c.h.b16 %v596
        %v998 = vunpack.c.l.b16 %v597
        %v999 = vunpack.c.h.b16 %v597
        %v1000 = vunpack.c.l.b16 %v598
        %v1001 = vunpack.c.h.b16 %v598
        %v1002 = vunpack.c.l.b16 %v599
        %v1003 = vunpack.c.h.b16 %v599
        %v1004 = vunpack.c.l.b16 %v600
        %v1005 = vunpack.c.h.b16 %v600
        %v1006 = vunpack.c.l.b16 %v601
        %v1007 = vunpack.c.h.b16 %v601
        %v1008 = vunpack.c.l.b16 %v602
        %v1009 = vunpack.c.h.b16 %v602
        %v1010 = vunpack.c.l.b16 %v603
        %v1011 = vunpack.c.h.b16 %v603
        %v1012 = vunpack.c.l.b16 %v604
        %v1013 = vunpack.c.h.b16 %v604
        %v1014 = vunpack.c.l.b16 %v605
        %v1015 = vunpack.c.h.b16 %v605
        %v1016 = vunpack.c.l.b16 %v606
        %v1017 = vunpack.c.h.b16 %v606
        %v1018 = vunpack.c.l.b16 %v607
        %v1019 = vunpack.c.h.b16 %v607
        %v1020 = vunpack.c.l.b16 %v608
        %v1021 = vunpack.c.h.b16 %v608
        %v1022 = vunpack.c.l.b16 %v609
        %v1023 = vunpack.c.h.b16 %v609
        %v1024 = vunpack.c.l.b16 %v610
        %v1025 = vunpack.c.h.b16 %v610
        %v1026 = vunpack.c.l.b16 %v611
        %v1027 = vunpack.c.h.b16 %v611
        %v1028 = vunpack.c.l.b16 %v612
        %v1029 = vunpack.c.h.b16 %v612
        %v1030 = vunpack.c.l.b16 %v613
        %v1031 = vunpack.c.h.b16 %v613
        %v1032 = vunpack.c.l.b16 %v614
        %v1033 = vunpack.c.h.b16 %v614
        %v1034 = vunpack.c.l.b16 %v615
        %v1035 = vunpack.c.h.b16 %v615
        %v1036 = vpack.c.b16 %v974, %v972
        %v1037 = vpack.c.b16 %v975, %v973
        %v1038 = vpack.c.b16 %v978, %v976
        %v1039 = vpack.c.b16 %v979, %v977
        %v1040 = vpack.c.b16 %v982, %v980
        %v1041 = vpack.c.b16 %v983, %v981
        %v1042 = vpack.c.b16 %v986, %v984
        %v1043 = vpack.c.b16 %v987, %v985
        %v1044 = vpack.c.b16 %v990, %v988
        %v1045 = vpack.c.b16 %v991, %v989
        %v1046 = vpack.c.b16 %v994, %v992
        %v1047 = vpack.c.b16 %v995, %v993
        %v1048 = vpack.c.b16 %v998, %v996
        %v1049 = vpack.c.b16 %v999, %v997
        %v1050 = vpack.c.b16 %v1002, %v1000
        %v1051 = vpack.c.b16 %v1003, %v1001
        %v1052 = vpack.c.b16 %v1006, %v1004
        %v1053 = vpack.c.b16 %v1007, %v1005
        %v1054 = vpack.c.b16 %v1010, %v1008
        %v1055 = vpack.c.b16 %v1011, %v1009
        %v1056 = vpack.c.b16 %v1014, %v1012
        %v1057 = vpack.c.b16 %v1015, %v1013
        %v1058 = vpack.c.b16 %v1018, %v1016
        %v1059 = vpack.c.b16 %v1019, %v1017
        %v1060 = vpack.c.b16 %v1022, %v1020
        %v1061 = vpack.c.b16 %v1023, %v1021
        %v1062 = vpack.c.b16 %v1026, %v1024
        %v1063 = vpack.c.b16 %v1027, %v1025
        %v1064 = vpack.c.b16 %v1030, %v1028
        %v1065 = vpack.c.b16 %v1031, %v1029
        %v1066 = vpack.c.b16 %v1034, %v1032
        %v1067 = vpack.c.b16 %v1035, %v1033
        %1100 = vmatprep.subr.bf16.mxu0 %v1037
        %1101 = vmatpush1.bf16.msra.mxu0 %v1036
        %1102 = vmatprep.subr.bf16.mxu0 %v1039
        %1103 = vmatpush1.bf16.msra.mxu0 %v1038
        %1104 = vmatprep.subr.bf16.mxu0 %v1041
        %1105 = vmatpush1.bf16.msra.mxu0 %v1040
        %1106 = vmatprep.subr.bf16.mxu0 %v1043
        %1107 = vmatpush1.bf16.msra.mxu0 %v1042
        %1108 = vmatprep.subr.bf16.mxu0 %v1045
        %1109 = vmatpush1.bf16.msra.mxu0 %v1044
        %1110 = vmatprep.subr.bf16.mxu0 %v1047
        %1111 = vmatpush1.bf16.msra.mxu0 %v1046
        %1112 = vmatprep.subr.bf16.mxu0 %v1049
        %1113 = vmatpush1.bf16.msra.mxu0 %v1048
        %1114 = vmatprep.subr.bf16.mxu0 %v1051
        %1115 = vmatpush1.bf16.msra.mxu0 %v1050
        %1116 = vmatprep.subr.bf16.mxu0 %v1053
        %1117 = vmatpush1.bf16.msra.mxu0 %v1052
        %1118 = vmatprep.subr.bf16.mxu0 %v1055
        %1119 = vmatpush1.bf16.msra.mxu0 %v1054
        %1120 = vmatprep.subr.bf16.mxu0 %v1057
        %1121 = vmatpush1.bf16.msra.mxu0 %v1056
        %1122 = vmatprep.subr.bf16.mxu0 %v1059
        %1123 = vmatpush1.bf16.msra.mxu0 %v1058
        %1124 = vmatprep.subr.bf16.mxu0 %v1061
        %1125 = vmatpush1.bf16.msra.mxu0 %v1060
        %1126 = vmatprep.subr.bf16.mxu0 %v1063
        %1127 = vmatpush1.bf16.msra.mxu0 %v1062
        %1128 = vmatprep.subr.bf16.mxu0 %v1065
        %1129 = vmatpush1.bf16.msra.mxu0 %v1064
        %1130 = vmatprep.subr.bf16.mxu0 %v1067
        %1131 = vmatpush1.bf16.msra.mxu0 %v1066
        %1132 = vmatprep.mubr.bf16.mxu0 %v581
        %1133 = vmatmul.mubr.bf16.gmra.mrb[0].mxu0 %v580
        %v1134 = vpop.f32.mrb[0].mxu0
        %v1135 = vadd.f32 %v922, %v1134
        %v1136 = vpop.f32.mrb[0].mxu0
        %v1137 = vadd.f32 %v924, %v1136
        %v1138 = vpop.f32.mrb[0].mxu0
        %v1139 = vadd.f32 %v926, %v1138
        %v1140 = vpop.f32.mrb[0].mxu0
        %v1141 = vadd.f32 %v928, %v1140
        %1142 = vmatprep.mubr.bf16.mxu0 %v583
        %1143 = vmatmul.mubr.bf16.gmra.mrb[0].mxu0 %v582
        %v1144 = vpop.f32.mrb[0].mxu0
        %v1145 = vadd.f32 %v932, %v1144
        %v1146 = vpop.f32.mrb[0].mxu0
        %v1147 = vadd.f32 %v934, %v1146
        %v1148 = vpop.f32.mrb[0].mxu0
        %v1149 = vadd.f32 %v936, %v1148
        %v1150 = vpop.f32.mrb[0].mxu0
        %v1151 = vadd.f32 %v938, %v1150
        %1152 = vdwg.mxu0
        %s1153 = scalar_lea.vmem %s1, 32
        %v1154 = vld [vmem:[%s1153] sm:$0xf]
        %v1155 = vld [vmem:[%s1153 + $0x4] sm:$0xf]
        %v1156 = vld [vmem:[%s1153 + $0x8] sm:$0xf]
        %v1157 = vld [vmem:[%s1153 + $0xc] sm:$0xf]
        %v1162 = vunpack.c.l.b16 %v1154
        %v1163 = vunpack.c.l.b16 %v1155
        %v1164 = vunpack.c.l.b16 %v1156
        %v1165 = vunpack.c.l.b16 %v1157
        %v1166 = vpack.c.b16 %v1163, %v1162
        %v1167 = vpack.c.b16 %v1165, %v1164
        %v1169 = vsel %vm520, %v1166, 0
        %v1172 = vsel %vm520, %v1167, 0
        %1174 = vmatprep.subr.bf16.mxu0 %v505
        %1175 = vmatpush1.bf16.msra.mxu0 %v504
        %1176 = vmatprep.subr.bf16.mxu0 %v507
        %1177 = vmatpush1.bf16.msra.mxu0 %v506
        %1178 = vmatprep.subr.bf16.mxu0 %v509
        %1179 = vmatpush1.bf16.msra.mxu0 %v508
        %1180 = vmatprep.subr.bf16.mxu0 %v511
        %1181 = vmatpush1.bf16.msra.mxu0 %v510
        %1182 = vmatprep.subr.bf16.mxu0 0
        %1183 = vmatpush1.bf16.msra.mxu0 0
        %1184 = vmatprep.subr.bf16.mxu0 0
        %1185 = vmatpush1.bf16.msra.mxu0 0
        %1186 = vmatprep.subr.bf16.mxu0 0
        %1187 = vmatpush1.bf16.msra.mxu0 0
        %1188 = vmatprep.subr.bf16.mxu0 0
        %1189 = vmatpush1.bf16.msra.mxu0 0
        %1190 = vmatprep.subr.bf16.mxu0 0
        %1191 = vmatpush1.bf16.msra.mxu0 0
        %1192 = vmatprep.subr.bf16.mxu0 0
        %1193 = vmatpush1.bf16.msra.mxu0 0
        %1194 = vmatprep.subr.bf16.mxu0 0
        %1195 = vmatpush1.bf16.msra.mxu0 0
        %1196 = vmatprep.subr.bf16.mxu0 0
        %1197 = vmatpush1.bf16.msra.mxu0 0
        %1198 = vmatprep.subr.bf16.mxu0 0
        %1199 = vmatpush1.bf16.msra.mxu0 0
        %1200 = vmatprep.subr.bf16.mxu0 0
        %1201 = vmatpush1.bf16.msra.mxu0 0
        %1202 = vmatprep.subr.bf16.mxu0 0
        %1203 = vmatpush1.bf16.msra.mxu0 0
        %1204 = vmatprep.subr.bf16.mxu0 0
        %1205 = vmatpush1.bf16.msra.mxu0 0
        %1206 = vmatprep.mubr.bf16.mxu0 0
        %1207 = vmatmul.mubr.bf16.gmra.mrb[0].mxu0 %v1169
        %v1208 = vpop.f32.mrb[0].mxu0
        %v1209 = vadd.f32 0.0, %v1208
        %v1210 = vpop.f32.mrb[0].mxu0
        %v1211 = vadd.f32 0.0, %v1210
        %v1212 = vpop.f32.mrb[0].mxu0
        %v1213 = vadd.f32 0.0, %v1212
        %v1214 = vpop.f32.mrb[0].mxu0
        %v1215 = vadd.f32 0.0, %v1214
        %1216 = vmatprep.mubr.bf16.mxu0 0
        %1217 = vmatmul.mubr.bf16.gmra.mrb[0].mxu0 %v1172
        %v1218 = vpop.f32.mrb[0].mxu0
        %v1219 = vadd.f32 0.0, %v1218
        %v1220 = vpop.f32.mrb[0].mxu0
        %v1221 = vadd.f32 0.0, %v1220
        %v1222 = vpop.f32.mrb[0].mxu0
        %v1223 = vadd.f32 0.0, %v1222
        %v1224 = vpop.f32.mrb[0].mxu0
        %v1225 = vadd.f32 0.0, %v1224
        %1226 = vdwg.mxu0
        %v1227 = vpack.c.bf16 %v1213, %v1209
        %v1228 = vpack.c.bf16 %v1215, %v1211
        %v1229 = vpack.c.bf16 %v1223, %v1219
        %v1230 = vpack.c.bf16 %v1225, %v1221
        %s1231 = scalar_lea.vmem %s5, 512
        %v1232 = vld [vmem:[%s1231] sm:$0xff]
        %v1233 = vld [vmem:[%s1231 + $0x8] sm:$0xff]
        %v1234 = vld [vmem:[%s1231 + $0x10] sm:$0xff]
        %v1235 = vld [vmem:[%s1231 + $0x18] sm:$0xff]
        %v1236 = vld [vmem:[%s1231 + $0x20] sm:$0xff]
        %v1237 = vld [vmem:[%s1231 + $0x28] sm:$0xff]
        %v1238 = vld [vmem:[%s1231 + $0x30] sm:$0xff]
        %v1239 = vld [vmem:[%s1231 + $0x38] sm:$0xff]
        %v1240 = vld [vmem:[%s1231 + $0x40] sm:$0xff]
        %v1241 = vld [vmem:[%s1231 + $0x48] sm:$0xff]
        %v1242 = vld [vmem:[%s1231 + $0x50] sm:$0xff]
        %v1243 = vld [vmem:[%s1231 + $0x58] sm:$0xff]
        %v1244 = vld [vmem:[%s1231 + $0x60] sm:$0xff]
        %v1245 = vld [vmem:[%s1231 + $0x68] sm:$0xff]
        %v1246 = vld [vmem:[%s1231 + $0x70] sm:$0xff]
        %v1247 = vld [vmem:[%s1231 + $0x78] sm:$0xff]
        %v1248 = vld [vmem:[%s1231 + $0x80] sm:$0xff]
        %v1249 = vld [vmem:[%s1231 + $0x88] sm:$0xff]
        %v1250 = vld [vmem:[%s1231 + $0x90] sm:$0xff]
        %v1251 = vld [vmem:[%s1231 + $0x98] sm:$0xff]
        %v1252 = vld [vmem:[%s1231 + $0xa0] sm:$0xff]
        %v1253 = vld [vmem:[%s1231 + $0xa8] sm:$0xff]
        %v1254 = vld [vmem:[%s1231 + $0xb0] sm:$0xff]
        %v1255 = vld [vmem:[%s1231 + $0xb8] sm:$0xff]
        %v1256 = vld [vmem:[%s1231 + $0xc0] sm:$0xff]
        %v1257 = vld [vmem:[%s1231 + $0xc8] sm:$0xff]
        %v1258 = vld [vmem:[%s1231 + $0xd0] sm:$0xff]
        %v1259 = vld [vmem:[%s1231 + $0xd8] sm:$0xff]
        %v1260 = vld [vmem:[%s1231 + $0xe0] sm:$0xff]
        %v1261 = vld [vmem:[%s1231 + $0xe8] sm:$0xff]
        %v1262 = vld [vmem:[%s1231 + $0xf0] sm:$0xff]
        %v1263 = vld [vmem:[%s1231 + $0xf8] sm:$0xff]
        %v1296 = vunpack.c.l.b16 %v1232
        %v1297 = vunpack.c.h.b16 %v1232
        %v1298 = vunpack.c.l.b16 %v1233
        %v1299 = vunpack.c.h.b16 %v1233
        %v1300 = vunpack.c.l.b16 %v1234
        %v1301 = vunpack.c.h.b16 %v1234
        %v1302 = vunpack.c.l.b16 %v1235
        %v1303 = vunpack.c.h.b16 %v1235
        %v1304 = vunpack.c.l.b16 %v1236
        %v1305 = vunpack.c.h.b16 %v1236
        %v1306 = vunpack.c.l.b16 %v1237
        %v1307 = vunpack.c.h.b16 %v1237
        %v1308 = vunpack.c.l.b16 %v1238
        %v1309 = vunpack.c.h.b16 %v1238
        %v1310 = vunpack.c.l.b16 %v1239
        %v1311 = vunpack.c.h.b16 %v1239
        %v1312 = vunpack.c.l.b16 %v1240
        %v1313 = vunpack.c.h.b16 %v1240
        %v1314 = vunpack.c.l.b16 %v1241
        %v1315 = vunpack.c.h.b16 %v1241
        %v1316 = vunpack.c.l.b16 %v1242
        %v1317 = vunpack.c.h.b16 %v1242
        %v1318 = vunpack.c.l.b16 %v1243
        %v1319 = vunpack.c.h.b16 %v1243
        %v1320 = vunpack.c.l.b16 %v1244
        %v1321 = vunpack.c.h.b16 %v1244
        %v1322 = vunpack.c.l.b16 %v1245
        %v1323 = vunpack.c.h.b16 %v1245
        %v1324 = vunpack.c.l.b16 %v1246
        %v1325 = vunpack.c.h.b16 %v1246
        %v1326 = vunpack.c.l.b16 %v1247
        %v1327 = vunpack.c.h.b16 %v1247
        %v1328 = vunpack.c.l.b16 %v1248
        %v1329 = vunpack.c.h.b16 %v1248
        %v1330 = vunpack.c.l.b16 %v1249
        %v1331 = vunpack.c.h.b16 %v1249
        %v1332 = vunpack.c.l.b16 %v1250
        %v1333 = vunpack.c.h.b16 %v1250
        %v1334 = vunpack.c.l.b16 %v1251
        %v1335 = vunpack.c.h.b16 %v1251
        %v1336 = vunpack.c.l.b16 %v1252
        %v1337 = vunpack.c.h.b16 %v1252
        %v1338 = vunpack.c.l.b16 %v1253
        %v1339 = vunpack.c.h.b16 %v1253
        %v1340 = vunpack.c.l.b16 %v1254
        %v1341 = vunpack.c.h.b16 %v1254
        %v1342 = vunpack.c.l.b16 %v1255
        %v1343 = vunpack.c.h.b16 %v1255
        %v1344 = vunpack.c.l.b16 %v1256
        %v1345 = vunpack.c.h.b16 %v1256
        %v1346 = vunpack.c.l.b16 %v1257
        %v1347 = vunpack.c.h.b16 %v1257
        %v1348 = vunpack.c.l.b16 %v1258
        %v1349 = vunpack.c.h.b16 %v1258
        %v1350 = vunpack.c.l.b16 %v1259
        %v1351 = vunpack.c.h.b16 %v1259
        %v1352 = vunpack.c.l.b16 %v1260
        %v1353 = vunpack.c.h.b16 %v1260
        %v1354 = vunpack.c.l.b16 %v1261
        %v1355 = vunpack.c.h.b16 %v1261
        %v1356 = vunpack.c.l.b16 %v1262
        %v1357 = vunpack.c.h.b16 %v1262
        %v1358 = vunpack.c.l.b16 %v1263
        %v1359 = vunpack.c.h.b16 %v1263
        %v1360 = vpack.c.b16 %v1298, %v1296
        %v1361 = vpack.c.b16 %v1299, %v1297
        %v1362 = vpack.c.b16 %v1302, %v1300
        %v1363 = vpack.c.b16 %v1303, %v1301
        %v1364 = vpack.c.b16 %v1306, %v1304
        %v1365 = vpack.c.b16 %v1307, %v1305
        %v1366 = vpack.c.b16 %v1310, %v1308
        %v1367 = vpack.c.b16 %v1311, %v1309
        %v1368 = vpack.c.b16 %v1314, %v1312
        %v1369 = vpack.c.b16 %v1315, %v1313
        %v1370 = vpack.c.b16 %v1318, %v1316
        %v1371 = vpack.c.b16 %v1319, %v1317
        %v1372 = vpack.c.b16 %v1322, %v1320
        %v1373 = vpack.c.b16 %v1323, %v1321
        %v1374 = vpack.c.b16 %v1326, %v1324
        %v1375 = vpack.c.b16 %v1327, %v1325
        %v1376 = vpack.c.b16 %v1330, %v1328
        %v1377 = vpack.c.b16 %v1331, %v1329
        %v1378 = vpack.c.b16 %v1334, %v1332
        %v1379 = vpack.c.b16 %v1335, %v1333
        %v1380 = vpack.c.b16 %v1338, %v1336
        %v1381 = vpack.c.b16 %v1339, %v1337
        %v1382 = vpack.c.b16 %v1342, %v1340
        %v1383 = vpack.c.b16 %v1343, %v1341
        %v1384 = vpack.c.b16 %v1346, %v1344
        %v1385 = vpack.c.b16 %v1347, %v1345
        %v1386 = vpack.c.b16 %v1350, %v1348
        %v1387 = vpack.c.b16 %v1351, %v1349
        %v1388 = vpack.c.b16 %v1354, %v1352
        %v1389 = vpack.c.b16 %v1355, %v1353
        %v1390 = vpack.c.b16 %v1358, %v1356
        %v1391 = vpack.c.b16 %v1359, %v1357
        %1424 = vmatprep.subr.bf16.mxu0 %v1361
        %1425 = vmatpush1.bf16.msra.mxu0 %v1360
        %1426 = vmatprep.subr.bf16.mxu0 %v1363
        %1427 = vmatpush1.bf16.msra.mxu0 %v1362
        %1428 = vmatprep.subr.bf16.mxu0 %v1365
        %1429 = vmatpush1.bf16.msra.mxu0 %v1364
        %1430 = vmatprep.subr.bf16.mxu0 %v1367
        %1431 = vmatpush1.bf16.msra.mxu0 %v1366
        %1432 = vmatprep.subr.bf16.mxu0 %v1369
        %1433 = vmatpush1.bf16.msra.mxu0 %v1368
        %1434 = vmatprep.subr.bf16.mxu0 %v1371
        %1435 = vmatpush1.bf16.msra.mxu0 %v1370
        %1436 = vmatprep.subr.bf16.mxu0 %v1373
        %1437 = vmatpush1.bf16.msra.mxu0 %v1372
        %1438 = vmatprep.subr.bf16.mxu0 %v1375
        %1439 = vmatpush1.bf16.msra.mxu0 %v1374
        %1440 = vmatprep.subr.bf16.mxu0 %v1377
        %1441 = vmatpush1.bf16.msra.mxu0 %v1376
        %1442 = vmatprep.subr.bf16.mxu0 %v1379
        %1443 = vmatpush1.bf16.msra.mxu0 %v1378
        %1444 = vmatprep.subr.bf16.mxu0 %v1381
        %1445 = vmatpush1.bf16.msra.mxu0 %v1380
        %1446 = vmatprep.subr.bf16.mxu0 %v1383
        %1447 = vmatpush1.bf16.msra.mxu0 %v1382
        %1448 = vmatprep.subr.bf16.mxu0 %v1385
        %1449 = vmatpush1.bf16.msra.mxu0 %v1384
        %1450 = vmatprep.subr.bf16.mxu0 %v1387
        %1451 = vmatpush1.bf16.msra.mxu0 %v1386
        %1452 = vmatprep.subr.bf16.mxu0 %v1389
        %1453 = vmatpush1.bf16.msra.mxu0 %v1388
        %1454 = vmatprep.subr.bf16.mxu0 %v1391
        %1455 = vmatpush1.bf16.msra.mxu0 %v1390
        %1456 = vmatprep.mubr.bf16.mxu0 %v1228
        %1457 = vmatmul.mubr.bf16.gmra.mrb[0].mxu0 %v1227
        %v1458 = vpop.f32.mrb[0].mxu0
        %v1459 = vadd.f32 0.0, %v1458
        %v1460 = vpop.f32.mrb[0].mxu0
        %v1461 = vadd.f32 0.0, %v1460
        %v1462 = vpop.f32.mrb[0].mxu0
        %v1463 = vadd.f32 0.0, %v1462
        %v1464 = vpop.f32.mrb[0].mxu0
        %v1465 = vadd.f32 0.0, %v1464
        %1466 = vmatprep.mubr.bf16.mxu0 %v1230
        %1467 = vmatmul.mubr.bf16.gmra.mrb[0].mxu0 %v1229
        %v1468 = vpop.f32.mrb[0].mxu0
        %v1469 = vadd.f32 0.0, %v1468
        %v1470 = vpop.f32.mrb[0].mxu0
        %v1471 = vadd.f32 0.0, %v1470
        %v1472 = vpop.f32.mrb[0].mxu0
        %v1473 = vadd.f32 0.0, %v1472
        %v1474 = vpop.f32.mrb[0].mxu0
        %v1475 = vadd.f32 0.0, %v1474
        %1476 = vdwg.mxu0
        %v1477 = vadd.f32 %v1135, %v1459
        %v1478 = vadd.f32 %v1137, %v1461
        %v1479 = vadd.f32 %v1139, %v1463
        %v1480 = vadd.f32 %v1141, %v1465
        %v1481 = vadd.f32 %v1145, %v1469
        %v1482 = vadd.f32 %v1147, %v1471
        %v1483 = vadd.f32 %v1149, %v1473
        %v1484 = vadd.f32 %v1151, %v1475
        %s1485 = scalar_lea.vmem %s1, 48
        %v1486 = vld [vmem:[%s1485] sm:$0xf]
        %v1487 = vld [vmem:[%s1485 + $0x4] sm:$0xf]
        %v1488 = vld [vmem:[%s1485 + $0x8] sm:$0xf]
        %v1489 = vld [vmem:[%s1485 + $0xc] sm:$0xf]
        %v1494 = vunpack.c.l.b16 %v1486
        %v1495 = vunpack.c.l.b16 %v1487
        %v1496 = vunpack.c.l.b16 %v1488
        %v1497 = vunpack.c.l.b16 %v1489
        %v1498 = vpack.c.b16 %v1495, %v1494
        %v1499 = vpack.c.b16 %v1497, %v1496
        %v1501 = vsel %vm520, %v1498, 0
        %v1504 = vsel %vm520, %v1499, 0
        %1506 = vmatprep.subr.bf16.mxu0 %v505
        %1507 = vmatpush1.bf16.msra.mxu0 %v504
        %1508 = vmatprep.subr.bf16.mxu0 %v507
        %1509 = vmatpush1.bf16.msra.mxu0 %v506
        %1510 = vmatprep.subr.bf16.mxu0 %v509
        %1511 = vmatpush1.bf16.msra.mxu0 %v508
        %1512 = vmatprep.subr.bf16.mxu0 %v511
        %1513 = vmatpush1.bf16.msra.mxu0 %v510
        %1514 = vmatprep.subr.bf16.mxu0 0
        %1515 = vmatpush1.bf16.msra.mxu0 0
        %1516 = vmatprep.subr.bf16.mxu0 0
        %1517 = vmatpush1.bf16.msra.mxu0 0
        %1518 = vmatprep.subr.bf16.mxu0 0
        %1519 = vmatpush1.bf16.msra.mxu0 0
        %1520 = vmatprep.subr.bf16.mxu0 0
        %1521 = vmatpush1.bf16.msra.mxu0 0
        %1522 = vmatprep.subr.bf16.mxu0 0
        %1523 = vmatpush1.bf16.msra.mxu0 0
        %1524 = vmatprep.subr.bf16.mxu0 0
        %1525 = vmatpush1.bf16.msra.mxu0 0
        %1526 = vmatprep.subr.bf16.mxu0 0
        %1527 = vmatpush1.bf16.msra.mxu0 0
        %1528 = vmatprep.subr.bf16.mxu0 0
        %1529 = vmatpush1.bf16.msra.mxu0 0
        %1530 = vmatprep.subr.bf16.mxu0 0
        %1531 = vmatpush1.bf16.msra.mxu0 0
        %1532 = vmatprep.subr.bf16.mxu0 0
        %1533 = vmatpush1.bf16.msra.mxu0 0
        %1534 = vmatprep.subr.bf16.mxu0 0
        %1535 = vmatpush1.bf16.msra.mxu0 0
        %1536 = vmatprep.subr.bf16.mxu0 0
        %1537 = vmatpush1.bf16.msra.mxu0 0
        %1538 = vmatprep.mubr.bf16.mxu0 0
        %1539 = vmatmul.mubr.bf16.gmra.mrb[0].mxu0 %v1501
        %v1540 = vpop.f32.mrb[0].mxu0
        %v1541 = vadd.f32 0.0, %v1540
        %v1542 = vpop.f32.mrb[0].mxu0
        %v1543 = vadd.f32 0.0, %v1542
        %v1544 = vpop.f32.mrb[0].mxu0
        %v1545 = vadd.f32 0.0, %v1544
        %v1546 = vpop.f32.mrb[0].mxu0
        %v1547 = vadd.f32 0.0, %v1546
        %1548 = vmatprep.mubr.bf16.mxu0 0
        %1549 = vmatmul.mubr.bf16.gmra.mrb[0].mxu0 %v1504
        %v1550 = vpop.f32.mrb[0].mxu0
        %v1551 = vadd.f32 0.0, %v1550
        %v1552 = vpop.f32.mrb[0].mxu0
        %v1553 = vadd.f32 0.0, %v1552
        %v1554 = vpop.f32.mrb[0].mxu0
        %v1555 = vadd.f32 0.0, %v1554
        %v1556 = vpop.f32.mrb[0].mxu0
        %v1557 = vadd.f32 0.0, %v1556
        %1558 = vdwg.mxu0
        %v1559 = vpack.c.bf16 %v1545, %v1541
        %v1560 = vpack.c.bf16 %v1547, %v1543
        %v1561 = vpack.c.bf16 %v1555, %v1551
        %v1562 = vpack.c.bf16 %v1557, %v1553
        %s1563 = scalar_lea.vmem %s5, 768
        %v1564 = vld [vmem:[%s1563] sm:$0xff]
        %v1565 = vld [vmem:[%s1563 + $0x8] sm:$0xff]
        %v1566 = vld [vmem:[%s1563 + $0x10] sm:$0xff]
        %v1567 = vld [vmem:[%s1563 + $0x18] sm:$0xff]
        %v1568 = vld [vmem:[%s1563 + $0x20] sm:$0xff]
        %v1569 = vld [vmem:[%s1563 + $0x28] sm:$0xff]
        %v1570 = vld [vmem:[%s1563 + $0x30] sm:$0xff]
        %v1571 = vld [vmem:[%s1563 + $0x38] sm:$0xff]
        %v1572 = vld [vmem:[%s1563 + $0x40] sm:$0xff]
        %v1573 = vld [vmem:[%s1563 + $0x48] sm:$0xff]
        %v1574 = vld [vmem:[%s1563 + $0x50] sm:$0xff]
        %v1575 = vld [vmem:[%s1563 + $0x58] sm:$0xff]
        %v1576 = vld [vmem:[%s1563 + $0x60] sm:$0xff]
        %v1577 = vld [vmem:[%s1563 + $0x68] sm:$0xff]
        %v1578 = vld [vmem:[%s1563 + $0x70] sm:$0xff]
        %v1579 = vld [vmem:[%s1563 + $0x78] sm:$0xff]
        %v1580 = vld [vmem:[%s1563 + $0x80] sm:$0xff]
        %v1581 = vld [vmem:[%s1563 + $0x88] sm:$0xff]
        %v1582 = vld [vmem:[%s1563 + $0x90] sm:$0xff]
        %v1583 = vld [vmem:[%s1563 + $0x98] sm:$0xff]
        %v1584 = vld [vmem:[%s1563 + $0xa0] sm:$0xff]
        %v1585 = vld [vmem:[%s1563 + $0xa8] sm:$0xff]
        %v1586 = vld [vmem:[%s1563 + $0xb0] sm:$0xff]
        %v1587 = vld [vmem:[%s1563 + $0xb8] sm:$0xff]
        %v1588 = vld [vmem:[%s1563 + $0xc0] sm:$0xff]
        %v1589 = vld [vmem:[%s1563 + $0xc8] sm:$0xff]
        %v1590 = vld [vmem:[%s1563 + $0xd0] sm:$0xff]
        %v1591 = vld [vmem:[%s1563 + $0xd8] sm:$0xff]
        %v1592 = vld [vmem:[%s1563 + $0xe0] sm:$0xff]
        %v1593 = vld [vmem:[%s1563 + $0xe8] sm:$0xff]
        %v1594 = vld [vmem:[%s1563 + $0xf0] sm:$0xff]
        %v1595 = vld [vmem:[%s1563 + $0xf8] sm:$0xff]
        %v1628 = vunpack.c.l.b16 %v1564
        %v1629 = vunpack.c.h.b16 %v1564
        %v1630 = vunpack.c.l.b16 %v1565
        %v1631 = vunpack.c.h.b16 %v1565
        %v1632 = vunpack.c.l.b16 %v1566
        %v1633 = vunpack.c.h.b16 %v1566
        %v1634 = vunpack.c.l.b16 %v1567
        %v1635 = vunpack.c.h.b16 %v1567
        %v1636 = vunpack.c.l.b16 %v1568
        %v1637 = vunpack.c.h.b16 %v1568
        %v1638 = vunpack.c.l.b16 %v1569
        %v1639 = vunpack.c.h.b16 %v1569
        %v1640 = vunpack.c.l.b16 %v1570
        %v1641 = vunpack.c.h.b16 %v1570
        %v1642 = vunpack.c.l.b16 %v1571
        %v1643 = vunpack.c.h.b16 %v1571
        %v1644 = vunpack.c.l.b16 %v1572
        %v1645 = vunpack.c.h.b16 %v1572
        %v1646 = vunpack.c.l.b16 %v1573
        %v1647 = vunpack.c.h.b16 %v1573
        %v1648 = vunpack.c.l.b16 %v1574
        %v1649 = vunpack.c.h.b16 %v1574
        %v1650 = vunpack.c.l.b16 %v1575
        %v1651 = vunpack.c.h.b16 %v1575
        %v1652 = vunpack.c.l.b16 %v1576
        %v1653 = vunpack.c.h.b16 %v1576
        %v1654 = vunpack.c.l.b16 %v1577
        %v1655 = vunpack.c.h.b16 %v1577
        %v1656 = vunpack.c.l.b16 %v1578
        %v1657 = vunpack.c.h.b16 %v1578
        %v1658 = vunpack.c.l.b16 %v1579
        %v1659 = vunpack.c.h.b16 %v1579
        %v1660 = vunpack.c.l.b16 %v1580
        %v1661 = vunpack.c.h.b16 %v1580
        %v1662 = vunpack.c.l.b16 %v1581
        %v1663 = vunpack.c.h.b16 %v1581
        %v1664 = vunpack.c.l.b16 %v1582
        %v1665 = vunpack.c.h.b16 %v1582
        %v1666 = vunpack.c.l.b16 %v1583
        %v1667 = vunpack.c.h.b16 %v1583
        %v1668 = vunpack.c.l.b16 %v1584
        %v1669 = vunpack.c.h.b16 %v1584
        %v1670 = vunpack.c.l.b16 %v1585
        %v1671 = vunpack.c.h.b16 %v1585
        %v1672 = vunpack.c.l.b16 %v1586
        %v1673 = vunpack.c.h.b16 %v1586
        %v1674 = vunpack.c.l.b16 %v1587
        %v1675 = vunpack.c.h.b16 %v1587
        %v1676 = vunpack.c.l.b16 %v1588
        %v1677 = vunpack.c.h.b16 %v1588
        %v1678 = vunpack.c.l.b16 %v1589
        %v1679 = vunpack.c.h.b16 %v1589
        %v1680 = vunpack.c.l.b16 %v1590
        %v1681 = vunpack.c.h.b16 %v1590
        %v1682 = vunpack.c.l.b16 %v1591
        %v1683 = vunpack.c.h.b16 %v1591
        %v1684 = vunpack.c.l.b16 %v1592
        %v1685 = vunpack.c.h.b16 %v1592
        %v1686 = vunpack.c.l.b16 %v1593
        %v1687 = vunpack.c.h.b16 %v1593
        %v1688 = vunpack.c.l.b16 %v1594
        %v1689 = vunpack.c.h.b16 %v1594
        %v1690 = vunpack.c.l.b16 %v1595
        %v1691 = vunpack.c.h.b16 %v1595
        %v1692 = vpack.c.b16 %v1630, %v1628
        %v1693 = vpack.c.b16 %v1631, %v1629
        %v1694 = vpack.c.b16 %v1634, %v1632
        %v1695 = vpack.c.b16 %v1635, %v1633
        %v1696 = vpack.c.b16 %v1638, %v1636
        %v1697 = vpack.c.b16 %v1639, %v1637
        %v1698 = vpack.c.b16 %v1642, %v1640
        %v1699 = vpack.c.b16 %v1643, %v1641
        %v1700 = vpack.c.b16 %v1646, %v1644
        %v1701 = vpack.c.b16 %v1647, %v1645
        %v1702 = vpack.c.b16 %v1650, %v1648
        %v1703 = vpack.c.b16 %v1651, %v1649
        %v1704 = vpack.c.b16 %v1654, %v1652
        %v1705 = vpack.c.b16 %v1655, %v1653
        %v1706 = vpack.c.b16 %v1658, %v1656
        %v1707 = vpack.c.b16 %v1659, %v1657
        %v1708 = vpack.c.b16 %v1662, %v1660
        %v1709 = vpack.c.b16 %v1663, %v1661
        %v1710 = vpack.c.b16 %v1666, %v1664
        %v1711 = vpack.c.b16 %v1667, %v1665
        %v1712 = vpack.c.b16 %v1670, %v1668
        %v1713 = vpack.c.b16 %v1671, %v1669
        %v1714 = vpack.c.b16 %v1674, %v1672
        %v1715 = vpack.c.b16 %v1675, %v1673
        %v1716 = vpack.c.b16 %v1678, %v1676
        %v1717 = vpack.c.b16 %v1679, %v1677
        %v1718 = vpack.c.b16 %v1682, %v1680
        %v1719 = vpack.c.b16 %v1683, %v1681
        %v1720 = vpack.c.b16 %v1686, %v1684
        %v1721 = vpack.c.b16 %v1687, %v1685
        %v1722 = vpack.c.b16 %v1690, %v1688
        %v1723 = vpack.c.b16 %v1691, %v1689
        %1756 = vmatprep.subr.bf16.mxu0 %v1693
        %1757 = vmatpush1.bf16.msra.mxu0 %v1692
        %1758 = vmatprep.subr.bf16.mxu0 %v1695
        %1759 = vmatpush1.bf16.msra.mxu0 %v1694
        %1760 = vmatprep.subr.bf16.mxu0 %v1697
        %1761 = vmatpush1.bf16.msra.mxu0 %v1696
        %1762 = vmatprep.subr.bf16.mxu0 %v1699
        %1763 = vmatpush1.bf16.msra.mxu0 %v1698
        %1764 = vmatprep.subr.bf16.mxu0 %v1701
        %1765 = vmatpush1.bf16.msra.mxu0 %v1700
        %1766 = vmatprep.subr.bf16.mxu0 %v1703
        %1767 = vmatpush1.bf16.msra.mxu0 %v1702
        %1768 = vmatprep.subr.bf16.mxu0 %v1705
        %1769 = vmatpush1.bf16.msra.mxu0 %v1704
        %1770 = vmatprep.subr.bf16.mxu0 %v1707
        %1771 = vmatpush1.bf16.msra.mxu0 %v1706
        %1772 = vmatprep.subr.bf16.mxu0 %v1709
        %1773 = vmatpush1.bf16.msra.mxu0 %v1708
        %1774 = vmatprep.subr.bf16.mxu0 %v1711
        %1775 = vmatpush1.bf16.msra.mxu0 %v1710
        %1776 = vmatprep.subr.bf16.mxu0 %v1713
        %1777 = vmatpush1.bf16.msra.mxu0 %v1712
        %1778 = vmatprep.subr.bf16.mxu0 %v1715
        %1779 = vmatpush1.bf16.msra.mxu0 %v1714
        %1780 = vmatprep.subr.bf16.mxu0 %v1717
        %1781 = vmatpush1.bf16.msra.mxu0 %v1716
        %1782 = vmatprep.subr.bf16.mxu0 %v1719
        %1783 = vmatpush1.bf16.msra.mxu0 %v1718
        %1784 = vmatprep.subr.bf16.mxu0 %v1721
        %1785 = vmatpush1.bf16.msra.mxu0 %v1720
        %1786 = vmatprep.subr.bf16.mxu0 %v1723
        %1787 = vmatpush1.bf16.msra.mxu0 %v1722
        %1788 = vmatprep.mubr.bf16.mxu0 %v1560
        %1789 = vmatmul.mubr.bf16.gmra.mrb[0].mxu0 %v1559
        %v1790 = vpop.f32.mrb[0].mxu0
        %v1791 = vadd.f32 0.0, %v1790
        %v1792 = vpop.f32.mrb[0].mxu0
        %v1793 = vadd.f32 0.0, %v1792
        %v1794 = vpop.f32.mrb[0].mxu0
        %v1795 = vadd.f32 0.0, %v1794
        %v1796 = vpop.f32.mrb[0].mxu0
        %v1797 = vadd.f32 0.0, %v1796
        %1798 = vmatprep.mubr.bf16.mxu0 %v1562
        %1799 = vmatmul.mubr.bf16.gmra.mrb[0].mxu0 %v1561
        %v1800 = vpop.f32.mrb[0].mxu0
        %v1801 = vadd.f32 0.0, %v1800
        %v1802 = vpop.f32.mrb[0].mxu0
        %v1803 = vadd.f32 0.0, %v1802
        %v1804 = vpop.f32.mrb[0].mxu0
        %v1805 = vadd.f32 0.0, %v1804
        %v1806 = vpop.f32.mrb[0].mxu0
        %v1807 = vadd.f32 0.0, %v1806
        %1808 = vdwg.mxu0
        %v1809 = vadd.f32 %v1477, %v1791
        %v1810 = vadd.f32 %v1478, %v1793
        %v1811 = vadd.f32 %v1479, %v1795
        %v1812 = vadd.f32 %v1480, %v1797
        %v1813 = vadd.f32 %v1481, %v1801
        %v1814 = vadd.f32 %v1482, %v1803
        %v1815 = vadd.f32 %v1483, %v1805
        %v1816 = vadd.f32 %v1484, %v1807
        %v1818 = vlaneseq
        %v1819 = vshrl.u32 %v1818, 7
        %v1820 = vsub.s32 0, %v1819
        %v1821 = vrot.slane %v465, %v1820
        %v1822 = vlaneseq
        %v1823 = vshrl.u32 %v1822, 7
        %v1824 = vsub.s32 1, %v1823
        %v1825 = vrot.slane %v465, %v1824
        %v1828 = vadd.f32 %v1809, %v1821
        %v1829 = vadd.f32 %v1810, %v1825
        %v1830 = vadd.f32 %v1811, %v1821
        %v1831 = vadd.f32 %v1812, %v1825
        %v1832 = vadd.f32 %v1813, %v1821
        %v1833 = vadd.f32 %v1814, %v1825
        %v1834 = vadd.f32 %v1815, %v1821
        %v1835 = vadd.f32 %v1816, %v1825
        %vm1836 = vcmp.gt.f32.partialorder %v1828, 0.0
        %vm1837 = vcmp.gt.f32.partialorder %v1829, 0.0
        %vm1838 = vcmp.gt.f32.partialorder %v1830, 0.0
        %vm1839 = vcmp.gt.f32.partialorder %v1831, 0.0
        %vm1840 = vcmp.gt.f32.partialorder %v1832, 0.0
        %vm1841 = vcmp.gt.f32.partialorder %v1833, 0.0
        %vm1842 = vcmp.gt.f32.partialorder %v1834, 0.0
        %vm1843 = vcmp.gt.f32.partialorder %v1835, 0.0
        %v1844 = vmul.f32 %v1828, 0.2
        %v1845 = vmul.f32 %v1829, 0.2
        %v1846 = vmul.f32 %v1830, 0.2
        %v1847 = vmul.f32 %v1831, 0.2
        %v1848 = vmul.f32 %v1832, 0.2
        %v1849 = vmul.f32 %v1833, 0.2
        %v1850 = vmul.f32 %v1834, 0.2
        %v1851 = vmul.f32 %v1835, 0.2
        %v1852 = vsel %vm1836, %v1828, %v1844
        %v1853 = vsel %vm1837, %v1829, %v1845
        %v1854 = vsel %vm1838, %v1830, %v1846
        %v1855 = vsel %vm1839, %v1831, %v1847
        %v1856 = vsel %vm1840, %v1832, %v1848
        %v1857 = vsel %vm1841, %v1833, %v1849
        %v1858 = vsel %vm1842, %v1834, %v1850
        %v1859 = vsel %vm1843, %v1835, %v1851
        %v1860 = vpack.c.bf16 %v1854, %v1852
        %v1861 = vpack.c.bf16 %v1855, %v1853
        %v1862 = vpack.c.bf16 %v1858, %v1856
        %v1863 = vpack.c.bf16 %v1859, %v1857
        %v1864 = vld [vmem:[%s2] sm:$0xf]
        %v1865 = vld [vmem:[%s2 + $0x4] sm:$0xf]
        %v1868 = vunpack.c.l.b16 %v1864
        %v1869 = vunpack.c.l.b16 %v1865
        %v1870 = vpack.c.b16 %v1869, %v1868
        %vm1871 = vcmask 261120
        %v1873 = vsel %vm1871, %v1870, 0
        %1875 = vmatprep.subr.bf16.mxu0 %v1861
        %1876 = vmatpush1.bf16.msra.mxu0 %v1860
        %1877 = vmatprep.subr.bf16.mxu0 %v1863
        %1878 = vmatpush1.bf16.msra.mxu0 %v1862
        %1879 = vmatprep.subr.bf16.mxu0 0
        %1880 = vmatpush1.bf16.msra.mxu0 0
        %1881 = vmatprep.subr.bf16.mxu0 0
        %1882 = vmatpush1.bf16.msra.mxu0 0
        %1883 = vmatprep.subr.bf16.mxu0 0
        %1884 = vmatpush1.bf16.msra.mxu0 0
        %1885 = vmatprep.subr.bf16.mxu0 0
        %1886 = vmatpush1.bf16.msra.mxu0 0
        %1887 = vmatprep.subr.bf16.mxu0 0
        %1888 = vmatpush1.bf16.msra.mxu0 0
        %1889 = vmatprep.subr.bf16.mxu0 0
        %1890 = vmatpush1.bf16.msra.mxu0 0
        %1891 = vmatprep.subr.bf16.mxu0 0
        %1892 = vmatpush1.bf16.msra.mxu0 0
        %1893 = vmatprep.subr.bf16.mxu0 0
        %1894 = vmatpush1.bf16.msra.mxu0 0
        %1895 = vmatprep.subr.bf16.mxu0 0
        %1896 = vmatpush1.bf16.msra.mxu0 0
        %1897 = vmatprep.subr.bf16.mxu0 0
        %1898 = vmatpush1.bf16.msra.mxu0 0
        %1899 = vmatprep.subr.bf16.mxu0 0
        %1900 = vmatpush1.bf16.msra.mxu0 0
        %1901 = vmatprep.subr.bf16.mxu0 0
        %1902 = vmatpush1.bf16.msra.mxu0 0
        %1903 = vmatprep.subr.bf16.mxu0 0
        %1904 = vmatpush1.bf16.msra.mxu0 0
        %1905 = vmatprep.subr.bf16.mxu0 0
        %1906 = vmatpush1.bf16.msra.mxu0 0
        %1907 = vmatprep.mubr.bf16.mxu0 0
        %1908 = vmatmul.mubr.bf16.gmra.mrb[0].mxu0 %v1873
        %v1909 = vpop.f32.mrb[0].mxu0
        %v1910 = vadd.f32 0.0, %v1909
        %v1911 = vpop.f32.mrb[0].mxu0
        %v1912 = vadd.f32 0.0, %v1911
        %v1913 = vpop.f32.mrb[0].mxu0
        %v1914 = vadd.f32 0.0, %v1913
        %v1915 = vpop.f32.mrb[0].mxu0
        %v1916 = vadd.f32 0.0, %v1915
        %1917 = vdwg.mxu0
        %v1918 = vpack.c.bf16 %v1914, %v1910
        %v1919 = vpack.c.bf16 %v1916, %v1912
        %v1920 = vld [vmem:[#allocation3] sm:$0xff]
        %v1921 = vld [vmem:[#allocation3 + $0x8] sm:$0xff]
        %v1922 = vld [vmem:[#allocation3 + $0x10] sm:$0xff]
        %v1923 = vld [vmem:[#allocation3 + $0x18] sm:$0xff]
        %v1924 = vld [vmem:[#allocation3 + $0x20] sm:$0xff]
        %v1925 = vld [vmem:[#allocation3 + $0x28] sm:$0xff]
        %v1926 = vld [vmem:[#allocation3 + $0x30] sm:$0xff]
        %v1927 = vld [vmem:[#allocation3 + $0x38] sm:$0xff]
        %v1928 = vld [vmem:[#allocation3 + $0x40] sm:$0xff]
        %v1929 = vld [vmem:[#allocation3 + $0x48] sm:$0xff]
        %v1930 = vld [vmem:[#allocation3 + $0x50] sm:$0xff]
        %v1931 = vld [vmem:[#allocation3 + $0x58] sm:$0xff]
        %v1932 = vld [vmem:[#allocation3 + $0x60] sm:$0xff]
        %v1933 = vld [vmem:[#allocation3 + $0x68] sm:$0xff]
        %v1934 = vld [vmem:[#allocation3 + $0x70] sm:$0xff]
        %v1935 = vld [vmem:[#allocation3 + $0x78] sm:$0xff]
        %v1936 = vld [vmem:[#allocation3 + $0x80] sm:$0xff]
        %v1937 = vld [vmem:[#allocation3 + $0x88] sm:$0xff]
        %v1938 = vld [vmem:[#allocation3 + $0x90] sm:$0xff]
        %v1939 = vld [vmem:[#allocation3 + $0x98] sm:$0xff]
        %v1940 = vld [vmem:[#allocation3 + $0xa0] sm:$0xff]
        %v1941 = vld [vmem:[#allocation3 + $0xa8] sm:$0xff]
        %v1942 = vld [vmem:[#allocation3 + $0xb0] sm:$0xff]
        %v1943 = vld [vmem:[#allocation3 + $0xb8] sm:$0xff]
        %v1944 = vld [vmem:[#allocation3 + $0xc0] sm:$0xff]
        %v1945 = vld [vmem:[#allocation3 + $0xc8] sm:$0xff]
        %v1946 = vld [vmem:[#allocation3 + $0xd0] sm:$0xff]
        %v1947 = vld [vmem:[#allocation3 + $0xd8] sm:$0xff]
        %v1948 = vld [vmem:[#allocation3 + $0xe0] sm:$0xff]
        %v1949 = vld [vmem:[#allocation3 + $0xe8] sm:$0xff]
        %v1950 = vld [vmem:[#allocation3 + $0xf0] sm:$0xff]
        %v1951 = vld [vmem:[#allocation3 + $0xf8] sm:$0xff]
        %s1952 = scalar_lea.vmem %s2, 8
        %v1953 = vld [vmem:[%s1952] sm:$0xf]
        %v1954 = vld [vmem:[%s1952 + $0x4] sm:$0xf]
        %v1957 = vunpack.c.l.b16 %v1953
        %v1958 = vunpack.c.l.b16 %v1954
        %v1959 = vpack.c.b16 %v1958, %v1957
        %v1961 = vsel %vm1871, %v1959, 0
        %1963 = vmatprep.subr.bf16.mxu0 %v1861
        %1964 = vmatpush1.bf16.msra.mxu0 %v1860
        %1965 = vmatprep.subr.bf16.mxu0 %v1863
        %1966 = vmatpush1.bf16.msra.mxu0 %v1862
        %1967 = vmatprep.subr.bf16.mxu0 0
        %1968 = vmatpush1.bf16.msra.mxu0 0
        %1969 = vmatprep.subr.bf16.mxu0 0
        %1970 = vmatpush1.bf16.msra.mxu0 0
        %1971 = vmatprep.subr.bf16.mxu0 0
        %1972 = vmatpush1.bf16.msra.mxu0 0
        %1973 = vmatprep.subr.bf16.mxu0 0
        %1974 = vmatpush1.bf16.msra.mxu0 0
        %1975 = vmatprep.subr.bf16.mxu0 0
        %1976 = vmatpush1.bf16.msra.mxu0 0
        %1977 = vmatprep.subr.bf16.mxu0 0
        %1978 = vmatpush1.bf16.msra.mxu0 0
        %1979 = vmatprep.subr.bf16.mxu0 0
        %1980 = vmatpush1.bf16.msra.mxu0 0
        %1981 = vmatprep.subr.bf16.mxu0 0
        %1982 = vmatpush1.bf16.msra.mxu0 0
        %1983 = vmatprep.subr.bf16.mxu0 0
        %1984 = vmatpush1.bf16.msra.mxu0 0
        %1985 = vmatprep.subr.bf16.mxu0 0
        %1986 = vmatpush1.bf16.msra.mxu0 0
        %1987 = vmatprep.subr.bf16.mxu0 0
        %1988 = vmatpush1.bf16.msra.mxu0 0
        %1989 = vmatprep.subr.bf16.mxu0 0
        %1990 = vmatpush1.bf16.msra.mxu0 0
        %1991 = vmatprep.subr.bf16.mxu0 0
        %1992 = vmatpush1.bf16.msra.mxu0 0
        %1993 = vmatprep.subr.bf16.mxu0 0
        %1994 = vmatpush1.bf16.msra.mxu0 0
        %1995 = vmatprep.mubr.bf16.mxu0 0
        %1996 = vmatmul.mubr.bf16.gmra.mrb[0].mxu0 %v1961
        %v1997 = vpop.f32.mrb[0].mxu0
        %v1998 = vadd.f32 0.0, %v1997
        %v1999 = vpop.f32.mrb[0].mxu0
        %v2000 = vadd.f32 0.0, %v1999
        %v2001 = vpop.f32.mrb[0].mxu0
        %v2002 = vadd.f32 0.0, %v2001
        %v2003 = vpop.f32.mrb[0].mxu0
        %v2004 = vadd.f32 0.0, %v2003
        %2005 = vdwg.mxu0
        %v2006 = vpack.c.bf16 %v2002, %v1998
        %v2007 = vpack.c.bf16 %v2004, %v2000
        %s2008 = scalar_lea.vmem [#allocation3], 256
        %v2009 = vld [vmem:[%s2008] sm:$0xff]
        %v2010 = vld [vmem:[%s2008 + $0x8] sm:$0xff]
        %v2011 = vld [vmem:[%s2008 + $0x10] sm:$0xff]
        %v2012 = vld [vmem:[%s2008 + $0x18] sm:$0xff]
        %v2013 = vld [vmem:[%s2008 + $0x20] sm:$0xff]
        %v2014 = vld [vmem:[%s2008 + $0x28] sm:$0xff]
        %v2015 = vld [vmem:[%s2008 + $0x30] sm:$0xff]
        %v2016 = vld [vmem:[%s2008 + $0x38] sm:$0xff]
        %v2017 = vld [vmem:[%s2008 + $0x40] sm:$0xff]
        %v2018 = vld [vmem:[%s2008 + $0x48] sm:$0xff]
        %v2019 = vld [vmem:[%s2008 + $0x50] sm:$0xff]
        %v2020 = vld [vmem:[%s2008 + $0x58] sm:$0xff]
        %v2021 = vld [vmem:[%s2008 + $0x60] sm:$0xff]
        %v2022 = vld [vmem:[%s2008 + $0x68] sm:$0xff]
        %v2023 = vld [vmem:[%s2008 + $0x70] sm:$0xff]
        %v2024 = vld [vmem:[%s2008 + $0x78] sm:$0xff]
        %v2025 = vld [vmem:[%s2008 + $0x80] sm:$0xff]
        %v2026 = vld [vmem:[%s2008 + $0x88] sm:$0xff]
        %v2027 = vld [vmem:[%s2008 + $0x90] sm:$0xff]
        %v2028 = vld [vmem:[%s2008 + $0x98] sm:$0xff]
        %v2029 = vld [vmem:[%s2008 + $0xa0] sm:$0xff]
        %v2030 = vld [vmem:[%s2008 + $0xa8] sm:$0xff]
        %v2031 = vld [vmem:[%s2008 + $0xb0] sm:$0xff]
        %v2032 = vld [vmem:[%s2008 + $0xb8] sm:$0xff]
        %v2033 = vld [vmem:[%s2008 + $0xc0] sm:$0xff]
        %v2034 = vld [vmem:[%s2008 + $0xc8] sm:$0xff]
        %v2035 = vld [vmem:[%s2008 + $0xd0] sm:$0xff]
        %v2036 = vld [vmem:[%s2008 + $0xd8] sm:$0xff]
        %v2037 = vld [vmem:[%s2008 + $0xe0] sm:$0xff]
        %v2038 = vld [vmem:[%s2008 + $0xe8] sm:$0xff]
        %v2039 = vld [vmem:[%s2008 + $0xf0] sm:$0xff]
        %v2040 = vld [vmem:[%s2008 + $0xf8] sm:$0xff]
        %v2073 = vunpack.c.l.b16 %v2009
        %v2074 = vunpack.c.h.b16 %v2009
        %v2075 = vunpack.c.l.b16 %v2010
        %v2076 = vunpack.c.h.b16 %v2010
        %v2077 = vunpack.c.l.b16 %v2011
        %v2078 = vunpack.c.h.b16 %v2011
        %v2079 = vunpack.c.l.b16 %v2012
        %v2080 = vunpack.c.h.b16 %v2012
        %v2081 = vunpack.c.l.b16 %v2013
        %v2082 = vunpack.c.h.b16 %v2013
        %v2083 = vunpack.c.l.b16 %v2014
        %v2084 = vunpack.c.h.b16 %v2014
        %v2085 = vunpack.c.l.b16 %v2015
        %v2086 = vunpack.c.h.b16 %v2015
        %v2087 = vunpack.c.l.b16 %v2016
        %v2088 = vunpack.c.h.b16 %v2016
        %v2089 = vunpack.c.l.b16 %v2017
        %v2090 = vunpack.c.h.b16 %v2017
        %v2091 = vunpack.c.l.b16 %v2018
        %v2092 = vunpack.c.h.b16 %v2018
        %v2093 = vunpack.c.l.b16 %v2019
        %v2094 = vunpack.c.h.b16 %v2019
        %v2095 = vunpack.c.l.b16 %v2020
        %v2096 = vunpack.c.h.b16 %v2020
        %v2097 = vunpack.c.l.b16 %v2021
        %v2098 = vunpack.c.h.b16 %v2021
        %v2099 = vunpack.c.l.b16 %v2022
        %v2100 = vunpack.c.h.b16 %v2022
        %v2101 = vunpack.c.l.b16 %v2023
        %v2102 = vunpack.c.h.b16 %v2023
        %v2103 = vunpack.c.l.b16 %v2024
        %v2104 = vunpack.c.h.b16 %v2024
        %v2105 = vunpack.c.l.b16 %v2025
        %v2106 = vunpack.c.h.b16 %v2025
        %v2107 = vunpack.c.l.b16 %v2026
        %v2108 = vunpack.c.h.b16 %v2026
        %v2109 = vunpack.c.l.b16 %v2027
        %v2110 = vunpack.c.h.b16 %v2027
        %v2111 = vunpack.c.l.b16 %v2028
        %v2112 = vunpack.c.h.b16 %v2028
        %v2113 = vunpack.c.l.b16 %v2029
        %v2114 = vunpack.c.h.b16 %v2029
        %v2115 = vunpack.c.l.b16 %v2030
        %v2116 = vunpack.c.h.b16 %v2030
        %v2117 = vunpack.c.l.b16 %v2031
        %v2118 = vunpack.c.h.b16 %v2031
        %v2119 = vunpack.c.l.b16 %v2032
        %v2120 = vunpack.c.h.b16 %v2032
        %v2121 = vunpack.c.l.b16 %v2033
        %v2122 = vunpack.c.h.b16 %v2033
        %v2123 = vunpack.c.l.b16 %v2034
        %v2124 = vunpack.c.h.b16 %v2034
        %v2125 = vunpack.c.l.b16 %v2035
        %v2126 = vunpack.c.h.b16 %v2035
        %v2127 = vunpack.c.l.b16 %v2036
        %v2128 = vunpack.c.h.b16 %v2036
        %v2129 = vunpack.c.l.b16 %v2037
        %v2130 = vunpack.c.h.b16 %v2037
        %v2131 = vunpack.c.l.b16 %v2038
        %v2132 = vunpack.c.h.b16 %v2038
        %v2133 = vunpack.c.l.b16 %v2039
        %v2134 = vunpack.c.h.b16 %v2039
        %v2135 = vunpack.c.l.b16 %v2040
        %v2136 = vunpack.c.h.b16 %v2040
        %v2137 = vpack.c.b16 %v2075, %v2073
        %v2138 = vpack.c.b16 %v2076, %v2074
        %v2139 = vpack.c.b16 %v2079, %v2077
        %v2140 = vpack.c.b16 %v2080, %v2078
        %v2141 = vpack.c.b16 %v2083, %v2081
        %v2142 = vpack.c.b16 %v2084, %v2082
        %v2143 = vpack.c.b16 %v2087, %v2085
        %v2144 = vpack.c.b16 %v2088, %v2086
        %v2145 = vpack.c.b16 %v2091, %v2089
        %v2146 = vpack.c.b16 %v2092, %v2090
        %v2147 = vpack.c.b16 %v2095, %v2093
        %v2148 = vpack.c.b16 %v2096, %v2094
        %v2149 = vpack.c.b16 %v2099, %v2097
        %v2150 = vpack.c.b16 %v2100, %v2098
        %v2151 = vpack.c.b16 %v2103, %v2101
        %v2152 = vpack.c.b16 %v2104, %v2102
        %v2153 = vpack.c.b16 %v2107, %v2105
        %v2154 = vpack.c.b16 %v2108, %v2106
        %v2155 = vpack.c.b16 %v2111, %v2109
        %v2156 = vpack.c.b16 %v2112, %v2110
        %v2157 = vpack.c.b16 %v2115, %v2113
        %v2158 = vpack.c.b16 %v2116, %v2114
        %v2159 = vpack.c.b16 %v2119, %v2117
        %v2160 = vpack.c.b16 %v2120, %v2118
        %v2161 = vpack.c.b16 %v2123, %v2121
        %v2162 = vpack.c.b16 %v2124, %v2122
        %v2163 = vpack.c.b16 %v2127, %v2125
        %v2164 = vpack.c.b16 %v2128, %v2126
        %v2165 = vpack.c.b16 %v2131, %v2129
        %v2166 = vpack.c.b16 %v2132, %v2130
        %v2167 = vpack.c.b16 %v2135, %v2133
        %v2168 = vpack.c.b16 %v2136, %v2134
        %2201 = vmatprep.subr.bf16.mxu0 %v2138
        %2202 = vmatpush1.bf16.msra.mxu0 %v2137
        %2203 = vmatprep.subr.bf16.mxu0 %v2140
        %2204 = vmatpush1.bf16.msra.mxu0 %v2139
        %2205 = vmatprep.subr.bf16.mxu0 %v2142
        %2206 = vmatpush1.bf16.msra.mxu0 %v2141
        %2207 = vmatprep.subr.bf16.mxu0 %v2144
        %2208 = vmatpush1.bf16.msra.mxu0 %v2143
        %2209 = vmatprep.subr.bf16.mxu0 %v2146
        %2210 = vmatpush1.bf16.msra.mxu0 %v2145
        %2211 = vmatprep.subr.bf16.mxu0 %v2148
        %2212 = vmatpush1.bf16.msra.mxu0 %v2147
        %2213 = vmatprep.subr.bf16.mxu0 %v2150
        %2214 = vmatpush1.bf16.msra.mxu0 %v2149
        %2215 = vmatprep.subr.bf16.mxu0 %v2152
        %2216 = vmatpush1.bf16.msra.mxu0 %v2151
        %2217 = vmatprep.subr.bf16.mxu0 %v2154
        %2218 = vmatpush1.bf16.msra.mxu0 %v2153
        %2219 = vmatprep.subr.bf16.mxu0 %v2156
        %2220 = vmatpush1.bf16.msra.mxu0 %v2155
        %2221 = vmatprep.subr.bf16.mxu0 %v2158
        %2222 = vmatpush1.bf16.msra.mxu0 %v2157
        %2223 = vmatprep.subr.bf16.mxu0 %v2160
        %2224 = vmatpush1.bf16.msra.mxu0 %v2159
        %2225 = vmatprep.subr.bf16.mxu0 %v2162
        %2226 = vmatpush1.bf16.msra.mxu0 %v2161
        %2227 = vmatprep.subr.bf16.mxu0 %v2164
        %2228 = vmatpush1.bf16.msra.mxu0 %v2163
        %2229 = vmatprep.subr.bf16.mxu0 %v2166
        %2230 = vmatpush1.bf16.msra.mxu0 %v2165
        %2231 = vmatprep.subr.bf16.mxu0 %v2168
        %2232 = vmatpush1.bf16.msra.mxu0 %v2167
        %2233 = vmatprep.mubr.bf16.mxu0 %v2007
        %2234 = vmatmul.mubr.bf16.gmra.mrb[0].mxu0 %v2006
        %v2235 = vpop.f32.mrb[0].mxu0
        %v2236 = vadd.f32 0.0, %v2235
        %v2237 = vpop.f32.mrb[0].mxu0
        %v2238 = vadd.f32 0.0, %v2237
        %v2239 = vpop.f32.mrb[0].mxu0
        %v2240 = vadd.f32 0.0, %v2239
        %v2241 = vpop.f32.mrb[0].mxu0
        %v2242 = vadd.f32 0.0, %v2241
        %2243 = vdwg.mxu0
        %v2276 = vunpack.c.l.b16 %v1920
        %v2277 = vunpack.c.h.b16 %v1920
        %v2278 = vunpack.c.l.b16 %v1921
        %v2279 = vunpack.c.h.b16 %v1921
        %v2280 = vunpack.c.l.b16 %v1922
        %v2281 = vunpack.c.h.b16 %v1922
        %v2282 = vunpack.c.l.b16 %v1923
        %v2283 = vunpack.c.h.b16 %v1923
        %v2284 = vunpack.c.l.b16 %v1924
        %v2285 = vunpack.c.h.b16 %v1924
        %v2286 = vunpack.c.l.b16 %v1925
        %v2287 = vunpack.c.h.b16 %v1925
        %v2288 = vunpack.c.l.b16 %v1926
        %v2289 = vunpack.c.h.b16 %v1926
        %v2290 = vunpack.c.l.b16 %v1927
        %v2291 = vunpack.c.h.b16 %v1927
        %v2292 = vunpack.c.l.b16 %v1928
        %v2293 = vunpack.c.h.b16 %v1928
        %v2294 = vunpack.c.l.b16 %v1929
        %v2295 = vunpack.c.h.b16 %v1929
        %v2296 = vunpack.c.l.b16 %v1930
        %v2297 = vunpack.c.h.b16 %v1930
        %v2298 = vunpack.c.l.b16 %v1931
        %v2299 = vunpack.c.h.b16 %v1931
        %v2300 = vunpack.c.l.b16 %v1932
        %v2301 = vunpack.c.h.b16 %v1932
        %v2302 = vunpack.c.l.b16 %v1933
        %v2303 = vunpack.c.h.b16 %v1933
        %v2304 = vunpack.c.l.b16 %v1934
        %v2305 = vunpack.c.h.b16 %v1934
        %v2306 = vunpack.c.l.b16 %v1935
        %v2307 = vunpack.c.h.b16 %v1935
        %v2308 = vunpack.c.l.b16 %v1936
        %v2309 = vunpack.c.h.b16 %v1936
        %v2310 = vunpack.c.l.b16 %v1937
        %v2311 = vunpack.c.h.b16 %v1937
        %v2312 = vunpack.c.l.b16 %v1938
        %v2313 = vunpack.c.h.b16 %v1938
        %v2314 = vunpack.c.l.b16 %v1939
        %v2315 = vunpack.c.h.b16 %v1939
        %v2316 = vunpack.c.l.b16 %v1940
        %v2317 = vunpack.c.h.b16 %v1940
        %v2318 = vunpack.c.l.b16 %v1941
        %v2319 = vunpack.c.h.b16 %v1941
        %v2320 = vunpack.c.l.b16 %v1942
        %v2321 = vunpack.c.h.b16 %v1942
        %v2322 = vunpack.c.l.b16 %v1943
        %v2323 = vunpack.c.h.b16 %v1943
        %v2324 = vunpack.c.l.b16 %v1944
        %v2325 = vunpack.c.h.b16 %v1944
        %v2326 = vunpack.c.l.b16 %v1945
        %v2327 = vunpack.c.h.b16 %v1945
        %v2328 = vunpack.c.l.b16 %v1946
        %v2329 = vunpack.c.h.b16 %v1946
        %v2330 = vunpack.c.l.b16 %v1947
        %v2331 = vunpack.c.h.b16 %v1947
        %v2332 = vunpack.c.l.b16 %v1948
        %v2333 = vunpack.c.h.b16 %v1948
        %v2334 = vunpack.c.l.b16 %v1949
        %v2335 = vunpack.c.h.b16 %v1949
        %v2336 = vunpack.c.l.b16 %v1950
        %v2337 = vunpack.c.h.b16 %v1950
        %v2338 = vunpack.c.l.b16 %v1951
        %v2339 = vunpack.c.h.b16 %v1951
        %v2340 = vpack.c.b16 %v2278, %v2276
        %v2341 = vpack.c.b16 %v2279, %v2277
        %v2342 = vpack.c.b16 %v2282, %v2280
        %v2343 = vpack.c.b16 %v2283, %v2281
        %v2344 = vpack.c.b16 %v2286, %v2284
        %v2345 = vpack.c.b16 %v2287, %v2285
        %v2346 = vpack.c.b16 %v2290, %v2288
        %v2347 = vpack.c.b16 %v2291, %v2289
        %v2348 = vpack.c.b16 %v2294, %v2292
        %v2349 = vpack.c.b16 %v2295, %v2293
        %v2350 = vpack.c.b16 %v2298, %v2296
        %v2351 = vpack.c.b16 %v2299, %v2297
        %v2352 = vpack.c.b16 %v2302, %v2300
        %v2353 = vpack.c.b16 %v2303, %v2301
        %v2354 = vpack.c.b16 %v2306, %v2304
        %v2355 = vpack.c.b16 %v2307, %v2305
        %v2356 = vpack.c.b16 %v2310, %v2308
        %v2357 = vpack.c.b16 %v2311, %v2309
        %v2358 = vpack.c.b16 %v2314, %v2312
        %v2359 = vpack.c.b16 %v2315, %v2313
        %v2360 = vpack.c.b16 %v2318, %v2316
        %v2361 = vpack.c.b16 %v2319, %v2317
        %v2362 = vpack.c.b16 %v2322, %v2320
        %v2363 = vpack.c.b16 %v2323, %v2321
        %v2364 = vpack.c.b16 %v2326, %v2324
        %v2365 = vpack.c.b16 %v2327, %v2325
        %v2366 = vpack.c.b16 %v2330, %v2328
        %v2367 = vpack.c.b16 %v2331, %v2329
        %v2368 = vpack.c.b16 %v2334, %v2332
        %v2369 = vpack.c.b16 %v2335, %v2333
        %v2370 = vpack.c.b16 %v2338, %v2336
        %v2371 = vpack.c.b16 %v2339, %v2337
        %2404 = vmatprep.subr.bf16.mxu0 %v2341
        %2405 = vmatpush1.bf16.msra.mxu0 %v2340
        %2406 = vmatprep.subr.bf16.mxu0 %v2343
        %2407 = vmatpush1.bf16.msra.mxu0 %v2342
        %2408 = vmatprep.subr.bf16.mxu0 %v2345
        %2409 = vmatpush1.bf16.msra.mxu0 %v2344
        %2410 = vmatprep.subr.bf16.mxu0 %v2347
        %2411 = vmatpush1.bf16.msra.mxu0 %v2346
        %2412 = vmatprep.subr.bf16.mxu0 %v2349
        %2413 = vmatpush1.bf16.msra.mxu0 %v2348
        %2414 = vmatprep.subr.bf16.mxu0 %v2351
        %2415 = vmatpush1.bf16.msra.mxu0 %v2350
        %2416 = vmatprep.subr.bf16.mxu0 %v2353
        %2417 = vmatpush1.bf16.msra.mxu0 %v2352
        %2418 = vmatprep.subr.bf16.mxu0 %v2355
        %2419 = vmatpush1.bf16.msra.mxu0 %v2354
        %2420 = vmatprep.subr.bf16.mxu0 %v2357
        %2421 = vmatpush1.bf16.msra.mxu0 %v2356
        %2422 = vmatprep.subr.bf16.mxu0 %v2359
        %2423 = vmatpush1.bf16.msra.mxu0 %v2358
        %2424 = vmatprep.subr.bf16.mxu0 %v2361
        %2425 = vmatpush1.bf16.msra.mxu0 %v2360
        %2426 = vmatprep.subr.bf16.mxu0 %v2363
        %2427 = vmatpush1.bf16.msra.mxu0 %v2362
        %2428 = vmatprep.subr.bf16.mxu0 %v2365
        %2429 = vmatpush1.bf16.msra.mxu0 %v2364
        %2430 = vmatprep.subr.bf16.mxu0 %v2367
        %2431 = vmatpush1.bf16.msra.mxu0 %v2366
        %2432 = vmatprep.subr.bf16.mxu0 %v2369
        %2433 = vmatpush1.bf16.msra.mxu0 %v2368
        %2434 = vmatprep.subr.bf16.mxu0 %v2371
        %2435 = vmatpush1.bf16.msra.mxu0 %v2370
        %2436 = vmatprep.mubr.bf16.mxu0 %v1919
        %2437 = vmatmul.mubr.bf16.gmra.mrb[0].mxu0 %v1918
        %v2438 = vpop.f32.mrb[0].mxu0
        %v2439 = vadd.f32 %v2236, %v2438
        %v2440 = vpop.f32.mrb[0].mxu0
        %v2441 = vadd.f32 %v2238, %v2440
        %v2442 = vpop.f32.mrb[0].mxu0
        %v2443 = vadd.f32 %v2240, %v2442
        %v2444 = vpop.f32.mrb[0].mxu0
        %v2445 = vadd.f32 %v2242, %v2444
        %2446 = vdwg.mxu0
        %s2447 = scalar_lea.vmem %s2, 16
        %v2448 = vld [vmem:[%s2447] sm:$0xf]
        %v2449 = vld [vmem:[%s2447 + $0x4] sm:$0xf]
        %v2452 = vunpack.c.l.b16 %v2448
        %v2453 = vunpack.c.l.b16 %v2449
        %v2454 = vpack.c.b16 %v2453, %v2452
        %v2456 = vsel %vm1871, %v2454, 0
        %2458 = vmatprep.subr.bf16.mxu0 %v1861
        %2459 = vmatpush1.bf16.msra.mxu0 %v1860
        %2460 = vmatprep.subr.bf16.mxu0 %v1863
        %2461 = vmatpush1.bf16.msra.mxu0 %v1862
        %2462 = vmatprep.subr.bf16.mxu0 0
        %2463 = vmatpush1.bf16.msra.mxu0 0
        %2464 = vmatprep.subr.bf16.mxu0 0
        %2465 = vmatpush1.bf16.msra.mxu0 0
        %2466 = vmatprep.subr.bf16.mxu0 0
        %2467 = vmatpush1.bf16.msra.mxu0 0
        %2468 = vmatprep.subr.bf16.mxu0 0
        %2469 = vmatpush1.bf16.msra.mxu0 0
        %2470 = vmatprep.subr.bf16.mxu0 0
        %2471 = vmatpush1.bf16.msra.mxu0 0
        %2472 = vmatprep.subr.bf16.mxu0 0
        %2473 = vmatpush1.bf16.msra.mxu0 0
        %2474 = vmatprep.subr.bf16.mxu0 0
        %2475 = vmatpush1.bf16.msra.mxu0 0
        %2476 = vmatprep.subr.bf16.mxu0 0
        %2477 = vmatpush1.bf16.msra.mxu0 0
        %2478 = vmatprep.subr.bf16.mxu0 0
        %2479 = vmatpush1.bf16.msra.mxu0 0
        %2480 = vmatprep.subr.bf16.mxu0 0
        %2481 = vmatpush1.bf16.msra.mxu0 0
        %2482 = vmatprep.subr.bf16.mxu0 0
        %2483 = vmatpush1.bf16.msra.mxu0 0
        %2484 = vmatprep.subr.bf16.mxu0 0
        %2485 = vmatpush1.bf16.msra.mxu0 0
        %2486 = vmatprep.subr.bf16.mxu0 0
        %2487 = vmatpush1.bf16.msra.mxu0 0
        %2488 = vmatprep.subr.bf16.mxu0 0
        %2489 = vmatpush1.bf16.msra.mxu0 0
        %2490 = vmatprep.mubr.bf16.mxu0 0
        %2491 = vmatmul.mubr.bf16.gmra.mrb[0].mxu0 %v2456
        %v2492 = vpop.f32.mrb[0].mxu0
        %v2493 = vadd.f32 0.0, %v2492
        %v2494 = vpop.f32.mrb[0].mxu0
        %v2495 = vadd.f32 0.0, %v2494
        %v2496 = vpop.f32.mrb[0].mxu0
        %v2497 = vadd.f32 0.0, %v2496
        %v2498 = vpop.f32.mrb[0].mxu0
        %v2499 = vadd.f32 0.0, %v2498
        %2500 = vdwg.mxu0
        %v2501 = vpack.c.bf16 %v2497, %v2493
        %v2502 = vpack.c.bf16 %v2499, %v2495
        %s2503 = scalar_lea.vmem [#allocation3], 512
        %v2504 = vld [vmem:[%s2503] sm:$0xff]
        %v2505 = vld [vmem:[%s2503 + $0x8] sm:$0xff]
        %v2506 = vld [vmem:[%s2503 + $0x10] sm:$0xff]
        %v2507 = vld [vmem:[%s2503 + $0x18] sm:$0xff]
        %v2508 = vld [vmem:[%s2503 + $0x20] sm:$0xff]
        %v2509 = vld [vmem:[%s2503 + $0x28] sm:$0xff]
        %v2510 = vld [vmem:[%s2503 + $0x30] sm:$0xff]
        %v2511 = vld [vmem:[%s2503 + $0x38] sm:$0xff]
        %v2512 = vld [vmem:[%s2503 + $0x40] sm:$0xff]
        %v2513 = vld [vmem:[%s2503 + $0x48] sm:$0xff]
        %v2514 = vld [vmem:[%s2503 + $0x50] sm:$0xff]
        %v2515 = vld [vmem:[%s2503 + $0x58] sm:$0xff]
        %v2516 = vld [vmem:[%s2503 + $0x60] sm:$0xff]
        %v2517 = vld [vmem:[%s2503 + $0x68] sm:$0xff]
        %v2518 = vld [vmem:[%s2503 + $0x70] sm:$0xff]
        %v2519 = vld [vmem:[%s2503 + $0x78] sm:$0xff]
        %v2520 = vld [vmem:[%s2503 + $0x80] sm:$0xff]
        %v2521 = vld [vmem:[%s2503 + $0x88] sm:$0xff]
        %v2522 = vld [vmem:[%s2503 + $0x90] sm:$0xff]
        %v2523 = vld [vmem:[%s2503 + $0x98] sm:$0xff]
        %v2524 = vld [vmem:[%s2503 + $0xa0] sm:$0xff]
        %v2525 = vld [vmem:[%s2503 + $0xa8] sm:$0xff]
        %v2526 = vld [vmem:[%s2503 + $0xb0] sm:$0xff]
        %v2527 = vld [vmem:[%s2503 + $0xb8] sm:$0xff]
        %v2528 = vld [vmem:[%s2503 + $0xc0] sm:$0xff]
        %v2529 = vld [vmem:[%s2503 + $0xc8] sm:$0xff]
        %v2530 = vld [vmem:[%s2503 + $0xd0] sm:$0xff]
        %v2531 = vld [vmem:[%s2503 + $0xd8] sm:$0xff]
        %v2532 = vld [vmem:[%s2503 + $0xe0] sm:$0xff]
        %v2533 = vld [vmem:[%s2503 + $0xe8] sm:$0xff]
        %v2534 = vld [vmem:[%s2503 + $0xf0] sm:$0xff]
        %v2535 = vld [vmem:[%s2503 + $0xf8] sm:$0xff]
        %v2568 = vunpack.c.l.b16 %v2504
        %v2569 = vunpack.c.h.b16 %v2504
        %v2570 = vunpack.c.l.b16 %v2505
        %v2571 = vunpack.c.h.b16 %v2505
        %v2572 = vunpack.c.l.b16 %v2506
        %v2573 = vunpack.c.h.b16 %v2506
        %v2574 = vunpack.c.l.b16 %v2507
        %v2575 = vunpack.c.h.b16 %v2507
        %v2576 = vunpack.c.l.b16 %v2508
        %v2577 = vunpack.c.h.b16 %v2508
        %v2578 = vunpack.c.l.b16 %v2509
        %v2579 = vunpack.c.h.b16 %v2509
        %v2580 = vunpack.c.l.b16 %v2510
        %v2581 = vunpack.c.h.b16 %v2510
        %v2582 = vunpack.c.l.b16 %v2511
        %v2583 = vunpack.c.h.b16 %v2511
        %v2584 = vunpack.c.l.b16 %v2512
        %v2585 = vunpack.c.h.b16 %v2512
        %v2586 = vunpack.c.l.b16 %v2513
        %v2587 = vunpack.c.h.b16 %v2513
        %v2588 = vunpack.c.l.b16 %v2514
        %v2589 = vunpack.c.h.b16 %v2514
        %v2590 = vunpack.c.l.b16 %v2515
        %v2591 = vunpack.c.h.b16 %v2515
        %v2592 = vunpack.c.l.b16 %v2516
        %v2593 = vunpack.c.h.b16 %v2516
        %v2594 = vunpack.c.l.b16 %v2517
        %v2595 = vunpack.c.h.b16 %v2517
        %v2596 = vunpack.c.l.b16 %v2518
        %v2597 = vunpack.c.h.b16 %v2518
        %v2598 = vunpack.c.l.b16 %v2519
        %v2599 = vunpack.c.h.b16 %v2519
        %v2600 = vunpack.c.l.b16 %v2520
        %v2601 = vunpack.c.h.b16 %v2520
        %v2602 = vunpack.c.l.b16 %v2521
        %v2603 = vunpack.c.h.b16 %v2521
        %v2604 = vunpack.c.l.b16 %v2522
        %v2605 = vunpack.c.h.b16 %v2522
        %v2606 = vunpack.c.l.b16 %v2523
        %v2607 = vunpack.c.h.b16 %v2523
        %v2608 = vunpack.c.l.b16 %v2524
        %v2609 = vunpack.c.h.b16 %v2524
        %v2610 = vunpack.c.l.b16 %v2525
        %v2611 = vunpack.c.h.b16 %v2525
        %v2612 = vunpack.c.l.b16 %v2526
        %v2613 = vunpack.c.h.b16 %v2526
        %v2614 = vunpack.c.l.b16 %v2527
        %v2615 = vunpack.c.h.b16 %v2527
        %v2616 = vunpack.c.l.b16 %v2528
        %v2617 = vunpack.c.h.b16 %v2528
        %v2618 = vunpack.c.l.b16 %v2529
        %v2619 = vunpack.c.h.b16 %v2529
        %v2620 = vunpack.c.l.b16 %v2530
        %v2621 = vunpack.c.h.b16 %v2530
        %v2622 = vunpack.c.l.b16 %v2531
        %v2623 = vunpack.c.h.b16 %v2531
        %v2624 = vunpack.c.l.b16 %v2532
        %v2625 = vunpack.c.h.b16 %v2532
        %v2626 = vunpack.c.l.b16 %v2533
        %v2627 = vunpack.c.h.b16 %v2533
        %v2628 = vunpack.c.l.b16 %v2534
        %v2629 = vunpack.c.h.b16 %v2534
        %v2630 = vunpack.c.l.b16 %v2535
        %v2631 = vunpack.c.h.b16 %v2535
        %v2632 = vpack.c.b16 %v2570, %v2568
        %v2633 = vpack.c.b16 %v2571, %v2569
        %v2634 = vpack.c.b16 %v2574, %v2572
        %v2635 = vpack.c.b16 %v2575, %v2573
        %v2636 = vpack.c.b16 %v2578, %v2576
        %v2637 = vpack.c.b16 %v2579, %v2577
        %v2638 = vpack.c.b16 %v2582, %v2580
        %v2639 = vpack.c.b16 %v2583, %v2581
        %v2640 = vpack.c.b16 %v2586, %v2584
        %v2641 = vpack.c.b16 %v2587, %v2585
        %v2642 = vpack.c.b16 %v2590, %v2588
        %v2643 = vpack.c.b16 %v2591, %v2589
        %v2644 = vpack.c.b16 %v2594, %v2592
        %v2645 = vpack.c.b16 %v2595, %v2593
        %v2646 = vpack.c.b16 %v2598, %v2596
        %v2647 = vpack.c.b16 %v2599, %v2597
        %v2648 = vpack.c.b16 %v2602, %v2600
        %v2649 = vpack.c.b16 %v2603, %v2601
        %v2650 = vpack.c.b16 %v2606, %v2604
        %v2651 = vpack.c.b16 %v2607, %v2605
        %v2652 = vpack.c.b16 %v2610, %v2608
        %v2653 = vpack.c.b16 %v2611, %v2609
        %v2654 = vpack.c.b16 %v2614, %v2612
        %v2655 = vpack.c.b16 %v2615, %v2613
        %v2656 = vpack.c.b16 %v2618, %v2616
        %v2657 = vpack.c.b16 %v2619, %v2617
        %v2658 = vpack.c.b16 %v2622, %v2620
        %v2659 = vpack.c.b16 %v2623, %v2621
        %v2660 = vpack.c.b16 %v2626, %v2624
        %v2661 = vpack.c.b16 %v2627, %v2625
        %v2662 = vpack.c.b16 %v2630, %v2628
        %v2663 = vpack.c.b16 %v2631, %v2629
        %2696 = vmatprep.subr.bf16.mxu0 %v2633
        %2697 = vmatpush1.bf16.msra.mxu0 %v2632
        %2698 = vmatprep.subr.bf16.mxu0 %v2635
        %2699 = vmatpush1.bf16.msra.mxu0 %v2634
        %2700 = vmatprep.subr.bf16.mxu0 %v2637
        %2701 = vmatpush1.bf16.msra.mxu0 %v2636
        %2702 = vmatprep.subr.bf16.mxu0 %v2639
        %2703 = vmatpush1.bf16.msra.mxu0 %v2638
        %2704 = vmatprep.subr.bf16.mxu0 %v2641
        %2705 = vmatpush1.bf16.msra.mxu0 %v2640
        %2706 = vmatprep.subr.bf16.mxu0 %v2643
        %2707 = vmatpush1.bf16.msra.mxu0 %v2642
        %2708 = vmatprep.subr.bf16.mxu0 %v2645
        %2709 = vmatpush1.bf16.msra.mxu0 %v2644
        %2710 = vmatprep.subr.bf16.mxu0 %v2647
        %2711 = vmatpush1.bf16.msra.mxu0 %v2646
        %2712 = vmatprep.subr.bf16.mxu0 %v2649
        %2713 = vmatpush1.bf16.msra.mxu0 %v2648
        %2714 = vmatprep.subr.bf16.mxu0 %v2651
        %2715 = vmatpush1.bf16.msra.mxu0 %v2650
        %2716 = vmatprep.subr.bf16.mxu0 %v2653
        %2717 = vmatpush1.bf16.msra.mxu0 %v2652
        %2718 = vmatprep.subr.bf16.mxu0 %v2655
        %2719 = vmatpush1.bf16.msra.mxu0 %v2654
        %2720 = vmatprep.subr.bf16.mxu0 %v2657
        %2721 = vmatpush1.bf16.msra.mxu0 %v2656
        %2722 = vmatprep.subr.bf16.mxu0 %v2659
        %2723 = vmatpush1.bf16.msra.mxu0 %v2658
        %2724 = vmatprep.subr.bf16.mxu0 %v2661
        %2725 = vmatpush1.bf16.msra.mxu0 %v2660
        %2726 = vmatprep.subr.bf16.mxu0 %v2663
        %2727 = vmatpush1.bf16.msra.mxu0 %v2662
        %2728 = vmatprep.mubr.bf16.mxu0 %v2502
        %2729 = vmatmul.mubr.bf16.gmra.mrb[0].mxu0 %v2501
        %v2730 = vpop.f32.mrb[0].mxu0
        %v2731 = vadd.f32 0.0, %v2730
        %v2732 = vpop.f32.mrb[0].mxu0
        %v2733 = vadd.f32 0.0, %v2732
        %v2734 = vpop.f32.mrb[0].mxu0
        %v2735 = vadd.f32 0.0, %v2734
        %v2736 = vpop.f32.mrb[0].mxu0
        %v2737 = vadd.f32 0.0, %v2736
        %2738 = vdwg.mxu0
        %v2739 = vadd.f32 %v2439, %v2731
        %v2740 = vadd.f32 %v2441, %v2733
        %v2741 = vadd.f32 %v2443, %v2735
        %v2742 = vadd.f32 %v2445, %v2737
        %s2743 = scalar_lea.vmem %s2, 24
        %v2744 = vld [vmem:[%s2743] sm:$0xf]
        %v2745 = vld [vmem:[%s2743 + $0x4] sm:$0xf]
        %v2748 = vunpack.c.l.b16 %v2744
        %v2749 = vunpack.c.l.b16 %v2745
        %v2750 = vpack.c.b16 %v2749, %v2748
        %v2752 = vsel %vm1871, %v2750, 0
        %2754 = vmatprep.subr.bf16.mxu0 %v1861
        %2755 = vmatpush1.bf16.msra.mxu0 %v1860
        %2756 = vmatprep.subr.bf16.mxu0 %v1863
        %2757 = vmatpush1.bf16.msra.mxu0 %v1862
        %2758 = vmatprep.subr.bf16.mxu0 0
        %2759 = vmatpush1.bf16.msra.mxu0 0
        %2760 = vmatprep.subr.bf16.mxu0 0
        %2761 = vmatpush1.bf16.msra.mxu0 0
        %2762 = vmatprep.subr.bf16.mxu0 0
        %2763 = vmatpush1.bf16.msra.mxu0 0
        %2764 = vmatprep.subr.bf16.mxu0 0
        %2765 = vmatpush1.bf16.msra.mxu0 0
        %2766 = vmatprep.subr.bf16.mxu0 0
        %2767 = vmatpush1.bf16.msra.mxu0 0
        %2768 = vmatprep.subr.bf16.mxu0 0
        %2769 = vmatpush1.bf16.msra.mxu0 0
        %2770 = vmatprep.subr.bf16.mxu0 0
        %2771 = vmatpush1.bf16.msra.mxu0 0
        %2772 = vmatprep.subr.bf16.mxu0 0
        %2773 = vmatpush1.bf16.msra.mxu0 0
        %2774 = vmatprep.subr.bf16.mxu0 0
        %2775 = vmatpush1.bf16.msra.mxu0 0
        %2776 = vmatprep.subr.bf16.mxu0 0
        %2777 = vmatpush1.bf16.msra.mxu0 0
        %2778 = vmatprep.subr.bf16.mxu0 0
        %2779 = vmatpush1.bf16.msra.mxu0 0
        %2780 = vmatprep.subr.bf16.mxu0 0
        %2781 = vmatpush1.bf16.msra.mxu0 0
        %2782 = vmatprep.subr.bf16.mxu0 0
        %2783 = vmatpush1.bf16.msra.mxu0 0
        %2784 = vmatprep.subr.bf16.mxu0 0
        %2785 = vmatpush1.bf16.msra.mxu0 0
        %2786 = vmatprep.mubr.bf16.mxu0 0
        %2787 = vmatmul.mubr.bf16.gmra.mrb[0].mxu0 %v2752
        %v2788 = vpop.f32.mrb[0].mxu0
        %v2789 = vadd.f32 0.0, %v2788
        %v2790 = vpop.f32.mrb[0].mxu0
        %v2791 = vadd.f32 0.0, %v2790
        %v2792 = vpop.f32.mrb[0].mxu0
        %v2793 = vadd.f32 0.0, %v2792
        %v2794 = vpop.f32.mrb[0].mxu0
        %v2795 = vadd.f32 0.0, %v2794
        %2796 = vdwg.mxu0
        %v2797 = vpack.c.bf16 %v2793, %v2789
        %v2798 = vpack.c.bf16 %v2795, %v2791
        %s2799 = scalar_lea.vmem [#allocation3], 768
        %v2800 = vld [vmem:[%s2799] sm:$0xff]
        %v2801 = vld [vmem:[%s2799 + $0x8] sm:$0xff]
        %v2802 = vld [vmem:[%s2799 + $0x10] sm:$0xff]
        %v2803 = vld [vmem:[%s2799 + $0x18] sm:$0xff]
        %v2804 = vld [vmem:[%s2799 + $0x20] sm:$0xff]
        %v2805 = vld [vmem:[%s2799 + $0x28] sm:$0xff]
        %v2806 = vld [vmem:[%s2799 + $0x30] sm:$0xff]
        %v2807 = vld [vmem:[%s2799 + $0x38] sm:$0xff]
        %v2808 = vld [vmem:[%s2799 + $0x40] sm:$0xff]
        %v2809 = vld [vmem:[%s2799 + $0x48] sm:$0xff]
        %v2810 = vld [vmem:[%s2799 + $0x50] sm:$0xff]
        %v2811 = vld [vmem:[%s2799 + $0x58] sm:$0xff]
        %v2812 = vld [vmem:[%s2799 + $0x60] sm:$0xff]
        %v2813 = vld [vmem:[%s2799 + $0x68] sm:$0xff]
        %v2814 = vld [vmem:[%s2799 + $0x70] sm:$0xff]
        %v2815 = vld [vmem:[%s2799 + $0x78] sm:$0xff]
        %v2816 = vld [vmem:[%s2799 + $0x80] sm:$0xff]
        %v2817 = vld [vmem:[%s2799 + $0x88] sm:$0xff]
        %v2818 = vld [vmem:[%s2799 + $0x90] sm:$0xff]
        %v2819 = vld [vmem:[%s2799 + $0x98] sm:$0xff]
        %v2820 = vld [vmem:[%s2799 + $0xa0] sm:$0xff]
        %v2821 = vld [vmem:[%s2799 + $0xa8] sm:$0xff]
        %v2822 = vld [vmem:[%s2799 + $0xb0] sm:$0xff]
        %v2823 = vld [vmem:[%s2799 + $0xb8] sm:$0xff]
        %v2824 = vld [vmem:[%s2799 + $0xc0] sm:$0xff]
        %v2825 = vld [vmem:[%s2799 + $0xc8] sm:$0xff]
        %v2826 = vld [vmem:[%s2799 + $0xd0] sm:$0xff]
        %v2827 = vld [vmem:[%s2799 + $0xd8] sm:$0xff]
        %v2828 = vld [vmem:[%s2799 + $0xe0] sm:$0xff]
        %v2829 = vld [vmem:[%s2799 + $0xe8] sm:$0xff]
        %v2830 = vld [vmem:[%s2799 + $0xf0] sm:$0xff]
        %v2831 = vld [vmem:[%s2799 + $0xf8] sm:$0xff]
        %v2864 = vunpack.c.l.b16 %v2800
        %v2865 = vunpack.c.h.b16 %v2800
        %v2866 = vunpack.c.l.b16 %v2801
        %v2867 = vunpack.c.h.b16 %v2801
        %v2868 = vunpack.c.l.b16 %v2802
        %v2869 = vunpack.c.h.b16 %v2802
        %v2870 = vunpack.c.l.b16 %v2803
        %v2871 = vunpack.c.h.b16 %v2803
        %v2872 = vunpack.c.l.b16 %v2804
        %v2873 = vunpack.c.h.b16 %v2804
        %v2874 = vunpack.c.l.b16 %v2805
        %v2875 = vunpack.c.h.b16 %v2805
        %v2876 = vunpack.c.l.b16 %v2806
        %v2877 = vunpack.c.h.b16 %v2806
        %v2878 = vunpack.c.l.b16 %v2807
        %v2879 = vunpack.c.h.b16 %v2807
        %v2880 = vunpack.c.l.b16 %v2808
        %v2881 = vunpack.c.h.b16 %v2808
        %v2882 = vunpack.c.l.b16 %v2809
        %v2883 = vunpack.c.h.b16 %v2809
        %v2884 = vunpack.c.l.b16 %v2810
        %v2885 = vunpack.c.h.b16 %v2810
        %v2886 = vunpack.c.l.b16 %v2811
        %v2887 = vunpack.c.h.b16 %v2811
        %v2888 = vunpack.c.l.b16 %v2812
        %v2889 = vunpack.c.h.b16 %v2812
        %v2890 = vunpack.c.l.b16 %v2813
        %v2891 = vunpack.c.h.b16 %v2813
        %v2892 = vunpack.c.l.b16 %v2814
        %v2893 = vunpack.c.h.b16 %v2814
        %v2894 = vunpack.c.l.b16 %v2815
        %v2895 = vunpack.c.h.b16 %v2815
        %v2896 = vunpack.c.l.b16 %v2816
        %v2897 = vunpack.c.h.b16 %v2816
        %v2898 = vunpack.c.l.b16 %v2817
        %v2899 = vunpack.c.h.b16 %v2817
        %v2900 = vunpack.c.l.b16 %v2818
        %v2901 = vunpack.c.h.b16 %v2818
        %v2902 = vunpack.c.l.b16 %v2819
        %v2903 = vunpack.c.h.b16 %v2819
        %v2904 = vunpack.c.l.b16 %v2820
        %v2905 = vunpack.c.h.b16 %v2820
        %v2906 = vunpack.c.l.b16 %v2821
        %v2907 = vunpack.c.h.b16 %v2821
        %v2908 = vunpack.c.l.b16 %v2822
        %v2909 = vunpack.c.h.b16 %v2822
        %v2910 = vunpack.c.l.b16 %v2823
        %v2911 = vunpack.c.h.b16 %v2823
        %v2912 = vunpack.c.l.b16 %v2824
        %v2913 = vunpack.c.h.b16 %v2824
        %v2914 = vunpack.c.l.b16 %v2825
        %v2915 = vunpack.c.h.b16 %v2825
        %v2916 = vunpack.c.l.b16 %v2826
        %v2917 = vunpack.c.h.b16 %v2826
        %v2918 = vunpack.c.l.b16 %v2827
        %v2919 = vunpack.c.h.b16 %v2827
        %v2920 = vunpack.c.l.b16 %v2828
        %v2921 = vunpack.c.h.b16 %v2828
        %v2922 = vunpack.c.l.b16 %v2829
        %v2923 = vunpack.c.h.b16 %v2829
        %v2924 = vunpack.c.l.b16 %v2830
        %v2925 = vunpack.c.h.b16 %v2830
        %v2926 = vunpack.c.l.b16 %v2831
        %v2927 = vunpack.c.h.b16 %v2831
        %v2928 = vpack.c.b16 %v2866, %v2864
        %v2929 = vpack.c.b16 %v2867, %v2865
        %v2930 = vpack.c.b16 %v2870, %v2868
        %v2931 = vpack.c.b16 %v2871, %v2869
        %v2932 = vpack.c.b16 %v2874, %v2872
        %v2933 = vpack.c.b16 %v2875, %v2873
        %v2934 = vpack.c.b16 %v2878, %v2876
        %v2935 = vpack.c.b16 %v2879, %v2877
        %v2936 = vpack.c.b16 %v2882, %v2880
        %v2937 = vpack.c.b16 %v2883, %v2881
        %v2938 = vpack.c.b16 %v2886, %v2884
        %v2939 = vpack.c.b16 %v2887, %v2885
        %v2940 = vpack.c.b16 %v2890, %v2888
        %v2941 = vpack.c.b16 %v2891, %v2889
        %v2942 = vpack.c.b16 %v2894, %v2892
        %v2943 = vpack.c.b16 %v2895, %v2893
        %v2944 = vpack.c.b16 %v2898, %v2896
        %v2945 = vpack.c.b16 %v2899, %v2897
        %v2946 = vpack.c.b16 %v2902, %v2900
        %v2947 = vpack.c.b16 %v2903, %v2901
        %v2948 = vpack.c.b16 %v2906, %v2904
        %v2949 = vpack.c.b16 %v2907, %v2905
        %v2950 = vpack.c.b16 %v2910, %v2908
        %v2951 = vpack.c.b16 %v2911, %v2909
        %v2952 = vpack.c.b16 %v2914, %v2912
        %v2953 = vpack.c.b16 %v2915, %v2913
        %v2954 = vpack.c.b16 %v2918, %v2916
        %v2955 = vpack.c.b16 %v2919, %v2917
        %v2956 = vpack.c.b16 %v2922, %v2920
        %v2957 = vpack.c.b16 %v2923, %v2921
        %v2958 = vpack.c.b16 %v2926, %v2924
        %v2959 = vpack.c.b16 %v2927, %v2925
        %2992 = vmatprep.subr.bf16.mxu0 %v2929
        %2993 = vmatpush1.bf16.msra.mxu0 %v2928
        %2994 = vmatprep.subr.bf16.mxu0 %v2931
        %2995 = vmatpush1.bf16.msra.mxu0 %v2930
        %2996 = vmatprep.subr.bf16.mxu0 %v2933
        %2997 = vmatpush1.bf16.msra.mxu0 %v2932
        %2998 = vmatprep.subr.bf16.mxu0 %v2935
        %2999 = vmatpush1.bf16.msra.mxu0 %v2934
        %3000 = vmatprep.subr.bf16.mxu0 %v2937
        %3001 = vmatpush1.bf16.msra.mxu0 %v2936
        %3002 = vmatprep.subr.bf16.mxu0 %v2939
        %3003 = vmatpush1.bf16.msra.mxu0 %v2938
        %3004 = vmatprep.subr.bf16.mxu0 %v2941
        %3005 = vmatpush1.bf16.msra.mxu0 %v2940
        %3006 = vmatprep.subr.bf16.mxu0 %v2943
        %3007 = vmatpush1.bf16.msra.mxu0 %v2942
        %3008 = vmatprep.subr.bf16.mxu0 %v2945
        %3009 = vmatpush1.bf16.msra.mxu0 %v2944
        %3010 = vmatprep.subr.bf16.mxu0 %v2947
        %3011 = vmatpush1.bf16.msra.mxu0 %v2946
        %3012 = vmatprep.subr.bf16.mxu0 %v2949
        %3013 = vmatpush1.bf16.msra.mxu0 %v2948
        %3014 = vmatprep.subr.bf16.mxu0 %v2951
        %3015 = vmatpush1.bf16.msra.mxu0 %v2950
        %3016 = vmatprep.subr.bf16.mxu0 %v2953
        %3017 = vmatpush1.bf16.msra.mxu0 %v2952
        %3018 = vmatprep.subr.bf16.mxu0 %v2955
        %3019 = vmatpush1.bf16.msra.mxu0 %v2954
        %3020 = vmatprep.subr.bf16.mxu0 %v2957
        %3021 = vmatpush1.bf16.msra.mxu0 %v2956
        %3022 = vmatprep.subr.bf16.mxu0 %v2959
        %3023 = vmatpush1.bf16.msra.mxu0 %v2958
        %3024 = vmatprep.mubr.bf16.mxu0 %v2798
        %3025 = vmatmul.mubr.bf16.gmra.mrb[0].mxu0 %v2797
        %v3026 = vpop.f32.mrb[0].mxu0
        %v3027 = vadd.f32 0.0, %v3026
        %v3028 = vpop.f32.mrb[0].mxu0
        %v3029 = vadd.f32 0.0, %v3028
        %v3030 = vpop.f32.mrb[0].mxu0
        %v3031 = vadd.f32 0.0, %v3030
        %v3032 = vpop.f32.mrb[0].mxu0
        %v3033 = vadd.f32 0.0, %v3032
        %3034 = vdwg.mxu0
        %v3035 = vadd.f32 %v2739, %v3027
        %v3036 = vadd.f32 %v2740, %v3029
        %v3037 = vadd.f32 %v2741, %v3031
        %v3038 = vadd.f32 %v2742, %v3033
        %vm3039 = vcmp.gt.f32.partialorder %v3035, 0.0
        %vm3040 = vcmp.gt.f32.partialorder %v3036, 0.0
        %vm3041 = vcmp.gt.f32.partialorder %v3037, 0.0
        %vm3042 = vcmp.gt.f32.partialorder %v3038, 0.0
        %v3043 = vmul.f32 %v3035, 0.2
        %v3044 = vmul.f32 %v3036, 0.2
        %v3045 = vmul.f32 %v3037, 0.2
        %v3046 = vmul.f32 %v3038, 0.2
        %v3047 = vsel %vm3039, %v3035, %v3043
        %v3048 = vsel %vm3040, %v3036, %v3044
        %v3049 = vsel %vm3041, %v3037, %v3045
        %v3050 = vsel %vm3042, %v3038, %v3046
        %v3051 = vpack.c.bf16 %v3049, %v3047
        %v3052 = vpack.c.bf16 %v3050, %v3048
        %v3053 = vld [vmem:[%s3] sm:$0xf]
        %vm3054 = vcmask 130048
        %v3056 = vsel %vm3054, %v3053, 0
        %3058 = vmatprep.subr.bf16.mxu0 %v3052
        %3059 = vmatpush1.bf16.msra.mxu0 %v3051
        %3060 = vmatprep.subr.bf16.mxu0 0
        %3061 = vmatpush1.bf16.msra.mxu0 0
        %3062 = vmatprep.subr.bf16.mxu0 0
        %3063 = vmatpush1.bf16.msra.mxu0 0
        %3064 = vmatprep.subr.bf16.mxu0 0
        %3065 = vmatpush1.bf16.msra.mxu0 0
        %3066 = vmatprep.subr.bf16.mxu0 0
        %3067 = vmatpush1.bf16.msra.mxu0 0
        %3068 = vmatprep.subr.bf16.mxu0 0
        %3069 = vmatpush1.bf16.msra.mxu0 0
        %3070 = vmatprep.subr.bf16.mxu0 0
        %3071 = vmatpush1.bf16.msra.mxu0 0
        %3072 = vmatprep.subr.bf16.mxu0 0
        %3073 = vmatpush1.bf16.msra.mxu0 0
        %3074 = vmatprep.subr.bf16.mxu0 0
        %3075 = vmatpush1.bf16.msra.mxu0 0
        %3076 = vmatprep.subr.bf16.mxu0 0
        %3077 = vmatpush1.bf16.msra.mxu0 0
        %3078 = vmatprep.subr.bf16.mxu0 0
        %3079 = vmatpush1.bf16.msra.mxu0 0
        %3080 = vmatprep.subr.bf16.mxu0 0
        %3081 = vmatpush1.bf16.msra.mxu0 0
        %3082 = vmatprep.subr.bf16.mxu0 0
        %3083 = vmatpush1.bf16.msra.mxu0 0
        %3084 = vmatprep.subr.bf16.mxu0 0
        %3085 = vmatpush1.bf16.msra.mxu0 0
        %3086 = vmatprep.subr.bf16.mxu0 0
        %3087 = vmatpush1.bf16.msra.mxu0 0
        %3088 = vmatprep.subr.bf16.mxu0 0
        %3089 = vmatpush1.bf16.msra.mxu0 0
        %3090 = vmatprep.mubr.bf16.mxu0 0
        %3091 = vmatmul.mubr.bf16.gmra.mrb[0].mxu0 %v3056
        %v3092 = vpop.f32.mrb[0].mxu0
        %v3093 = vadd.f32 0.0, %v3092
        %v3094 = vpop.f32.mrb[0].mxu0
        %v3095 = vadd.f32 0.0, %v3094
        %v3096 = vpop.f32.mrb[0].mxu0
        %v3097 = vpop.f32.mrb[0].mxu0
        %3098 = vdwg.mxu0
        %v3099 = vpack.c.bf16 %v3093, %v3093
        %v3100 = vpack.c.bf16 %v3095, %v3095
        %v3101 = vld [vmem:[#allocation5] sm:$0xff]
        %v3102 = vld [vmem:[#allocation5 + $0x8] sm:$0xff]
        %v3103 = vld [vmem:[#allocation5 + $0x10] sm:$0xff]
        %v3104 = vld [vmem:[#allocation5 + $0x18] sm:$0xff]
        %v3105 = vld [vmem:[#allocation5 + $0x20] sm:$0xff]
        %v3106 = vld [vmem:[#allocation5 + $0x28] sm:$0xff]
        %v3107 = vld [vmem:[#allocation5 + $0x30] sm:$0xff]
        %v3108 = vld [vmem:[#allocation5 + $0x38] sm:$0xff]
        %v3109 = vld [vmem:[#allocation5 + $0x40] sm:$0xff]
        %v3110 = vld [vmem:[#allocation5 + $0x48] sm:$0xff]
        %v3111 = vld [vmem:[#allocation5 + $0x50] sm:$0xff]
        %v3112 = vld [vmem:[#allocation5 + $0x58] sm:$0xff]
        %v3113 = vld [vmem:[#allocation5 + $0x60] sm:$0xff]
        %v3114 = vld [vmem:[#allocation5 + $0x68] sm:$0xff]
        %v3115 = vld [vmem:[#allocation5 + $0x70] sm:$0xff]
        %v3116 = vld [vmem:[#allocation5 + $0x78] sm:$0xff]
        %v3117 = vld [vmem:[#allocation5 + $0x80] sm:$0xff]
        %v3118 = vld [vmem:[#allocation5 + $0x88] sm:$0xff]
        %v3119 = vld [vmem:[#allocation5 + $0x90] sm:$0xff]
        %v3120 = vld [vmem:[#allocation5 + $0x98] sm:$0xff]
        %v3121 = vld [vmem:[#allocation5 + $0xa0] sm:$0xff]
        %v3122 = vld [vmem:[#allocation5 + $0xa8] sm:$0xff]
        %v3123 = vld [vmem:[#allocation5 + $0xb0] sm:$0xff]
        %v3124 = vld [vmem:[#allocation5 + $0xb8] sm:$0xff]
        %v3125 = vld [vmem:[#allocation5 + $0xc0] sm:$0xff]
        %v3126 = vld [vmem:[#allocation5 + $0xc8] sm:$0xff]
        %v3127 = vld [vmem:[#allocation5 + $0xd0] sm:$0xff]
        %v3128 = vld [vmem:[#allocation5 + $0xd8] sm:$0xff]
        %v3129 = vld [vmem:[#allocation5 + $0xe0] sm:$0xff]
        %v3130 = vld [vmem:[#allocation5 + $0xe8] sm:$0xff]
        %v3131 = vld [vmem:[#allocation5 + $0xf0] sm:$0xff]
        %v3132 = vld [vmem:[#allocation5 + $0xf8] sm:$0xff]
        %s3133 = scalar_lea.vmem %s3, 4
        %v3134 = vld [vmem:[%s3133] sm:$0xf]
        %v3136 = vsel %vm3054, %v3134, 0
        %3138 = vmatprep.subr.bf16.mxu0 %v3052
        %3139 = vmatpush1.bf16.msra.mxu0 %v3051
        %3140 = vmatprep.subr.bf16.mxu0 0
        %3141 = vmatpush1.bf16.msra.mxu0 0
        %3142 = vmatprep.subr.bf16.mxu0 0
        %3143 = vmatpush1.bf16.msra.mxu0 0
        %3144 = vmatprep.subr.bf16.mxu0 0
        %3145 = vmatpush1.bf16.msra.mxu0 0
        %3146 = vmatprep.subr.bf16.mxu0 0
        %3147 = vmatpush1.bf16.msra.mxu0 0
        %3148 = vmatprep.subr.bf16.mxu0 0
        %3149 = vmatpush1.bf16.msra.mxu0 0
        %3150 = vmatprep.subr.bf16.mxu0 0
        %3151 = vmatpush1.bf16.msra.mxu0 0
        %3152 = vmatprep.subr.bf16.mxu0 0
        %3153 = vmatpush1.bf16.msra.mxu0 0
        %3154 = vmatprep.subr.bf16.mxu0 0
        %3155 = vmatpush1.bf16.msra.mxu0 0
        %3156 = vmatprep.subr.bf16.mxu0 0
        %3157 = vmatpush1.bf16.msra.mxu0 0
        %3158 = vmatprep.subr.bf16.mxu0 0
        %3159 = vmatpush1.bf16.msra.mxu0 0
        %3160 = vmatprep.subr.bf16.mxu0 0
        %3161 = vmatpush1.bf16.msra.mxu0 0
        %3162 = vmatprep.subr.bf16.mxu0 0
        %3163 = vmatpush1.bf16.msra.mxu0 0
        %3164 = vmatprep.subr.bf16.mxu0 0
        %3165 = vmatpush1.bf16.msra.mxu0 0
        %3166 = vmatprep.subr.bf16.mxu0 0
        %3167 = vmatpush1.bf16.msra.mxu0 0
        %3168 = vmatprep.subr.bf16.mxu0 0
        %3169 = vmatpush1.bf16.msra.mxu0 0
        %3170 = vmatprep.mubr.bf16.mxu0 0
        %3171 = vmatmul.mubr.bf16.gmra.mrb[0].mxu0 %v3136
        %v3172 = vpop.f32.mrb[0].mxu0
        %v3173 = vadd.f32 0.0, %v3172
        %v3174 = vpop.f32.mrb[0].mxu0
        %v3175 = vadd.f32 0.0, %v3174
        %v3176 = vpop.f32.mrb[0].mxu0
        %v3177 = vpop.f32.mrb[0].mxu0
        %3178 = vdwg.mxu0
        %v3179 = vpack.c.bf16 %v3173, %v3173
        %v3180 = vpack.c.bf16 %v3175, %v3175
        %s3181 = scalar_lea.vmem [#allocation5], 256
        %v3182 = vld [vmem:[%s3181] sm:$0xff]
        %v3183 = vld [vmem:[%s3181 + $0x8] sm:$0xff]
        %v3184 = vld [vmem:[%s3181 + $0x10] sm:$0xff]
        %v3185 = vld [vmem:[%s3181 + $0x18] sm:$0xff]
        %v3186 = vld [vmem:[%s3181 + $0x20] sm:$0xff]
        %v3187 = vld [vmem:[%s3181 + $0x28] sm:$0xff]
        %v3188 = vld [vmem:[%s3181 + $0x30] sm:$0xff]
        %v3189 = vld [vmem:[%s3181 + $0x38] sm:$0xff]
        %v3190 = vld [vmem:[%s3181 + $0x40] sm:$0xff]
        %v3191 = vld [vmem:[%s3181 + $0x48] sm:$0xff]
        %v3192 = vld [vmem:[%s3181 + $0x50] sm:$0xff]
        %v3193 = vld [vmem:[%s3181 + $0x58] sm:$0xff]
        %v3194 = vld [vmem:[%s3181 + $0x60] sm:$0xff]
        %v3195 = vld [vmem:[%s3181 + $0x68] sm:$0xff]
        %v3196 = vld [vmem:[%s3181 + $0x70] sm:$0xff]
        %v3197 = vld [vmem:[%s3181 + $0x78] sm:$0xff]
        %v3198 = vld [vmem:[%s3181 + $0x80] sm:$0xff]
        %v3199 = vld [vmem:[%s3181 + $0x88] sm:$0xff]
        %v3200 = vld [vmem:[%s3181 + $0x90] sm:$0xff]
        %v3201 = vld [vmem:[%s3181 + $0x98] sm:$0xff]
        %v3202 = vld [vmem:[%s3181 + $0xa0] sm:$0xff]
        %v3203 = vld [vmem:[%s3181 + $0xa8] sm:$0xff]
        %v3204 = vld [vmem:[%s3181 + $0xb0] sm:$0xff]
        %v3205 = vld [vmem:[%s3181 + $0xb8] sm:$0xff]
        %v3206 = vld [vmem:[%s3181 + $0xc0] sm:$0xff]
        %v3207 = vld [vmem:[%s3181 + $0xc8] sm:$0xff]
        %v3208 = vld [vmem:[%s3181 + $0xd0] sm:$0xff]
        %v3209 = vld [vmem:[%s3181 + $0xd8] sm:$0xff]
        %v3210 = vld [vmem:[%s3181 + $0xe0] sm:$0xff]
        %v3211 = vld [vmem:[%s3181 + $0xe8] sm:$0xff]
        %v3212 = vld [vmem:[%s3181 + $0xf0] sm:$0xff]
        %v3213 = vld [vmem:[%s3181 + $0xf8] sm:$0xff]
        %v3246 = vunpack.c.l.b16 %v3182
        %v3247 = vunpack.c.h.b16 %v3182
        %v3248 = vunpack.c.l.b16 %v3183
        %v3249 = vunpack.c.h.b16 %v3183
        %v3250 = vunpack.c.l.b16 %v3184
        %v3251 = vunpack.c.h.b16 %v3184
        %v3252 = vunpack.c.l.b16 %v3185
        %v3253 = vunpack.c.h.b16 %v3185
        %v3254 = vunpack.c.l.b16 %v3186
        %v3255 = vunpack.c.h.b16 %v3186
        %v3256 = vunpack.c.l.b16 %v3187
        %v3257 = vunpack.c.h.b16 %v3187
        %v3258 = vunpack.c.l.b16 %v3188
        %v3259 = vunpack.c.h.b16 %v3188
        %v3260 = vunpack.c.l.b16 %v3189
        %v3261 = vunpack.c.h.b16 %v3189
        %v3262 = vunpack.c.l.b16 %v3190
        %v3263 = vunpack.c.h.b16 %v3190
        %v3264 = vunpack.c.l.b16 %v3191
        %v3265 = vunpack.c.h.b16 %v3191
        %v3266 = vunpack.c.l.b16 %v3192
        %v3267 = vunpack.c.h.b16 %v3192
        %v3268 = vunpack.c.l.b16 %v3193
        %v3269 = vunpack.c.h.b16 %v3193
        %v3270 = vunpack.c.l.b16 %v3194
        %v3271 = vunpack.c.h.b16 %v3194
        %v3272 = vunpack.c.l.b16 %v3195
        %v3273 = vunpack.c.h.b16 %v3195
        %v3274 = vunpack.c.l.b16 %v3196
        %v3275 = vunpack.c.h.b16 %v3196
        %v3276 = vunpack.c.l.b16 %v3197
        %v3277 = vunpack.c.h.b16 %v3197
        %v3278 = vunpack.c.l.b16 %v3198
        %v3279 = vunpack.c.h.b16 %v3198
        %v3280 = vunpack.c.l.b16 %v3199
        %v3281 = vunpack.c.h.b16 %v3199
        %v3282 = vunpack.c.l.b16 %v3200
        %v3283 = vunpack.c.h.b16 %v3200
        %v3284 = vunpack.c.l.b16 %v3201
        %v3285 = vunpack.c.h.b16 %v3201
        %v3286 = vunpack.c.l.b16 %v3202
        %v3287 = vunpack.c.h.b16 %v3202
        %v3288 = vunpack.c.l.b16 %v3203
        %v3289 = vunpack.c.h.b16 %v3203
        %v3290 = vunpack.c.l.b16 %v3204
        %v3291 = vunpack.c.h.b16 %v3204
        %v3292 = vunpack.c.l.b16 %v3205
        %v3293 = vunpack.c.h.b16 %v3205
        %v3294 = vunpack.c.l.b16 %v3206
        %v3295 = vunpack.c.h.b16 %v3206
        %v3296 = vunpack.c.l.b16 %v3207
        %v3297 = vunpack.c.h.b16 %v3207
        %v3298 = vunpack.c.l.b16 %v3208
        %v3299 = vunpack.c.h.b16 %v3208
        %v3300 = vunpack.c.l.b16 %v3209
        %v3301 = vunpack.c.h.b16 %v3209
        %v3302 = vunpack.c.l.b16 %v3210
        %v3303 = vunpack.c.h.b16 %v3210
        %v3304 = vunpack.c.l.b16 %v3211
        %v3305 = vunpack.c.h.b16 %v3211
        %v3306 = vunpack.c.l.b16 %v3212
        %v3307 = vunpack.c.h.b16 %v3212
        %v3308 = vunpack.c.l.b16 %v3213
        %v3309 = vunpack.c.h.b16 %v3213
        %v3310 = vpack.c.b16 %v3248, %v3246
        %v3311 = vpack.c.b16 %v3249, %v3247
        %v3312 = vpack.c.b16 %v3252, %v3250
        %v3313 = vpack.c.b16 %v3253, %v3251
        %v3314 = vpack.c.b16 %v3256, %v3254
        %v3315 = vpack.c.b16 %v3257, %v3255
        %v3316 = vpack.c.b16 %v3260, %v3258
        %v3317 = vpack.c.b16 %v3261, %v3259
        %v3318 = vpack.c.b16 %v3264, %v3262
        %v3319 = vpack.c.b16 %v3265, %v3263
        %v3320 = vpack.c.b16 %v3268, %v3266
        %v3321 = vpack.c.b16 %v3269, %v3267
        %v3322 = vpack.c.b16 %v3272, %v3270
        %v3323 = vpack.c.b16 %v3273, %v3271
        %v3324 = vpack.c.b16 %v3276, %v3274
        %v3325 = vpack.c.b16 %v3277, %v3275
        %v3326 = vpack.c.b16 %v3280, %v3278
        %v3327 = vpack.c.b16 %v3281, %v3279
        %v3328 = vpack.c.b16 %v3284, %v3282
        %v3329 = vpack.c.b16 %v3285, %v3283
        %v3330 = vpack.c.b16 %v3288, %v3286
        %v3331 = vpack.c.b16 %v3289, %v3287
        %v3332 = vpack.c.b16 %v3292, %v3290
        %v3333 = vpack.c.b16 %v3293, %v3291
        %v3334 = vpack.c.b16 %v3296, %v3294
        %v3335 = vpack.c.b16 %v3297, %v3295
        %v3336 = vpack.c.b16 %v3300, %v3298
        %v3337 = vpack.c.b16 %v3301, %v3299
        %v3338 = vpack.c.b16 %v3304, %v3302
        %v3339 = vpack.c.b16 %v3305, %v3303
        %v3340 = vpack.c.b16 %v3308, %v3306
        %v3341 = vpack.c.b16 %v3309, %v3307
        %3374 = vmatprep.subr.bf16.mxu0 %v3311
        %3375 = vmatpush1.bf16.msra.mxu0 %v3310
        %3376 = vmatprep.subr.bf16.mxu0 %v3313
        %3377 = vmatpush1.bf16.msra.mxu0 %v3312
        %3378 = vmatprep.subr.bf16.mxu0 %v3315
        %3379 = vmatpush1.bf16.msra.mxu0 %v3314
        %3380 = vmatprep.subr.bf16.mxu0 %v3317
        %3381 = vmatpush1.bf16.msra.mxu0 %v3316
        %3382 = vmatprep.subr.bf16.mxu0 %v3319
        %3383 = vmatpush1.bf16.msra.mxu0 %v3318
        %3384 = vmatprep.subr.bf16.mxu0 %v3321
        %3385 = vmatpush1.bf16.msra.mxu0 %v3320
        %3386 = vmatprep.subr.bf16.mxu0 %v3323
        %3387 = vmatpush1.bf16.msra.mxu0 %v3322
        %3388 = vmatprep.subr.bf16.mxu0 %v3325
        %3389 = vmatpush1.bf16.msra.mxu0 %v3324
        %3390 = vmatprep.subr.bf16.mxu0 %v3327
        %3391 = vmatpush1.bf16.msra.mxu0 %v3326
        %3392 = vmatprep.subr.bf16.mxu0 %v3329
        %3393 = vmatpush1.bf16.msra.mxu0 %v3328
        %3394 = vmatprep.subr.bf16.mxu0 %v3331
        %3395 = vmatpush1.bf16.msra.mxu0 %v3330
        %3396 = vmatprep.subr.bf16.mxu0 %v3333
        %3397 = vmatpush1.bf16.msra.mxu0 %v3332
        %3398 = vmatprep.subr.bf16.mxu0 %v3335
        %3399 = vmatpush1.bf16.msra.mxu0 %v3334
        %3400 = vmatprep.subr.bf16.mxu0 %v3337
        %3401 = vmatpush1.bf16.msra.mxu0 %v3336
        %3402 = vmatprep.subr.bf16.mxu0 %v3339
        %3403 = vmatpush1.bf16.msra.mxu0 %v3338
        %3404 = vmatprep.subr.bf16.mxu0 %v3341
        %3405 = vmatpush1.bf16.msra.mxu0 %v3340
        %3406 = vmatprep.mubr.bf16.mxu0 %v3180
        %3407 = vmatmul.mubr.bf16.gmra.mrb[0].mxu0 %v3179
        %v3408 = vpop.f32.mrb[0].mxu0
        %v3409 = vadd.f32 0.0, %v3408
        %v3410 = vpop.f32.mrb[0].mxu0
        %v3411 = vadd.f32 0.0, %v3410
        %v3412 = vpop.f32.mrb[0].mxu0
        %v3413 = vpop.f32.mrb[0].mxu0
        %3414 = vdwg.mxu0
        %v3447 = vunpack.c.l.b16 %v3101
        %v3448 = vunpack.c.h.b16 %v3101
        %v3449 = vunpack.c.l.b16 %v3102
        %v3450 = vunpack.c.h.b16 %v3102
        %v3451 = vunpack.c.l.b16 %v3103
        %v3452 = vunpack.c.h.b16 %v3103
        %v3453 = vunpack.c.l.b16 %v3104
        %v3454 = vunpack.c.h.b16 %v3104
        %v3455 = vunpack.c.l.b16 %v3105
        %v3456 = vunpack.c.h.b16 %v3105
        %v3457 = vunpack.c.l.b16 %v3106
        %v3458 = vunpack.c.h.b16 %v3106
        %v3459 = vunpack.c.l.b16 %v3107
        %v3460 = vunpack.c.h.b16 %v3107
        %v3461 = vunpack.c.l.b16 %v3108
        %v3462 = vunpack.c.h.b16 %v3108
        %v3463 = vunpack.c.l.b16 %v3109
        %v3464 = vunpack.c.h.b16 %v3109
        %v3465 = vunpack.c.l.b16 %v3110
        %v3466 = vunpack.c.h.b16 %v3110
        %v3467 = vunpack.c.l.b16 %v3111
        %v3468 = vunpack.c.h.b16 %v3111
        %v3469 = vunpack.c.l.b16 %v3112
        %v3470 = vunpack.c.h.b16 %v3112
        %v3471 = vunpack.c.l.b16 %v3113
        %v3472 = vunpack.c.h.b16 %v3113
        %v3473 = vunpack.c.l.b16 %v3114
        %v3474 = vunpack.c.h.b16 %v3114
        %v3475 = vunpack.c.l.b16 %v3115
        %v3476 = vunpack.c.h.b16 %v3115
        %v3477 = vunpack.c.l.b16 %v3116
        %v3478 = vunpack.c.h.b16 %v3116
        %v3479 = vunpack.c.l.b16 %v3117
        %v3480 = vunpack.c.h.b16 %v3117
        %v3481 = vunpack.c.l.b16 %v3118
        %v3482 = vunpack.c.h.b16 %v3118
        %v3483 = vunpack.c.l.b16 %v3119
        %v3484 = vunpack.c.h.b16 %v3119
        %v3485 = vunpack.c.l.b16 %v3120
        %v3486 = vunpack.c.h.b16 %v3120
        %v3487 = vunpack.c.l.b16 %v3121
        %v3488 = vunpack.c.h.b16 %v3121
        %v3489 = vunpack.c.l.b16 %v3122
        %v3490 = vunpack.c.h.b16 %v3122
        %v3491 = vunpack.c.l.b16 %v3123
        %v3492 = vunpack.c.h.b16 %v3123
        %v3493 = vunpack.c.l.b16 %v3124
        %v3494 = vunpack.c.h.b16 %v3124
        %v3495 = vunpack.c.l.b16 %v3125
        %v3496 = vunpack.c.h.b16 %v3125
        %v3497 = vunpack.c.l.b16 %v3126
        %v3498 = vunpack.c.h.b16 %v3126
        %v3499 = vunpack.c.l.b16 %v3127
        %v3500 = vunpack.c.h.b16 %v3127
        %v3501 = vunpack.c.l.b16 %v3128
        %v3502 = vunpack.c.h.b16 %v3128
        %v3503 = vunpack.c.l.b16 %v3129
        %v3504 = vunpack.c.h.b16 %v3129
        %v3505 = vunpack.c.l.b16 %v3130
        %v3506 = vunpack.c.h.b16 %v3130
        %v3507 = vunpack.c.l.b16 %v3131
        %v3508 = vunpack.c.h.b16 %v3131
        %v3509 = vunpack.c.l.b16 %v3132
        %v3510 = vunpack.c.h.b16 %v3132
        %v3511 = vpack.c.b16 %v3449, %v3447
        %v3512 = vpack.c.b16 %v3450, %v3448
        %v3513 = vpack.c.b16 %v3453, %v3451
        %v3514 = vpack.c.b16 %v3454, %v3452
        %v3515 = vpack.c.b16 %v3457, %v3455
        %v3516 = vpack.c.b16 %v3458, %v3456
        %v3517 = vpack.c.b16 %v3461, %v3459
        %v3518 = vpack.c.b16 %v3462, %v3460
        %v3519 = vpack.c.b16 %v3465, %v3463
        %v3520 = vpack.c.b16 %v3466, %v3464
        %v3521 = vpack.c.b16 %v3469, %v3467
        %v3522 = vpack.c.b16 %v3470, %v3468
        %v3523 = vpack.c.b16 %v3473, %v3471
        %v3524 = vpack.c.b16 %v3474, %v3472
        %v3525 = vpack.c.b16 %v3477, %v3475
        %v3526 = vpack.c.b16 %v3478, %v3476
        %v3527 = vpack.c.b16 %v3481, %v3479
        %v3528 = vpack.c.b16 %v3482, %v3480
        %v3529 = vpack.c.b16 %v3485, %v3483
        %v3530 = vpack.c.b16 %v3486, %v3484
        %v3531 = vpack.c.b16 %v3489, %v3487
        %v3532 = vpack.c.b16 %v3490, %v3488
        %v3533 = vpack.c.b16 %v3493, %v3491
        %v3534 = vpack.c.b16 %v3494, %v3492
        %v3535 = vpack.c.b16 %v3497, %v3495
        %v3536 = vpack.c.b16 %v3498, %v3496
        %v3537 = vpack.c.b16 %v3501, %v3499
        %v3538 = vpack.c.b16 %v3502, %v3500
        %v3539 = vpack.c.b16 %v3505, %v3503
        %v3540 = vpack.c.b16 %v3506, %v3504
        %v3541 = vpack.c.b16 %v3509, %v3507
        %v3542 = vpack.c.b16 %v3510, %v3508
        %3575 = vmatprep.subr.bf16.mxu0 %v3512
        %3576 = vmatpush1.bf16.msra.mxu0 %v3511
        %3577 = vmatprep.subr.bf16.mxu0 %v3514
        %3578 = vmatpush1.bf16.msra.mxu0 %v3513
        %3579 = vmatprep.subr.bf16.mxu0 %v3516
        %3580 = vmatpush1.bf16.msra.mxu0 %v3515
        %3581 = vmatprep.subr.bf16.mxu0 %v3518
        %3582 = vmatpush1.bf16.msra.mxu0 %v3517
        %3583 = vmatprep.subr.bf16.mxu0 %v3520
        %3584 = vmatpush1.bf16.msra.mxu0 %v3519
        %3585 = vmatprep.subr.bf16.mxu0 %v3522
        %3586 = vmatpush1.bf16.msra.mxu0 %v3521
        %3587 = vmatprep.subr.bf16.mxu0 %v3524
        %3588 = vmatpush1.bf16.msra.mxu0 %v3523
        %3589 = vmatprep.subr.bf16.mxu0 %v3526
        %3590 = vmatpush1.bf16.msra.mxu0 %v3525
        %3591 = vmatprep.subr.bf16.mxu0 %v3528
        %3592 = vmatpush1.bf16.msra.mxu0 %v3527
        %3593 = vmatprep.subr.bf16.mxu0 %v3530
        %3594 = vmatpush1.bf16.msra.mxu0 %v3529
        %3595 = vmatprep.subr.bf16.mxu0 %v3532
        %3596 = vmatpush1.bf16.msra.mxu0 %v3531
        %3597 = vmatprep.subr.bf16.mxu0 %v3534
        %3598 = vmatpush1.bf16.msra.mxu0 %v3533
        %3599 = vmatprep.subr.bf16.mxu0 %v3536
        %3600 = vmatpush1.bf16.msra.mxu0 %v3535
        %3601 = vmatprep.subr.bf16.mxu0 %v3538
        %3602 = vmatpush1.bf16.msra.mxu0 %v3537
        %3603 = vmatprep.subr.bf16.mxu0 %v3540
        %3604 = vmatpush1.bf16.msra.mxu0 %v3539
        %3605 = vmatprep.subr.bf16.mxu0 %v3542
        %3606 = vmatpush1.bf16.msra.mxu0 %v3541
        %3607 = vmatprep.mubr.bf16.mxu0 %v3100
        %3608 = vmatmul.mubr.bf16.gmra.mrb[0].mxu0 %v3099
        %v3609 = vpop.f32.mrb[0].mxu0
        %v3610 = vadd.f32 %v3409, %v3609
        %v3611 = vpop.f32.mrb[0].mxu0
        %v3612 = vadd.f32 %v3411, %v3611
        %v3613 = vpop.f32.mrb[0].mxu0
        %v3614 = vpop.f32.mrb[0].mxu0
        %3615 = vdwg.mxu0
        %s3616 = scalar_lea.vmem %s3, 8
        %v3617 = vld [vmem:[%s3616] sm:$0xf]
        %v3619 = vsel %vm3054, %v3617, 0
        %3621 = vmatprep.subr.bf16.mxu0 %v3052
        %3622 = vmatpush1.bf16.msra.mxu0 %v3051
        %3623 = vmatprep.subr.bf16.mxu0 0
        %3624 = vmatpush1.bf16.msra.mxu0 0
        %3625 = vmatprep.subr.bf16.mxu0 0
        %3626 = vmatpush1.bf16.msra.mxu0 0
        %3627 = vmatprep.subr.bf16.mxu0 0
        %3628 = vmatpush1.bf16.msra.mxu0 0
        %3629 = vmatprep.subr.bf16.mxu0 0
        %3630 = vmatpush1.bf16.msra.mxu0 0
        %3631 = vmatprep.subr.bf16.mxu0 0
        %3632 = vmatpush1.bf16.msra.mxu0 0
        %3633 = vmatprep.subr.bf16.mxu0 0
        %3634 = vmatpush1.bf16.msra.mxu0 0
        %3635 = vmatprep.subr.bf16.mxu0 0
        %3636 = vmatpush1.bf16.msra.mxu0 0
        %3637 = vmatprep.subr.bf16.mxu0 0
        %3638 = vmatpush1.bf16.msra.mxu0 0
        %3639 = vmatprep.subr.bf16.mxu0 0
        %3640 = vmatpush1.bf16.msra.mxu0 0
        %3641 = vmatprep.subr.bf16.mxu0 0
        %3642 = vmatpush1.bf16.msra.mxu0 0
        %3643 = vmatprep.subr.bf16.mxu0 0
        %3644 = vmatpush1.bf16.msra.mxu0 0
        %3645 = vmatprep.subr.bf16.mxu0 0
        %3646 = vmatpush1.bf16.msra.mxu0 0
        %3647 = vmatprep.subr.bf16.mxu0 0
        %3648 = vmatpush1.bf16.msra.mxu0 0
        %3649 = vmatprep.subr.bf16.mxu0 0
        %3650 = vmatpush1.bf16.msra.mxu0 0
        %3651 = vmatprep.subr.bf16.mxu0 0
        %3652 = vmatpush1.bf16.msra.mxu0 0
        %3653 = vmatprep.mubr.bf16.mxu0 0
        %3654 = vmatmul.mubr.bf16.gmra.mrb[0].mxu0 %v3619
        %v3655 = vpop.f32.mrb[0].mxu0
        %v3656 = vadd.f32 0.0, %v3655
        %v3657 = vpop.f32.mrb[0].mxu0
        %v3658 = vadd.f32 0.0, %v3657
        %v3659 = vpop.f32.mrb[0].mxu0
        %v3660 = vpop.f32.mrb[0].mxu0
        %3661 = vdwg.mxu0
        %v3662 = vpack.c.bf16 %v3656, %v3656
        %v3663 = vpack.c.bf16 %v3658, %v3658
        %s3664 = scalar_lea.vmem [#allocation5], 512
        %v3665 = vld [vmem:[%s3664] sm:$0xff]
        %v3666 = vld [vmem:[%s3664 + $0x8] sm:$0xff]
        %v3667 = vld [vmem:[%s3664 + $0x10] sm:$0xff]
        %v3668 = vld [vmem:[%s3664 + $0x18] sm:$0xff]
        %v3669 = vld [vmem:[%s3664 + $0x20] sm:$0xff]
        %v3670 = vld [vmem:[%s3664 + $0x28] sm:$0xff]
        %v3671 = vld [vmem:[%s3664 + $0x30] sm:$0xff]
        %v3672 = vld [vmem:[%s3664 + $0x38] sm:$0xff]
        %v3673 = vld [vmem:[%s3664 + $0x40] sm:$0xff]
        %v3674 = vld [vmem:[%s3664 + $0x48] sm:$0xff]
        %v3675 = vld [vmem:[%s3664 + $0x50] sm:$0xff]
        %v3676 = vld [vmem:[%s3664 + $0x58] sm:$0xff]
        %v3677 = vld [vmem:[%s3664 + $0x60] sm:$0xff]
        %v3678 = vld [vmem:[%s3664 + $0x68] sm:$0xff]
        %v3679 = vld [vmem:[%s3664 + $0x70] sm:$0xff]
        %v3680 = vld [vmem:[%s3664 + $0x78] sm:$0xff]
        %v3681 = vld [vmem:[%s3664 + $0x80] sm:$0xff]
        %v3682 = vld [vmem:[%s3664 + $0x88] sm:$0xff]
        %v3683 = vld [vmem:[%s3664 + $0x90] sm:$0xff]
        %v3684 = vld [vmem:[%s3664 + $0x98] sm:$0xff]
        %v3685 = vld [vmem:[%s3664 + $0xa0] sm:$0xff]
        %v3686 = vld [vmem:[%s3664 + $0xa8] sm:$0xff]
        %v3687 = vld [vmem:[%s3664 + $0xb0] sm:$0xff]
        %v3688 = vld [vmem:[%s3664 + $0xb8] sm:$0xff]
        %v3689 = vld [vmem:[%s3664 + $0xc0] sm:$0xff]
        %v3690 = vld [vmem:[%s3664 + $0xc8] sm:$0xff]
        %v3691 = vld [vmem:[%s3664 + $0xd0] sm:$0xff]
        %v3692 = vld [vmem:[%s3664 + $0xd8] sm:$0xff]
        %v3693 = vld [vmem:[%s3664 + $0xe0] sm:$0xff]
        %v3694 = vld [vmem:[%s3664 + $0xe8] sm:$0xff]
        %v3695 = vld [vmem:[%s3664 + $0xf0] sm:$0xff]
        %v3696 = vld [vmem:[%s3664 + $0xf8] sm:$0xff]
        %v3729 = vunpack.c.l.b16 %v3665
        %v3730 = vunpack.c.h.b16 %v3665
        %v3731 = vunpack.c.l.b16 %v3666
        %v3732 = vunpack.c.h.b16 %v3666
        %v3733 = vunpack.c.l.b16 %v3667
        %v3734 = vunpack.c.h.b16 %v3667
        %v3735 = vunpack.c.l.b16 %v3668
        %v3736 = vunpack.c.h.b16 %v3668
        %v3737 = vunpack.c.l.b16 %v3669
        %v3738 = vunpack.c.h.b16 %v3669
        %v3739 = vunpack.c.l.b16 %v3670
        %v3740 = vunpack.c.h.b16 %v3670
        %v3741 = vunpack.c.l.b16 %v3671
        %v3742 = vunpack.c.h.b16 %v3671
        %v3743 = vunpack.c.l.b16 %v3672
        %v3744 = vunpack.c.h.b16 %v3672
        %v3745 = vunpack.c.l.b16 %v3673
        %v3746 = vunpack.c.h.b16 %v3673
        %v3747 = vunpack.c.l.b16 %v3674
        %v3748 = vunpack.c.h.b16 %v3674
        %v3749 = vunpack.c.l.b16 %v3675
        %v3750 = vunpack.c.h.b16 %v3675
        %v3751 = vunpack.c.l.b16 %v3676
        %v3752 = vunpack.c.h.b16 %v3676
        %v3753 = vunpack.c.l.b16 %v3677
        %v3754 = vunpack.c.h.b16 %v3677
        %v3755 = vunpack.c.l.b16 %v3678
        %v3756 = vunpack.c.h.b16 %v3678
        %v3757 = vunpack.c.l.b16 %v3679
        %v3758 = vunpack.c.h.b16 %v3679
        %v3759 = vunpack.c.l.b16 %v3680
        %v3760 = vunpack.c.h.b16 %v3680
        %v3761 = vunpack.c.l.b16 %v3681
        %v3762 = vunpack.c.h.b16 %v3681
        %v3763 = vunpack.c.l.b16 %v3682
        %v3764 = vunpack.c.h.b16 %v3682
        %v3765 = vunpack.c.l.b16 %v3683
        %v3766 = vunpack.c.h.b16 %v3683
        %v3767 = vunpack.c.l.b16 %v3684
        %v3768 = vunpack.c.h.b16 %v3684
        %v3769 = vunpack.c.l.b16 %v3685
        %v3770 = vunpack.c.h.b16 %v3685
        %v3771 = vunpack.c.l.b16 %v3686
        %v3772 = vunpack.c.h.b16 %v3686
        %v3773 = vunpack.c.l.b16 %v3687
        %v3774 = vunpack.c.h.b16 %v3687
        %v3775 = vunpack.c.l.b16 %v3688
        %v3776 = vunpack.c.h.b16 %v3688
        %v3777 = vunpack.c.l.b16 %v3689
        %v3778 = vunpack.c.h.b16 %v3689
        %v3779 = vunpack.c.l.b16 %v3690
        %v3780 = vunpack.c.h.b16 %v3690
        %v3781 = vunpack.c.l.b16 %v3691
        %v3782 = vunpack.c.h.b16 %v3691
        %v3783 = vunpack.c.l.b16 %v3692
        %v3784 = vunpack.c.h.b16 %v3692
        %v3785 = vunpack.c.l.b16 %v3693
        %v3786 = vunpack.c.h.b16 %v3693
        %v3787 = vunpack.c.l.b16 %v3694
        %v3788 = vunpack.c.h.b16 %v3694
        %v3789 = vunpack.c.l.b16 %v3695
        %v3790 = vunpack.c.h.b16 %v3695
        %v3791 = vunpack.c.l.b16 %v3696
        %v3792 = vunpack.c.h.b16 %v3696
        %v3793 = vpack.c.b16 %v3731, %v3729
        %v3794 = vpack.c.b16 %v3732, %v3730
        %v3795 = vpack.c.b16 %v3735, %v3733
        %v3796 = vpack.c.b16 %v3736, %v3734
        %v3797 = vpack.c.b16 %v3739, %v3737
        %v3798 = vpack.c.b16 %v3740, %v3738
        %v3799 = vpack.c.b16 %v3743, %v3741
        %v3800 = vpack.c.b16 %v3744, %v3742
        %v3801 = vpack.c.b16 %v3747, %v3745
        %v3802 = vpack.c.b16 %v3748, %v3746
        %v3803 = vpack.c.b16 %v3751, %v3749
        %v3804 = vpack.c.b16 %v3752, %v3750
        %v3805 = vpack.c.b16 %v3755, %v3753
        %v3806 = vpack.c.b16 %v3756, %v3754
        %v3807 = vpack.c.b16 %v3759, %v3757
        %v3808 = vpack.c.b16 %v3760, %v3758
        %v3809 = vpack.c.b16 %v3763, %v3761
        %v3810 = vpack.c.b16 %v3764, %v3762
        %v3811 = vpack.c.b16 %v3767, %v3765
        %v3812 = vpack.c.b16 %v3768, %v3766
        %v3813 = vpack.c.b16 %v3771, %v3769
        %v3814 = vpack.c.b16 %v3772, %v3770
        %v3815 = vpack.c.b16 %v3775, %v3773
        %v3816 = vpack.c.b16 %v3776, %v3774
        %v3817 = vpack.c.b16 %v3779, %v3777
        %v3818 = vpack.c.b16 %v3780, %v3778
        %v3819 = vpack.c.b16 %v3783, %v3781
        %v3820 = vpack.c.b16 %v3784, %v3782
        %v3821 = vpack.c.b16 %v3787, %v3785
        %v3822 = vpack.c.b16 %v3788, %v3786
        %v3823 = vpack.c.b16 %v3791, %v3789
        %v3824 = vpack.c.b16 %v3792, %v3790
        %3857 = vmatprep.subr.bf16.mxu0 %v3794
        %3858 = vmatpush1.bf16.msra.mxu0 %v3793
        %3859 = vmatprep.subr.bf16.mxu0 %v3796
        %3860 = vmatpush1.bf16.msra.mxu0 %v3795
        %3861 = vmatprep.subr.bf16.mxu0 %v3798
        %3862 = vmatpush1.bf16.msra.mxu0 %v3797
        %3863 = vmatprep.subr.bf16.mxu0 %v3800
        %3864 = vmatpush1.bf16.msra.mxu0 %v3799
        %3865 = vmatprep.subr.bf16.mxu0 %v3802
        %3866 = vmatpush1.bf16.msra.mxu0 %v3801
        %3867 = vmatprep.subr.bf16.mxu0 %v3804
        %3868 = vmatpush1.bf16.msra.mxu0 %v3803
        %3869 = vmatprep.subr.bf16.mxu0 %v3806
        %3870 = vmatpush1.bf16.msra.mxu0 %v3805
        %3871 = vmatprep.subr.bf16.mxu0 %v3808
        %3872 = vmatpush1.bf16.msra.mxu0 %v3807
        %3873 = vmatprep.subr.bf16.mxu0 %v3810
        %3874 = vmatpush1.bf16.msra.mxu0 %v3809
        %3875 = vmatprep.subr.bf16.mxu0 %v3812
        %3876 = vmatpush1.bf16.msra.mxu0 %v3811
        %3877 = vmatprep.subr.bf16.mxu0 %v3814
        %3878 = vmatpush1.bf16.msra.mxu0 %v3813
        %3879 = vmatprep.subr.bf16.mxu0 %v3816
        %3880 = vmatpush1.bf16.msra.mxu0 %v3815
        %3881 = vmatprep.subr.bf16.mxu0 %v3818
        %3882 = vmatpush1.bf16.msra.mxu0 %v3817
        %3883 = vmatprep.subr.bf16.mxu0 %v3820
        %3884 = vmatpush1.bf16.msra.mxu0 %v3819
        %3885 = vmatprep.subr.bf16.mxu0 %v3822
        %3886 = vmatpush1.bf16.msra.mxu0 %v3821
        %3887 = vmatprep.subr.bf16.mxu0 %v3824
        %3888 = vmatpush1.bf16.msra.mxu0 %v3823
        %3889 = vmatprep.mubr.bf16.mxu0 %v3663
        %3890 = vmatmul.mubr.bf16.gmra.mrb[0].mxu0 %v3662
        %v3891 = vpop.f32.mrb[0].mxu0
        %v3892 = vadd.f32 0.0, %v3891
        %v3893 = vpop.f32.mrb[0].mxu0
        %v3894 = vadd.f32 0.0, %v3893
        %v3895 = vpop.f32.mrb[0].mxu0
        %v3896 = vpop.f32.mrb[0].mxu0
        %3897 = vdwg.mxu0
        %v3898 = vadd.f32 %v3610, %v3892
        %v3899 = vadd.f32 %v3612, %v3894
        %s3900 = scalar_lea.vmem %s3, 12
        %v3901 = vld [vmem:[%s3900] sm:$0xf]
        %v3903 = vsel %vm3054, %v3901, 0
        %3905 = vmatprep.subr.bf16.mxu0 %v3052
        %3906 = vmatpush1.bf16.msra.mxu0 %v3051
        %3907 = vmatprep.subr.bf16.mxu0 0
        %3908 = vmatpush1.bf16.msra.mxu0 0
        %3909 = vmatprep.subr.bf16.mxu0 0
        %3910 = vmatpush1.bf16.msra.mxu0 0
        %3911 = vmatprep.subr.bf16.mxu0 0
        %3912 = vmatpush1.bf16.msra.mxu0 0
        %3913 = vmatprep.subr.bf16.mxu0 0
        %3914 = vmatpush1.bf16.msra.mxu0 0
        %3915 = vmatprep.subr.bf16.mxu0 0
        %3916 = vmatpush1.bf16.msra.mxu0 0
        %3917 = vmatprep.subr.bf16.mxu0 0
        %3918 = vmatpush1.bf16.msra.mxu0 0
        %3919 = vmatprep.subr.bf16.mxu0 0
        %3920 = vmatpush1.bf16.msra.mxu0 0
        %3921 = vmatprep.subr.bf16.mxu0 0
        %3922 = vmatpush1.bf16.msra.mxu0 0
        %3923 = vmatprep.subr.bf16.mxu0 0
        %3924 = vmatpush1.bf16.msra.mxu0 0
        %3925 = vmatprep.subr.bf16.mxu0 0
        %3926 = vmatpush1.bf16.msra.mxu0 0
        %3927 = vmatprep.subr.bf16.mxu0 0
        %3928 = vmatpush1.bf16.msra.mxu0 0
        %3929 = vmatprep.subr.bf16.mxu0 0
        %3930 = vmatpush1.bf16.msra.mxu0 0
        %3931 = vmatprep.subr.bf16.mxu0 0
        %3932 = vmatpush1.bf16.msra.mxu0 0
        %3933 = vmatprep.subr.bf16.mxu0 0
        %3934 = vmatpush1.bf16.msra.mxu0 0
        %3935 = vmatprep.subr.bf16.mxu0 0
        %3936 = vmatpush1.bf16.msra.mxu0 0
        %3937 = vmatprep.mubr.bf16.mxu0 0
        %3938 = vmatmul.mubr.bf16.gmra.mrb[0].mxu0 %v3903
        %v3939 = vpop.f32.mrb[0].mxu0
        %v3940 = vadd.f32 0.0, %v3939
        %v3941 = vpop.f32.mrb[0].mxu0
        %v3942 = vadd.f32 0.0, %v3941
        %v3943 = vpop.f32.mrb[0].mxu0
        %v3944 = vpop.f32.mrb[0].mxu0
        %3945 = vdwg.mxu0
        %v3946 = vpack.c.bf16 %v3940, %v3940
        %v3947 = vpack.c.bf16 %v3942, %v3942
        %s3948 = scalar_lea.vmem [#allocation5], 768
        %v3949 = vld [vmem:[%s3948] sm:$0xff]
        %v3950 = vld [vmem:[%s3948 + $0x8] sm:$0xff]
        %v3951 = vld [vmem:[%s3948 + $0x10] sm:$0xff]
        %v3952 = vld [vmem:[%s3948 + $0x18] sm:$0xff]
        %v3953 = vld [vmem:[%s3948 + $0x20] sm:$0xff]
        %v3954 = vld [vmem:[%s3948 + $0x28] sm:$0xff]
        %v3955 = vld [vmem:[%s3948 + $0x30] sm:$0xff]
        %v3956 = vld [vmem:[%s3948 + $0x38] sm:$0xff]
        %v3957 = vld [vmem:[%s3948 + $0x40] sm:$0xff]
        %v3958 = vld [vmem:[%s3948 + $0x48] sm:$0xff]
        %v3959 = vld [vmem:[%s3948 + $0x50] sm:$0xff]
        %v3960 = vld [vmem:[%s3948 + $0x58] sm:$0xff]
        %v3961 = vld [vmem:[%s3948 + $0x60] sm:$0xff]
        %v3962 = vld [vmem:[%s3948 + $0x68] sm:$0xff]
        %v3963 = vld [vmem:[%s3948 + $0x70] sm:$0xff]
        %v3964 = vld [vmem:[%s3948 + $0x78] sm:$0xff]
        %v3965 = vld [vmem:[%s3948 + $0x80] sm:$0xff]
        %v3966 = vld [vmem:[%s3948 + $0x88] sm:$0xff]
        %v3967 = vld [vmem:[%s3948 + $0x90] sm:$0xff]
        %v3968 = vld [vmem:[%s3948 + $0x98] sm:$0xff]
        %v3969 = vld [vmem:[%s3948 + $0xa0] sm:$0xff]
        %v3970 = vld [vmem:[%s3948 + $0xa8] sm:$0xff]
        %v3971 = vld [vmem:[%s3948 + $0xb0] sm:$0xff]
        %v3972 = vld [vmem:[%s3948 + $0xb8] sm:$0xff]
        %v3973 = vld [vmem:[%s3948 + $0xc0] sm:$0xff]
        %v3974 = vld [vmem:[%s3948 + $0xc8] sm:$0xff]
        %v3975 = vld [vmem:[%s3948 + $0xd0] sm:$0xff]
        %v3976 = vld [vmem:[%s3948 + $0xd8] sm:$0xff]
        %v3977 = vld [vmem:[%s3948 + $0xe0] sm:$0xff]
        %v3978 = vld [vmem:[%s3948 + $0xe8] sm:$0xff]
        %v3979 = vld [vmem:[%s3948 + $0xf0] sm:$0xff]
        %v3980 = vld [vmem:[%s3948 + $0xf8] sm:$0xff]
        %v4013 = vunpack.c.l.b16 %v3949
        %v4014 = vunpack.c.h.b16 %v3949
        %v4015 = vunpack.c.l.b16 %v3950
        %v4016 = vunpack.c.h.b16 %v3950
        %v4017 = vunpack.c.l.b16 %v3951
        %v4018 = vunpack.c.h.b16 %v3951
        %v4019 = vunpack.c.l.b16 %v3952
        %v4020 = vunpack.c.h.b16 %v3952
        %v4021 = vunpack.c.l.b16 %v3953
        %v4022 = vunpack.c.h.b16 %v3953
        %v4023 = vunpack.c.l.b16 %v3954
        %v4024 = vunpack.c.h.b16 %v3954
        %v4025 = vunpack.c.l.b16 %v3955
        %v4026 = vunpack.c.h.b16 %v3955
        %v4027 = vunpack.c.l.b16 %v3956
        %v4028 = vunpack.c.h.b16 %v3956
        %v4029 = vunpack.c.l.b16 %v3957
        %v4030 = vunpack.c.h.b16 %v3957
        %v4031 = vunpack.c.l.b16 %v3958
        %v4032 = vunpack.c.h.b16 %v3958
        %v4033 = vunpack.c.l.b16 %v3959
        %v4034 = vunpack.c.h.b16 %v3959
        %v4035 = vunpack.c.l.b16 %v3960
        %v4036 = vunpack.c.h.b16 %v3960
        %v4037 = vunpack.c.l.b16 %v3961
        %v4038 = vunpack.c.h.b16 %v3961
        %v4039 = vunpack.c.l.b16 %v3962
        %v4040 = vunpack.c.h.b16 %v3962
        %v4041 = vunpack.c.l.b16 %v3963
        %v4042 = vunpack.c.h.b16 %v3963
        %v4043 = vunpack.c.l.b16 %v3964
        %v4044 = vunpack.c.h.b16 %v3964
        %v4045 = vunpack.c.l.b16 %v3965
        %v4046 = vunpack.c.h.b16 %v3965
        %v4047 = vunpack.c.l.b16 %v3966
        %v4048 = vunpack.c.h.b16 %v3966
        %v4049 = vunpack.c.l.b16 %v3967
        %v4050 = vunpack.c.h.b16 %v3967
        %v4051 = vunpack.c.l.b16 %v3968
        %v4052 = vunpack.c.h.b16 %v3968
        %v4053 = vunpack.c.l.b16 %v3969
        %v4054 = vunpack.c.h.b16 %v3969
        %v4055 = vunpack.c.l.b16 %v3970
        %v4056 = vunpack.c.h.b16 %v3970
        %v4057 = vunpack.c.l.b16 %v3971
        %v4058 = vunpack.c.h.b16 %v3971
        %v4059 = vunpack.c.l.b16 %v3972
        %v4060 = vunpack.c.h.b16 %v3972
        %v4061 = vunpack.c.l.b16 %v3973
        %v4062 = vunpack.c.h.b16 %v3973
        %v4063 = vunpack.c.l.b16 %v3974
        %v4064 = vunpack.c.h.b16 %v3974
        %v4065 = vunpack.c.l.b16 %v3975
        %v4066 = vunpack.c.h.b16 %v3975
        %v4067 = vunpack.c.l.b16 %v3976
        %v4068 = vunpack.c.h.b16 %v3976
        %v4069 = vunpack.c.l.b16 %v3977
        %v4070 = vunpack.c.h.b16 %v3977
        %v4071 = vunpack.c.l.b16 %v3978
        %v4072 = vunpack.c.h.b16 %v3978
        %v4073 = vunpack.c.l.b16 %v3979
        %v4074 = vunpack.c.h.b16 %v3979
        %v4075 = vunpack.c.l.b16 %v3980
        %v4076 = vunpack.c.h.b16 %v3980
        %v4077 = vpack.c.b16 %v4015, %v4013
        %v4078 = vpack.c.b16 %v4016, %v4014
        %v4079 = vpack.c.b16 %v4019, %v4017
        %v4080 = vpack.c.b16 %v4020, %v4018
        %v4081 = vpack.c.b16 %v4023, %v4021
        %v4082 = vpack.c.b16 %v4024, %v4022
        %v4083 = vpack.c.b16 %v4027, %v4025
        %v4084 = vpack.c.b16 %v4028, %v4026
        %v4085 = vpack.c.b16 %v4031, %v4029
        %v4086 = vpack.c.b16 %v4032, %v4030
        %v4087 = vpack.c.b16 %v4035, %v4033
        %v4088 = vpack.c.b16 %v4036, %v4034
        %v4089 = vpack.c.b16 %v4039, %v4037
        %v4090 = vpack.c.b16 %v4040, %v4038
        %v4091 = vpack.c.b16 %v4043, %v4041
        %v4092 = vpack.c.b16 %v4044, %v4042
        %v4093 = vpack.c.b16 %v4047, %v4045
        %v4094 = vpack.c.b16 %v4048, %v4046
        %v4095 = vpack.c.b16 %v4051, %v4049
        %v4096 = vpack.c.b16 %v4052, %v4050
        %v4097 = vpack.c.b16 %v4055, %v4053
        %v4098 = vpack.c.b16 %v4056, %v4054
        %v4099 = vpack.c.b16 %v4059, %v4057
        %v4100 = vpack.c.b16 %v4060, %v4058
        %v4101 = vpack.c.b16 %v4063, %v4061
        %v4102 = vpack.c.b16 %v4064, %v4062
        %v4103 = vpack.c.b16 %v4067, %v4065
        %v4104 = vpack.c.b16 %v4068, %v4066
        %v4105 = vpack.c.b16 %v4071, %v4069
        %v4106 = vpack.c.b16 %v4072, %v4070
        %v4107 = vpack.c.b16 %v4075, %v4073
        %v4108 = vpack.c.b16 %v4076, %v4074
        %4141 = vmatprep.subr.bf16.mxu0 %v4078
        %4142 = vmatpush1.bf16.msra.mxu0 %v4077
        %4143 = vmatprep.subr.bf16.mxu0 %v4080
        %4144 = vmatpush1.bf16.msra.mxu0 %v4079
        %4145 = vmatprep.subr.bf16.mxu0 %v4082
        %4146 = vmatpush1.bf16.msra.mxu0 %v4081
        %4147 = vmatprep.subr.bf16.mxu0 %v4084
        %4148 = vmatpush1.bf16.msra.mxu0 %v4083
        %4149 = vmatprep.subr.bf16.mxu0 %v4086
        %4150 = vmatpush1.bf16.msra.mxu0 %v4085
        %4151 = vmatprep.subr.bf16.mxu0 %v4088
        %4152 = vmatpush1.bf16.msra.mxu0 %v4087
        %4153 = vmatprep.subr.bf16.mxu0 %v4090
        %4154 = vmatpush1.bf16.msra.mxu0 %v4089
        %4155 = vmatprep.subr.bf16.mxu0 %v4092
        %4156 = vmatpush1.bf16.msra.mxu0 %v4091
        %4157 = vmatprep.subr.bf16.mxu0 %v4094
        %4158 = vmatpush1.bf16.msra.mxu0 %v4093
        %4159 = vmatprep.subr.bf16.mxu0 %v4096
        %4160 = vmatpush1.bf16.msra.mxu0 %v4095
        %4161 = vmatprep.subr.bf16.mxu0 %v4098
        %4162 = vmatpush1.bf16.msra.mxu0 %v4097
        %4163 = vmatprep.subr.bf16.mxu0 %v4100
        %4164 = vmatpush1.bf16.msra.mxu0 %v4099
        %4165 = vmatprep.subr.bf16.mxu0 %v4102
        %4166 = vmatpush1.bf16.msra.mxu0 %v4101
        %4167 = vmatprep.subr.bf16.mxu0 %v4104
        %4168 = vmatpush1.bf16.msra.mxu0 %v4103
        %4169 = vmatprep.subr.bf16.mxu0 %v4106
        %4170 = vmatpush1.bf16.msra.mxu0 %v4105
        %4171 = vmatprep.subr.bf16.mxu0 %v4108
        %4172 = vmatpush1.bf16.msra.mxu0 %v4107
        %4173 = vmatprep.mubr.bf16.mxu0 %v3947
        %4174 = vmatmul.mubr.bf16.gmra.mrb[0].mxu0 %v3946
        %v4175 = vpop.f32.mrb[0].mxu0
        %v4176 = vadd.f32 0.0, %v4175
        %v4177 = vpop.f32.mrb[0].mxu0
        %v4178 = vadd.f32 0.0, %v4177
        %v4179 = vpop.f32.mrb[0].mxu0
        %v4180 = vpop.f32.mrb[0].mxu0
        %4181 = vdwg.mxu0
        %v4182 = vadd.f32 %v3898, %v4176
        %v4183 = vadd.f32 %v3899, %v4178
        %vm4184 = vcmp.gt.f32.partialorder %v4182, 0.0
        %vm4185 = vcmp.gt.f32.partialorder %v4183, 0.0
        %v4186 = vmul.f32 %v4182, 0.2
        %v4187 = vmul.f32 %v4183, 0.2
        %v4188 = vsel %vm4184, %v4182, %v4186
        %v4189 = vsel %vm4185, %v4183, %v4187
        %v4190 = vpack.c.bf16 %v4188, %v4188
        %v4191 = vpack.c.bf16 %v4189, %v4189
        %v4192 = vld [vmem:[%s4] sm:$0x3]
        %vm4193 = vcmask 64512
        %v4195 = vsel %vm4193, %v4192, 0
        %vm4197 = vcmask 1043456
        %v4199 = vsel %vm4197, %v4190, 0
        %v4202 = vsel %vm4197, %v4191, 0
        %4204 = vmatprep.subr.bf16.mxu0 %v4202
        %4205 = vmatpush1.bf16.msra.mxu0 %v4199
        %4206 = vmatprep.subr.bf16.mxu0 0
        %4207 = vmatpush1.bf16.msra.mxu0 0
        %4208 = vmatprep.subr.bf16.mxu0 0
        %4209 = vmatpush1.bf16.msra.mxu0 0
        %4210 = vmatprep.subr.bf16.mxu0 0
        %4211 = vmatpush1.bf16.msra.mxu0 0
        %4212 = vmatprep.subr.bf16.mxu0 0
        %4213 = vmatpush1.bf16.msra.mxu0 0
        %4214 = vmatprep.subr.bf16.mxu0 0
        %4215 = vmatpush1.bf16.msra.mxu0 0
        %4216 = vmatprep.subr.bf16.mxu0 0
        %4217 = vmatpush1.bf16.msra.mxu0 0
        %4218 = vmatprep.subr.bf16.mxu0 0
        %4219 = vmatpush1.bf16.msra.mxu0 0
        %4220 = vmatprep.subr.bf16.mxu0 0
        %4221 = vmatpush1.bf16.msra.mxu0 0
        %4222 = vmatprep.subr.bf16.mxu0 0
        %4223 = vmatpush1.bf16.msra.mxu0 0
        %4224 = vmatprep.subr.bf16.mxu0 0
        %4225 = vmatpush1.bf16.msra.mxu0 0
        %4226 = vmatprep.subr.bf16.mxu0 0
        %4227 = vmatpush1.bf16.msra.mxu0 0
        %4228 = vmatprep.subr.bf16.mxu0 0
        %4229 = vmatpush1.bf16.msra.mxu0 0
        %4230 = vmatprep.subr.bf16.mxu0 0
        %4231 = vmatpush1.bf16.msra.mxu0 0
        %4232 = vmatprep.subr.bf16.mxu0 0
        %4233 = vmatpush1.bf16.msra.mxu0 0
        %4234 = vmatprep.subr.bf16.mxu0 0
        %4235 = vmatpush1.bf16.msra.mxu0 0
        %4236 = vmatprep.mubr.bf16.mxu0 0
        %4237 = vmatmul.mubr.bf16.gmra.mrb[0].mxu0 %v4195
        %v4238 = vpop.f32.mrb[0].mxu0
        %v4239 = vadd.f32 0.0, %v4238
        %v4240 = vpop.f32.mrb[0].mxu0
        %v4241 = vadd.f32 0.0, %v4240
        %v4242 = vpop.f32.mrb[0].mxu0
        %v4243 = vpop.f32.mrb[0].mxu0
        %4244 = vdwg.mxu0
        %v4245 = vpack.c.bf16 %v4239, %v4239
        %v4246 = vpack.c.bf16 %v4241, %v4241
        %v4247 = vld [vmem:[#allocation7] sm:$0xff]
        %v4248 = vld [vmem:[#allocation7 + $0x8] sm:$0xff]
        %v4249 = vld [vmem:[#allocation7 + $0x10] sm:$0xff]
        %v4250 = vld [vmem:[#allocation7 + $0x18] sm:$0xff]
        %v4251 = vld [vmem:[#allocation7 + $0x20] sm:$0xff]
        %v4252 = vld [vmem:[#allocation7 + $0x28] sm:$0xff]
        %v4253 = vld [vmem:[#allocation7 + $0x30] sm:$0xff]
        %v4254 = vld [vmem:[#allocation7 + $0x38] sm:$0xff]
        %v4255 = vld [vmem:[#allocation7 + $0x40] sm:$0xff]
        %v4256 = vld [vmem:[#allocation7 + $0x48] sm:$0xff]
        %v4257 = vld [vmem:[#allocation7 + $0x50] sm:$0xff]
        %v4258 = vld [vmem:[#allocation7 + $0x58] sm:$0xff]
        %v4259 = vld [vmem:[#allocation7 + $0x60] sm:$0xff]
        %v4260 = vld [vmem:[#allocation7 + $0x68] sm:$0xff]
        %v4261 = vld [vmem:[#allocation7 + $0x70] sm:$0xff]
        %v4262 = vld [vmem:[#allocation7 + $0x78] sm:$0xff]
        %v4263 = vld [vmem:[#allocation7 + $0x80] sm:$0xff]
        %v4264 = vld [vmem:[#allocation7 + $0x88] sm:$0xff]
        %v4265 = vld [vmem:[#allocation7 + $0x90] sm:$0xff]
        %v4266 = vld [vmem:[#allocation7 + $0x98] sm:$0xff]
        %v4267 = vld [vmem:[#allocation7 + $0xa0] sm:$0xff]
        %v4268 = vld [vmem:[#allocation7 + $0xa8] sm:$0xff]
        %v4269 = vld [vmem:[#allocation7 + $0xb0] sm:$0xff]
        %v4270 = vld [vmem:[#allocation7 + $0xb8] sm:$0xff]
        %v4271 = vld [vmem:[#allocation7 + $0xc0] sm:$0xff]
        %v4272 = vld [vmem:[#allocation7 + $0xc8] sm:$0xff]
        %v4273 = vld [vmem:[#allocation7 + $0xd0] sm:$0xff]
        %v4274 = vld [vmem:[#allocation7 + $0xd8] sm:$0xff]
        %v4275 = vld [vmem:[#allocation7 + $0xe0] sm:$0xff]
        %v4276 = vld [vmem:[#allocation7 + $0xe8] sm:$0xff]
        %v4277 = vld [vmem:[#allocation7 + $0xf0] sm:$0xff]
        %v4278 = vld [vmem:[#allocation7 + $0xf8] sm:$0xff]
        %s4279 = scalar_lea.vmem %s4, 2
        %v4280 = vld [vmem:[%s4279] sm:$0x3]
        %v4282 = vsel %vm4193, %v4280, 0
        %4284 = vmatprep.subr.bf16.mxu0 %v4202
        %4285 = vmatpush1.bf16.msra.mxu0 %v4199
        %4286 = vmatprep.subr.bf16.mxu0 0
        %4287 = vmatpush1.bf16.msra.mxu0 0
        %4288 = vmatprep.subr.bf16.mxu0 0
        %4289 = vmatpush1.bf16.msra.mxu0 0
        %4290 = vmatprep.subr.bf16.mxu0 0
        %4291 = vmatpush1.bf16.msra.mxu0 0
        %4292 = vmatprep.subr.bf16.mxu0 0
        %4293 = vmatpush1.bf16.msra.mxu0 0
        %4294 = vmatprep.subr.bf16.mxu0 0
        %4295 = vmatpush1.bf16.msra.mxu0 0
        %4296 = vmatprep.subr.bf16.mxu0 0
        %4297 = vmatpush1.bf16.msra.mxu0 0
        %4298 = vmatprep.subr.bf16.mxu0 0
        %4299 = vmatpush1.bf16.msra.mxu0 0
        %4300 = vmatprep.subr.bf16.mxu0 0
        %4301 = vmatpush1.bf16.msra.mxu0 0
        %4302 = vmatprep.subr.bf16.mxu0 0
        %4303 = vmatpush1.bf16.msra.mxu0 0
        %4304 = vmatprep.subr.bf16.mxu0 0
        %4305 = vmatpush1.bf16.msra.mxu0 0
        %4306 = vmatprep.subr.bf16.mxu0 0
        %4307 = vmatpush1.bf16.msra.mxu0 0
        %4308 = vmatprep.subr.bf16.mxu0 0
        %4309 = vmatpush1.bf16.msra.mxu0 0
        %4310 = vmatprep.subr.bf16.mxu0 0
        %4311 = vmatpush1.bf16.msra.mxu0 0
        %4312 = vmatprep.subr.bf16.mxu0 0
        %4313 = vmatpush1.bf16.msra.mxu0 0
        %4314 = vmatprep.subr.bf16.mxu0 0
        %4315 = vmatpush1.bf16.msra.mxu0 0
        %4316 = vmatprep.mubr.bf16.mxu0 0
        %4317 = vmatmul.mubr.bf16.gmra.mrb[0].mxu0 %v4282
        %v4318 = vpop.f32.mrb[0].mxu0
        %v4319 = vadd.f32 0.0, %v4318
        %v4320 = vpop.f32.mrb[0].mxu0
        %v4321 = vadd.f32 0.0, %v4320
        %v4322 = vpop.f32.mrb[0].mxu0
        %v4323 = vpop.f32.mrb[0].mxu0
        %4324 = vdwg.mxu0
        %v4325 = vpack.c.bf16 %v4319, %v4319
        %v4326 = vpack.c.bf16 %v4321, %v4321
        %s4327 = scalar_lea.vmem [#allocation7], 256
        %v4328 = vld [vmem:[%s4327] sm:$0xff]
        %v4329 = vld [vmem:[%s4327 + $0x8] sm:$0xff]
        %v4330 = vld [vmem:[%s4327 + $0x10] sm:$0xff]
        %v4331 = vld [vmem:[%s4327 + $0x18] sm:$0xff]
        %v4332 = vld [vmem:[%s4327 + $0x20] sm:$0xff]
        %v4333 = vld [vmem:[%s4327 + $0x28] sm:$0xff]
        %v4334 = vld [vmem:[%s4327 + $0x30] sm:$0xff]
        %v4335 = vld [vmem:[%s4327 + $0x38] sm:$0xff]
        %v4336 = vld [vmem:[%s4327 + $0x40] sm:$0xff]
        %v4337 = vld [vmem:[%s4327 + $0x48] sm:$0xff]
        %v4338 = vld [vmem:[%s4327 + $0x50] sm:$0xff]
        %v4339 = vld [vmem:[%s4327 + $0x58] sm:$0xff]
        %v4340 = vld [vmem:[%s4327 + $0x60] sm:$0xff]
        %v4341 = vld [vmem:[%s4327 + $0x68] sm:$0xff]
        %v4342 = vld [vmem:[%s4327 + $0x70] sm:$0xff]
        %v4343 = vld [vmem:[%s4327 + $0x78] sm:$0xff]
        %v4344 = vld [vmem:[%s4327 + $0x80] sm:$0xff]
        %v4345 = vld [vmem:[%s4327 + $0x88] sm:$0xff]
        %v4346 = vld [vmem:[%s4327 + $0x90] sm:$0xff]
        %v4347 = vld [vmem:[%s4327 + $0x98] sm:$0xff]
        %v4348 = vld [vmem:[%s4327 + $0xa0] sm:$0xff]
        %v4349 = vld [vmem:[%s4327 + $0xa8] sm:$0xff]
        %v4350 = vld [vmem:[%s4327 + $0xb0] sm:$0xff]
        %v4351 = vld [vmem:[%s4327 + $0xb8] sm:$0xff]
        %v4352 = vld [vmem:[%s4327 + $0xc0] sm:$0xff]
        %v4353 = vld [vmem:[%s4327 + $0xc8] sm:$0xff]
        %v4354 = vld [vmem:[%s4327 + $0xd0] sm:$0xff]
        %v4355 = vld [vmem:[%s4327 + $0xd8] sm:$0xff]
        %v4356 = vld [vmem:[%s4327 + $0xe0] sm:$0xff]
        %v4357 = vld [vmem:[%s4327 + $0xe8] sm:$0xff]
        %v4358 = vld [vmem:[%s4327 + $0xf0] sm:$0xff]
        %v4359 = vld [vmem:[%s4327 + $0xf8] sm:$0xff]
        %v4392 = vunpack.c.l.b16 %v4328
        %v4393 = vunpack.c.h.b16 %v4328
        %v4394 = vunpack.c.l.b16 %v4329
        %v4395 = vunpack.c.h.b16 %v4329
        %v4396 = vunpack.c.l.b16 %v4330
        %v4397 = vunpack.c.h.b16 %v4330
        %v4398 = vunpack.c.l.b16 %v4331
        %v4399 = vunpack.c.h.b16 %v4331
        %v4400 = vunpack.c.l.b16 %v4332
        %v4401 = vunpack.c.h.b16 %v4332
        %v4402 = vunpack.c.l.b16 %v4333
        %v4403 = vunpack.c.h.b16 %v4333
        %v4404 = vunpack.c.l.b16 %v4334
        %v4405 = vunpack.c.h.b16 %v4334
        %v4406 = vunpack.c.l.b16 %v4335
        %v4407 = vunpack.c.h.b16 %v4335
        %v4408 = vunpack.c.l.b16 %v4336
        %v4409 = vunpack.c.h.b16 %v4336
        %v4410 = vunpack.c.l.b16 %v4337
        %v4411 = vunpack.c.h.b16 %v4337
        %v4412 = vunpack.c.l.b16 %v4338
        %v4413 = vunpack.c.h.b16 %v4338
        %v4414 = vunpack.c.l.b16 %v4339
        %v4415 = vunpack.c.h.b16 %v4339
        %v4416 = vunpack.c.l.b16 %v4340
        %v4417 = vunpack.c.h.b16 %v4340
        %v4418 = vunpack.c.l.b16 %v4341
        %v4419 = vunpack.c.h.b16 %v4341
        %v4420 = vunpack.c.l.b16 %v4342
        %v4421 = vunpack.c.h.b16 %v4342
        %v4422 = vunpack.c.l.b16 %v4343
        %v4423 = vunpack.c.h.b16 %v4343
        %v4424 = vunpack.c.l.b16 %v4344
        %v4425 = vunpack.c.h.b16 %v4344
        %v4426 = vunpack.c.l.b16 %v4345
        %v4427 = vunpack.c.h.b16 %v4345
        %v4428 = vunpack.c.l.b16 %v4346
        %v4429 = vunpack.c.h.b16 %v4346
        %v4430 = vunpack.c.l.b16 %v4347
        %v4431 = vunpack.c.h.b16 %v4347
        %v4432 = vunpack.c.l.b16 %v4348
        %v4433 = vunpack.c.h.b16 %v4348
        %v4434 = vunpack.c.l.b16 %v4349
        %v4435 = vunpack.c.h.b16 %v4349
        %v4436 = vunpack.c.l.b16 %v4350
        %v4437 = vunpack.c.h.b16 %v4350
        %v4438 = vunpack.c.l.b16 %v4351
        %v4439 = vunpack.c.h.b16 %v4351
        %v4440 = vunpack.c.l.b16 %v4352
        %v4441 = vunpack.c.h.b16 %v4352
        %v4442 = vunpack.c.l.b16 %v4353
        %v4443 = vunpack.c.h.b16 %v4353
        %v4444 = vunpack.c.l.b16 %v4354
        %v4445 = vunpack.c.h.b16 %v4354
        %v4446 = vunpack.c.l.b16 %v4355
        %v4447 = vunpack.c.h.b16 %v4355
        %v4448 = vunpack.c.l.b16 %v4356
        %v4449 = vunpack.c.h.b16 %v4356
        %v4450 = vunpack.c.l.b16 %v4357
        %v4451 = vunpack.c.h.b16 %v4357
        %v4452 = vunpack.c.l.b16 %v4358
        %v4453 = vunpack.c.h.b16 %v4358
        %v4454 = vunpack.c.l.b16 %v4359
        %v4455 = vunpack.c.h.b16 %v4359
        %v4456 = vpack.c.b16 %v4394, %v4392
        %v4457 = vpack.c.b16 %v4395, %v4393
        %v4458 = vpack.c.b16 %v4398, %v4396
        %v4459 = vpack.c.b16 %v4399, %v4397
        %v4460 = vpack.c.b16 %v4402, %v4400
        %v4461 = vpack.c.b16 %v4403, %v4401
        %v4462 = vpack.c.b16 %v4406, %v4404
        %v4463 = vpack.c.b16 %v4407, %v4405
        %v4464 = vpack.c.b16 %v4410, %v4408
        %v4465 = vpack.c.b16 %v4411, %v4409
        %v4466 = vpack.c.b16 %v4414, %v4412
        %v4467 = vpack.c.b16 %v4415, %v4413
        %v4468 = vpack.c.b16 %v4418, %v4416
        %v4469 = vpack.c.b16 %v4419, %v4417
        %v4470 = vpack.c.b16 %v4422, %v4420
        %v4471 = vpack.c.b16 %v4423, %v4421
        %v4472 = vpack.c.b16 %v4426, %v4424
        %v4473 = vpack.c.b16 %v4427, %v4425
        %v4474 = vpack.c.b16 %v4430, %v4428
        %v4475 = vpack.c.b16 %v4431, %v4429
        %v4476 = vpack.c.b16 %v4434, %v4432
        %v4477 = vpack.c.b16 %v4435, %v4433
        %v4478 = vpack.c.b16 %v4438, %v4436
        %v4479 = vpack.c.b16 %v4439, %v4437
        %v4480 = vpack.c.b16 %v4442, %v4440
        %v4481 = vpack.c.b16 %v4443, %v4441
        %v4482 = vpack.c.b16 %v4446, %v4444
        %v4483 = vpack.c.b16 %v4447, %v4445
        %v4484 = vpack.c.b16 %v4450, %v4448
        %v4485 = vpack.c.b16 %v4451, %v4449
        %v4486 = vpack.c.b16 %v4454, %v4452
        %v4487 = vpack.c.b16 %v4455, %v4453
        %4520 = vmatprep.subr.bf16.mxu0 %v4457
        %4521 = vmatpush1.bf16.msra.mxu0 %v4456
        %4522 = vmatprep.subr.bf16.mxu0 %v4459
        %4523 = vmatpush1.bf16.msra.mxu0 %v4458
        %4524 = vmatprep.subr.bf16.mxu0 %v4461
        %4525 = vmatpush1.bf16.msra.mxu0 %v4460
        %4526 = vmatprep.subr.bf16.mxu0 %v4463
        %4527 = vmatpush1.bf16.msra.mxu0 %v4462
        %4528 = vmatprep.subr.bf16.mxu0 %v4465
        %4529 = vmatpush1.bf16.msra.mxu0 %v4464
        %4530 = vmatprep.subr.bf16.mxu0 %v4467
        %4531 = vmatpush1.bf16.msra.mxu0 %v4466
        %4532 = vmatprep.subr.bf16.mxu0 %v4469
        %4533 = vmatpush1.bf16.msra.mxu0 %v4468
        %4534 = vmatprep.subr.bf16.mxu0 %v4471
        %4535 = vmatpush1.bf16.msra.mxu0 %v4470
        %4536 = vmatprep.subr.bf16.mxu0 %v4473
        %4537 = vmatpush1.bf16.msra.mxu0 %v4472
        %4538 = vmatprep.subr.bf16.mxu0 %v4475
        %4539 = vmatpush1.bf16.msra.mxu0 %v4474
        %4540 = vmatprep.subr.bf16.mxu0 %v4477
        %4541 = vmatpush1.bf16.msra.mxu0 %v4476
        %4542 = vmatprep.subr.bf16.mxu0 %v4479
        %4543 = vmatpush1.bf16.msra.mxu0 %v4478
        %4544 = vmatprep.subr.bf16.mxu0 %v4481
        %4545 = vmatpush1.bf16.msra.mxu0 %v4480
        %4546 = vmatprep.subr.bf16.mxu0 %v4483
        %4547 = vmatpush1.bf16.msra.mxu0 %v4482
        %4548 = vmatprep.subr.bf16.mxu0 %v4485
        %4549 = vmatpush1.bf16.msra.mxu0 %v4484
        %4550 = vmatprep.subr.bf16.mxu0 %v4487
        %4551 = vmatpush1.bf16.msra.mxu0 %v4486
        %4552 = vmatprep.mubr.bf16.mxu0 %v4326
        %4553 = vmatmul.mubr.bf16.gmra.mrb[0].mxu0 %v4325
        %v4554 = vpop.f32.mrb[0].mxu0
        %v4555 = vadd.f32 0.0, %v4554
        %v4556 = vpop.f32.mrb[0].mxu0
        %v4557 = vadd.f32 0.0, %v4556
        %v4558 = vpop.f32.mrb[0].mxu0
        %v4559 = vpop.f32.mrb[0].mxu0
        %4560 = vdwg.mxu0
        %v4593 = vunpack.c.l.b16 %v4247
        %v4594 = vunpack.c.h.b16 %v4247
        %v4595 = vunpack.c.l.b16 %v4248
        %v4596 = vunpack.c.h.b16 %v4248
        %v4597 = vunpack.c.l.b16 %v4249
        %v4598 = vunpack.c.h.b16 %v4249
        %v4599 = vunpack.c.l.b16 %v4250
        %v4600 = vunpack.c.h.b16 %v4250
        %v4601 = vunpack.c.l.b16 %v4251
        %v4602 = vunpack.c.h.b16 %v4251
        %v4603 = vunpack.c.l.b16 %v4252
        %v4604 = vunpack.c.h.b16 %v4252
        %v4605 = vunpack.c.l.b16 %v4253
        %v4606 = vunpack.c.h.b16 %v4253
        %v4607 = vunpack.c.l.b16 %v4254
        %v4608 = vunpack.c.h.b16 %v4254
        %v4609 = vunpack.c.l.b16 %v4255
        %v4610 = vunpack.c.h.b16 %v4255
        %v4611 = vunpack.c.l.b16 %v4256
        %v4612 = vunpack.c.h.b16 %v4256
        %v4613 = vunpack.c.l.b16 %v4257
        %v4614 = vunpack.c.h.b16 %v4257
        %v4615 = vunpack.c.l.b16 %v4258
        %v4616 = vunpack.c.h.b16 %v4258
        %v4617 = vunpack.c.l.b16 %v4259
        %v4618 = vunpack.c.h.b16 %v4259
        %v4619 = vunpack.c.l.b16 %v4260
        %v4620 = vunpack.c.h.b16 %v4260
        %v4621 = vunpack.c.l.b16 %v4261
        %v4622 = vunpack.c.h.b16 %v4261
        %v4623 = vunpack.c.l.b16 %v4262
        %v4624 = vunpack.c.h.b16 %v4262
        %v4625 = vunpack.c.l.b16 %v4263
        %v4626 = vunpack.c.h.b16 %v4263
        %v4627 = vunpack.c.l.b16 %v4264
        %v4628 = vunpack.c.h.b16 %v4264
        %v4629 = vunpack.c.l.b16 %v4265
        %v4630 = vunpack.c.h.b16 %v4265
        %v4631 = vunpack.c.l.b16 %v4266
        %v4632 = vunpack.c.h.b16 %v4266
        %v4633 = vunpack.c.l.b16 %v4267
        %v4634 = vunpack.c.h.b16 %v4267
        %v4635 = vunpack.c.l.b16 %v4268
        %v4636 = vunpack.c.h.b16 %v4268
        %v4637 = vunpack.c.l.b16 %v4269
        %v4638 = vunpack.c.h.b16 %v4269
        %v4639 = vunpack.c.l.b16 %v4270
        %v4640 = vunpack.c.h.b16 %v4270
        %v4641 = vunpack.c.l.b16 %v4271
        %v4642 = vunpack.c.h.b16 %v4271
        %v4643 = vunpack.c.l.b16 %v4272
        %v4644 = vunpack.c.h.b16 %v4272
        %v4645 = vunpack.c.l.b16 %v4273
        %v4646 = vunpack.c.h.b16 %v4273
        %v4647 = vunpack.c.l.b16 %v4274
        %v4648 = vunpack.c.h.b16 %v4274
        %v4649 = vunpack.c.l.b16 %v4275
        %v4650 = vunpack.c.h.b16 %v4275
        %v4651 = vunpack.c.l.b16 %v4276
        %v4652 = vunpack.c.h.b16 %v4276
        %v4653 = vunpack.c.l.b16 %v4277
        %v4654 = vunpack.c.h.b16 %v4277
        %v4655 = vunpack.c.l.b16 %v4278
        %v4656 = vunpack.c.h.b16 %v4278
        %v4657 = vpack.c.b16 %v4595, %v4593
        %v4658 = vpack.c.b16 %v4596, %v4594
        %v4659 = vpack.c.b16 %v4599, %v4597
        %v4660 = vpack.c.b16 %v4600, %v4598
        %v4661 = vpack.c.b16 %v4603, %v4601
        %v4662 = vpack.c.b16 %v4604, %v4602
        %v4663 = vpack.c.b16 %v4607, %v4605
        %v4664 = vpack.c.b16 %v4608, %v4606
        %v4665 = vpack.c.b16 %v4611, %v4609
        %v4666 = vpack.c.b16 %v4612, %v4610
        %v4667 = vpack.c.b16 %v4615, %v4613
        %v4668 = vpack.c.b16 %v4616, %v4614
        %v4669 = vpack.c.b16 %v4619, %v4617
        %v4670 = vpack.c.b16 %v4620, %v4618
        %v4671 = vpack.c.b16 %v4623, %v4621
        %v4672 = vpack.c.b16 %v4624, %v4622
        %v4673 = vpack.c.b16 %v4627, %v4625
        %v4674 = vpack.c.b16 %v4628, %v4626
        %v4675 = vpack.c.b16 %v4631, %v4629
        %v4676 = vpack.c.b16 %v4632, %v4630
        %v4677 = vpack.c.b16 %v4635, %v4633
        %v4678 = vpack.c.b16 %v4636, %v4634
        %v4679 = vpack.c.b16 %v4639, %v4637
        %v4680 = vpack.c.b16 %v4640, %v4638
        %v4681 = vpack.c.b16 %v4643, %v4641
        %v4682 = vpack.c.b16 %v4644, %v4642
        %v4683 = vpack.c.b16 %v4647, %v4645
        %v4684 = vpack.c.b16 %v4648, %v4646
        %v4685 = vpack.c.b16 %v4651, %v4649
        %v4686 = vpack.c.b16 %v4652, %v4650
        %v4687 = vpack.c.b16 %v4655, %v4653
        %v4688 = vpack.c.b16 %v4656, %v4654
        %4721 = vmatprep.subr.bf16.mxu0 %v4658
        %4722 = vmatpush1.bf16.msra.mxu0 %v4657
        %4723 = vmatprep.subr.bf16.mxu0 %v4660
        %4724 = vmatpush1.bf16.msra.mxu0 %v4659
        %4725 = vmatprep.subr.bf16.mxu0 %v4662
        %4726 = vmatpush1.bf16.msra.mxu0 %v4661
        %4727 = vmatprep.subr.bf16.mxu0 %v4664
        %4728 = vmatpush1.bf16.msra.mxu0 %v4663
        %4729 = vmatprep.subr.bf16.mxu0 %v4666
        %4730 = vmatpush1.bf16.msra.mxu0 %v4665
        %4731 = vmatprep.subr.bf16.mxu0 %v4668
        %4732 = vmatpush1.bf16.msra.mxu0 %v4667
        %4733 = vmatprep.subr.bf16.mxu0 %v4670
        %4734 = vmatpush1.bf16.msra.mxu0 %v4669
        %4735 = vmatprep.subr.bf16.mxu0 %v4672
        %4736 = vmatpush1.bf16.msra.mxu0 %v4671
        %4737 = vmatprep.subr.bf16.mxu0 %v4674
        %4738 = vmatpush1.bf16.msra.mxu0 %v4673
        %4739 = vmatprep.subr.bf16.mxu0 %v4676
        %4740 = vmatpush1.bf16.msra.mxu0 %v4675
        %4741 = vmatprep.subr.bf16.mxu0 %v4678
        %4742 = vmatpush1.bf16.msra.mxu0 %v4677
        %4743 = vmatprep.subr.bf16.mxu0 %v4680
        %4744 = vmatpush1.bf16.msra.mxu0 %v4679
        %4745 = vmatprep.subr.bf16.mxu0 %v4682
        %4746 = vmatpush1.bf16.msra.mxu0 %v4681
        %4747 = vmatprep.subr.bf16.mxu0 %v4684
        %4748 = vmatpush1.bf16.msra.mxu0 %v4683
        %4749 = vmatprep.subr.bf16.mxu0 %v4686
        %4750 = vmatpush1.bf16.msra.mxu0 %v4685
        %4751 = vmatprep.subr.bf16.mxu0 %v4688
        %4752 = vmatpush1.bf16.msra.mxu0 %v4687
        %4753 = vmatprep.mubr.bf16.mxu0 %v4246
        %4754 = vmatmul.mubr.bf16.gmra.mrb[0].mxu0 %v4245
        %v4755 = vpop.f32.mrb[0].mxu0
        %v4756 = vadd.f32 %v4555, %v4755
        %v4757 = vpop.f32.mrb[0].mxu0
        %v4758 = vadd.f32 %v4557, %v4757
        %v4759 = vpop.f32.mrb[0].mxu0
        %v4760 = vpop.f32.mrb[0].mxu0
        %4761 = vdwg.mxu0
        %s4762 = scalar_lea.vmem %s4, 4
        %v4763 = vld [vmem:[%s4762] sm:$0x3]
        %v4765 = vsel %vm4193, %v4763, 0
        %4767 = vmatprep.subr.bf16.mxu0 %v4202
        %4768 = vmatpush1.bf16.msra.mxu0 %v4199
        %4769 = vmatprep.subr.bf16.mxu0 0
        %4770 = vmatpush1.bf16.msra.mxu0 0
        %4771 = vmatprep.subr.bf16.mxu0 0
        %4772 = vmatpush1.bf16.msra.mxu0 0
        %4773 = vmatprep.subr.bf16.mxu0 0
        %4774 = vmatpush1.bf16.msra.mxu0 0
        %4775 = vmatprep.subr.bf16.mxu0 0
        %4776 = vmatpush1.bf16.msra.mxu0 0
        %4777 = vmatprep.subr.bf16.mxu0 0
        %4778 = vmatpush1.bf16.msra.mxu0 0
        %4779 = vmatprep.subr.bf16.mxu0 0
        %4780 = vmatpush1.bf16.msra.mxu0 0
        %4781 = vmatprep.subr.bf16.mxu0 0
        %4782 = vmatpush1.bf16.msra.mxu0 0
        %4783 = vmatprep.subr.bf16.mxu0 0
        %4784 = vmatpush1.bf16.msra.mxu0 0
        %4785 = vmatprep.subr.bf16.mxu0 0
        %4786 = vmatpush1.bf16.msra.mxu0 0
        %4787 = vmatprep.subr.bf16.mxu0 0
        %4788 = vmatpush1.bf16.msra.mxu0 0
        %4789 = vmatprep.subr.bf16.mxu0 0
        %4790 = vmatpush1.bf16.msra.mxu0 0
        %4791 = vmatprep.subr.bf16.mxu0 0
        %4792 = vmatpush1.bf16.msra.mxu0 0
        %4793 = vmatprep.subr.bf16.mxu0 0
        %4794 = vmatpush1.bf16.msra.mxu0 0
        %4795 = vmatprep.subr.bf16.mxu0 0
        %4796 = vmatpush1.bf16.msra.mxu0 0
        %4797 = vmatprep.subr.bf16.mxu0 0
        %4798 = vmatpush1.bf16.msra.mxu0 0
        %4799 = vmatprep.mubr.bf16.mxu0 0
        %4800 = vmatmul.mubr.bf16.gmra.mrb[0].mxu0 %v4765
        %v4801 = vpop.f32.mrb[0].mxu0
        %v4802 = vadd.f32 0.0, %v4801
        %v4803 = vpop.f32.mrb[0].mxu0
        %v4804 = vadd.f32 0.0, %v4803
        %v4805 = vpop.f32.mrb[0].mxu0
        %v4806 = vpop.f32.mrb[0].mxu0
        %4807 = vdwg.mxu0
        %v4808 = vpack.c.bf16 %v4802, %v4802
        %v4809 = vpack.c.bf16 %v4804, %v4804
        %s4810 = scalar_lea.vmem [#allocation7], 512
        %v4811 = vld [vmem:[%s4810] sm:$0xff]
        %v4812 = vld [vmem:[%s4810 + $0x8] sm:$0xff]
        %v4813 = vld [vmem:[%s4810 + $0x10] sm:$0xff]
        %v4814 = vld [vmem:[%s4810 + $0x18] sm:$0xff]
        %v4815 = vld [vmem:[%s4810 + $0x20] sm:$0xff]
        %v4816 = vld [vmem:[%s4810 + $0x28] sm:$0xff]
        %v4817 = vld [vmem:[%s4810 + $0x30] sm:$0xff]
        %v4818 = vld [vmem:[%s4810 + $0x38] sm:$0xff]
        %v4819 = vld [vmem:[%s4810 + $0x40] sm:$0xff]
        %v4820 = vld [vmem:[%s4810 + $0x48] sm:$0xff]
        %v4821 = vld [vmem:[%s4810 + $0x50] sm:$0xff]
        %v4822 = vld [vmem:[%s4810 + $0x58] sm:$0xff]
        %v4823 = vld [vmem:[%s4810 + $0x60] sm:$0xff]
        %v4824 = vld [vmem:[%s4810 + $0x68] sm:$0xff]
        %v4825 = vld [vmem:[%s4810 + $0x70] sm:$0xff]
        %v4826 = vld [vmem:[%s4810 + $0x78] sm:$0xff]
        %v4827 = vld [vmem:[%s4810 + $0x80] sm:$0xff]
        %v4828 = vld [vmem:[%s4810 + $0x88] sm:$0xff]
        %v4829 = vld [vmem:[%s4810 + $0x90] sm:$0xff]
        %v4830 = vld [vmem:[%s4810 + $0x98] sm:$0xff]
        %v4831 = vld [vmem:[%s4810 + $0xa0] sm:$0xff]
        %v4832 = vld [vmem:[%s4810 + $0xa8] sm:$0xff]
        %v4833 = vld [vmem:[%s4810 + $0xb0] sm:$0xff]
        %v4834 = vld [vmem:[%s4810 + $0xb8] sm:$0xff]
        %v4835 = vld [vmem:[%s4810 + $0xc0] sm:$0xff]
        %v4836 = vld [vmem:[%s4810 + $0xc8] sm:$0xff]
        %v4837 = vld [vmem:[%s4810 + $0xd0] sm:$0xff]
        %v4838 = vld [vmem:[%s4810 + $0xd8] sm:$0xff]
        %v4839 = vld [vmem:[%s4810 + $0xe0] sm:$0xff]
        %v4840 = vld [vmem:[%s4810 + $0xe8] sm:$0xff]
        %v4841 = vld [vmem:[%s4810 + $0xf0] sm:$0xff]
        %v4842 = vld [vmem:[%s4810 + $0xf8] sm:$0xff]
        %v4875 = vunpack.c.l.b16 %v4811
        %v4876 = vunpack.c.h.b16 %v4811
        %v4877 = vunpack.c.l.b16 %v4812
        %v4878 = vunpack.c.h.b16 %v4812
        %v4879 = vunpack.c.l.b16 %v4813
        %v4880 = vunpack.c.h.b16 %v4813
        %v4881 = vunpack.c.l.b16 %v4814
        %v4882 = vunpack.c.h.b16 %v4814
        %v4883 = vunpack.c.l.b16 %v4815
        %v4884 = vunpack.c.h.b16 %v4815
        %v4885 = vunpack.c.l.b16 %v4816
        %v4886 = vunpack.c.h.b16 %v4816
        %v4887 = vunpack.c.l.b16 %v4817
        %v4888 = vunpack.c.h.b16 %v4817
        %v4889 = vunpack.c.l.b16 %v4818
        %v4890 = vunpack.c.h.b16 %v4818
        %v4891 = vunpack.c.l.b16 %v4819
        %v4892 = vunpack.c.h.b16 %v4819
        %v4893 = vunpack.c.l.b16 %v4820
        %v4894 = vunpack.c.h.b16 %v4820
        %v4895 = vunpack.c.l.b16 %v4821
        %v4896 = vunpack.c.h.b16 %v4821
        %v4897 = vunpack.c.l.b16 %v4822
        %v4898 = vunpack.c.h.b16 %v4822
        %v4899 = vunpack.c.l.b16 %v4823
        %v4900 = vunpack.c.h.b16 %v4823
        %v4901 = vunpack.c.l.b16 %v4824
        %v4902 = vunpack.c.h.b16 %v4824
        %v4903 = vunpack.c.l.b16 %v4825
        %v4904 = vunpack.c.h.b16 %v4825
        %v4905 = vunpack.c.l.b16 %v4826
        %v4906 = vunpack.c.h.b16 %v4826
        %v4907 = vunpack.c.l.b16 %v4827
        %v4908 = vunpack.c.h.b16 %v4827
        %v4909 = vunpack.c.l.b16 %v4828
        %v4910 = vunpack.c.h.b16 %v4828
        %v4911 = vunpack.c.l.b16 %v4829
        %v4912 = vunpack.c.h.b16 %v4829
        %v4913 = vunpack.c.l.b16 %v4830
        %v4914 = vunpack.c.h.b16 %v4830
        %v4915 = vunpack.c.l.b16 %v4831
        %v4916 = vunpack.c.h.b16 %v4831
        %v4917 = vunpack.c.l.b16 %v4832
        %v4918 = vunpack.c.h.b16 %v4832
        %v4919 = vunpack.c.l.b16 %v4833
        %v4920 = vunpack.c.h.b16 %v4833
        %v4921 = vunpack.c.l.b16 %v4834
        %v4922 = vunpack.c.h.b16 %v4834
        %v4923 = vunpack.c.l.b16 %v4835
        %v4924 = vunpack.c.h.b16 %v4835
        %v4925 = vunpack.c.l.b16 %v4836
        %v4926 = vunpack.c.h.b16 %v4836
        %v4927 = vunpack.c.l.b16 %v4837
        %v4928 = vunpack.c.h.b16 %v4837
        %v4929 = vunpack.c.l.b16 %v4838
        %v4930 = vunpack.c.h.b16 %v4838
        %v4931 = vunpack.c.l.b16 %v4839
        %v4932 = vunpack.c.h.b16 %v4839
        %v4933 = vunpack.c.l.b16 %v4840
        %v4934 = vunpack.c.h.b16 %v4840
        %v4935 = vunpack.c.l.b16 %v4841
        %v4936 = vunpack.c.h.b16 %v4841
        %v4937 = vunpack.c.l.b16 %v4842
        %v4938 = vunpack.c.h.b16 %v4842
        %v4939 = vpack.c.b16 %v4877, %v4875
        %v4940 = vpack.c.b16 %v4878, %v4876
        %v4941 = vpack.c.b16 %v4881, %v4879
        %v4942 = vpack.c.b16 %v4882, %v4880
        %v4943 = vpack.c.b16 %v4885, %v4883
        %v4944 = vpack.c.b16 %v4886, %v4884
        %v4945 = vpack.c.b16 %v4889, %v4887
        %v4946 = vpack.c.b16 %v4890, %v4888
        %v4947 = vpack.c.b16 %v4893, %v4891
        %v4948 = vpack.c.b16 %v4894, %v4892
        %v4949 = vpack.c.b16 %v4897, %v4895
        %v4950 = vpack.c.b16 %v4898, %v4896
        %v4951 = vpack.c.b16 %v4901, %v4899
        %v4952 = vpack.c.b16 %v4902, %v4900
        %v4953 = vpack.c.b16 %v4905, %v4903
        %v4954 = vpack.c.b16 %v4906, %v4904
        %v4955 = vpack.c.b16 %v4909, %v4907
        %v4956 = vpack.c.b16 %v4910, %v4908
        %v4957 = vpack.c.b16 %v4913, %v4911
        %v4958 = vpack.c.b16 %v4914, %v4912
        %v4959 = vpack.c.b16 %v4917, %v4915
        %v4960 = vpack.c.b16 %v4918, %v4916
        %v4961 = vpack.c.b16 %v4921, %v4919
        %v4962 = vpack.c.b16 %v4922, %v4920
        %v4963 = vpack.c.b16 %v4925, %v4923
        %v4964 = vpack.c.b16 %v4926, %v4924
        %v4965 = vpack.c.b16 %v4929, %v4927
        %v4966 = vpack.c.b16 %v4930, %v4928
        %v4967 = vpack.c.b16 %v4933, %v4931
        %v4968 = vpack.c.b16 %v4934, %v4932
        %v4969 = vpack.c.b16 %v4937, %v4935
        %v4970 = vpack.c.b16 %v4938, %v4936
        %5003 = vmatprep.subr.bf16.mxu0 %v4940
        %5004 = vmatpush1.bf16.msra.mxu0 %v4939
        %5005 = vmatprep.subr.bf16.mxu0 %v4942
        %5006 = vmatpush1.bf16.msra.mxu0 %v4941
        %5007 = vmatprep.subr.bf16.mxu0 %v4944
        %5008 = vmatpush1.bf16.msra.mxu0 %v4943
        %5009 = vmatprep.subr.bf16.mxu0 %v4946
        %5010 = vmatpush1.bf16.msra.mxu0 %v4945
        %5011 = vmatprep.subr.bf16.mxu0 %v4948
        %5012 = vmatpush1.bf16.msra.mxu0 %v4947
        %5013 = vmatprep.subr.bf16.mxu0 %v4950
        %5014 = vmatpush1.bf16.msra.mxu0 %v4949
        %5015 = vmatprep.subr.bf16.mxu0 %v4952
        %5016 = vmatpush1.bf16.msra.mxu0 %v4951
        %5017 = vmatprep.subr.bf16.mxu0 %v4954
        %5018 = vmatpush1.bf16.msra.mxu0 %v4953
        %5019 = vmatprep.subr.bf16.mxu0 %v4956
        %5020 = vmatpush1.bf16.msra.mxu0 %v4955
        %5021 = vmatprep.subr.bf16.mxu0 %v4958
        %5022 = vmatpush1.bf16.msra.mxu0 %v4957
        %5023 = vmatprep.subr.bf16.mxu0 %v4960
        %5024 = vmatpush1.bf16.msra.mxu0 %v4959
        %5025 = vmatprep.subr.bf16.mxu0 %v4962
        %5026 = vmatpush1.bf16.msra.mxu0 %v4961
        %5027 = vmatprep.subr.bf16.mxu0 %v4964
        %5028 = vmatpush1.bf16.msra.mxu0 %v4963
        %5029 = vmatprep.subr.bf16.mxu0 %v4966
        %5030 = vmatpush1.bf16.msra.mxu0 %v4965
        %5031 = vmatprep.subr.bf16.mxu0 %v4968
        %5032 = vmatpush1.bf16.msra.mxu0 %v4967
        %5033 = vmatprep.subr.bf16.mxu0 %v4970
        %5034 = vmatpush1.bf16.msra.mxu0 %v4969
        %5035 = vmatprep.mubr.bf16.mxu0 %v4809
        %5036 = vmatmul.mubr.bf16.gmra.mrb[0].mxu0 %v4808
        %v5037 = vpop.f32.mrb[0].mxu0
        %v5038 = vadd.f32 0.0, %v5037
        %v5039 = vpop.f32.mrb[0].mxu0
        %v5040 = vadd.f32 0.0, %v5039
        %v5041 = vpop.f32.mrb[0].mxu0
        %v5042 = vpop.f32.mrb[0].mxu0
        %5043 = vdwg.mxu0
        %v5044 = vadd.f32 %v4756, %v5038
        %v5045 = vadd.f32 %v4758, %v5040
        %s5046 = scalar_lea.vmem %s4, 6
        %v5047 = vld [vmem:[%s5046] sm:$0x3]
        %v5049 = vsel %vm4193, %v5047, 0
        %5051 = vmatprep.subr.bf16.mxu0 %v4202
        %5052 = vmatpush1.bf16.msra.mxu0 %v4199
        %5053 = vmatprep.subr.bf16.mxu0 0
        %5054 = vmatpush1.bf16.msra.mxu0 0
        %5055 = vmatprep.subr.bf16.mxu0 0
        %5056 = vmatpush1.bf16.msra.mxu0 0
        %5057 = vmatprep.subr.bf16.mxu0 0
        %5058 = vmatpush1.bf16.msra.mxu0 0
        %5059 = vmatprep.subr.bf16.mxu0 0
        %5060 = vmatpush1.bf16.msra.mxu0 0
        %5061 = vmatprep.subr.bf16.mxu0 0
        %5062 = vmatpush1.bf16.msra.mxu0 0
        %5063 = vmatprep.subr.bf16.mxu0 0
        %5064 = vmatpush1.bf16.msra.mxu0 0
        %5065 = vmatprep.subr.bf16.mxu0 0
        %5066 = vmatpush1.bf16.msra.mxu0 0
        %5067 = vmatprep.subr.bf16.mxu0 0
        %5068 = vmatpush1.bf16.msra.mxu0 0
        %5069 = vmatprep.subr.bf16.mxu0 0
        %5070 = vmatpush1.bf16.msra.mxu0 0
        %5071 = vmatprep.subr.bf16.mxu0 0
        %5072 = vmatpush1.bf16.msra.mxu0 0
        %5073 = vmatprep.subr.bf16.mxu0 0
        %5074 = vmatpush1.bf16.msra.mxu0 0
        %5075 = vmatprep.subr.bf16.mxu0 0
        %5076 = vmatpush1.bf16.msra.mxu0 0
        %5077 = vmatprep.subr.bf16.mxu0 0
        %5078 = vmatpush1.bf16.msra.mxu0 0
        %5079 = vmatprep.subr.bf16.mxu0 0
        %5080 = vmatpush1.bf16.msra.mxu0 0
        %5081 = vmatprep.subr.bf16.mxu0 0
        %5082 = vmatpush1.bf16.msra.mxu0 0
        %5083 = vmatprep.mubr.bf16.mxu0 0
        %5084 = vmatmul.mubr.bf16.gmra.mrb[0].mxu0 %v5049
        %v5085 = vpop.f32.mrb[0].mxu0
        %v5086 = vadd.f32 0.0, %v5085
        %v5087 = vpop.f32.mrb[0].mxu0
        %v5088 = vadd.f32 0.0, %v5087
        %v5089 = vpop.f32.mrb[0].mxu0
        %v5090 = vpop.f32.mrb[0].mxu0
        %5091 = vdwg.mxu0
        %v5092 = vpack.c.bf16 %v5086, %v5086
        %v5093 = vpack.c.bf16 %v5088, %v5088
        %s5094 = scalar_lea.vmem [#allocation7], 768
        %v5095 = vld [vmem:[%s5094] sm:$0xff]
        %v5096 = vld [vmem:[%s5094 + $0x8] sm:$0xff]
        %v5097 = vld [vmem:[%s5094 + $0x10] sm:$0xff]
        %v5098 = vld [vmem:[%s5094 + $0x18] sm:$0xff]
        %v5099 = vld [vmem:[%s5094 + $0x20] sm:$0xff]
        %v5100 = vld [vmem:[%s5094 + $0x28] sm:$0xff]
        %v5101 = vld [vmem:[%s5094 + $0x30] sm:$0xff]
        %v5102 = vld [vmem:[%s5094 + $0x38] sm:$0xff]
        %v5103 = vld [vmem:[%s5094 + $0x40] sm:$0xff]
        %v5104 = vld [vmem:[%s5094 + $0x48] sm:$0xff]
        %v5105 = vld [vmem:[%s5094 + $0x50] sm:$0xff]
        %v5106 = vld [vmem:[%s5094 + $0x58] sm:$0xff]
        %v5107 = vld [vmem:[%s5094 + $0x60] sm:$0xff]
        %v5108 = vld [vmem:[%s5094 + $0x68] sm:$0xff]
        %v5109 = vld [vmem:[%s5094 + $0x70] sm:$0xff]
        %v5110 = vld [vmem:[%s5094 + $0x78] sm:$0xff]
        %v5111 = vld [vmem:[%s5094 + $0x80] sm:$0xff]
        %v5112 = vld [vmem:[%s5094 + $0x88] sm:$0xff]
        %v5113 = vld [vmem:[%s5094 + $0x90] sm:$0xff]
        %v5114 = vld [vmem:[%s5094 + $0x98] sm:$0xff]
        %v5115 = vld [vmem:[%s5094 + $0xa0] sm:$0xff]
        %v5116 = vld [vmem:[%s5094 + $0xa8] sm:$0xff]
        %v5117 = vld [vmem:[%s5094 + $0xb0] sm:$0xff]
        %v5118 = vld [vmem:[%s5094 + $0xb8] sm:$0xff]
        %v5119 = vld [vmem:[%s5094 + $0xc0] sm:$0xff]
        %v5120 = vld [vmem:[%s5094 + $0xc8] sm:$0xff]
        %v5121 = vld [vmem:[%s5094 + $0xd0] sm:$0xff]
        %v5122 = vld [vmem:[%s5094 + $0xd8] sm:$0xff]
        %v5123 = vld [vmem:[%s5094 + $0xe0] sm:$0xff]
        %v5124 = vld [vmem:[%s5094 + $0xe8] sm:$0xff]
        %v5125 = vld [vmem:[%s5094 + $0xf0] sm:$0xff]
        %v5126 = vld [vmem:[%s5094 + $0xf8] sm:$0xff]
        %v5159 = vunpack.c.l.b16 %v5095
        %v5160 = vunpack.c.h.b16 %v5095
        %v5161 = vunpack.c.l.b16 %v5096
        %v5162 = vunpack.c.h.b16 %v5096
        %v5163 = vunpack.c.l.b16 %v5097
        %v5164 = vunpack.c.h.b16 %v5097
        %v5165 = vunpack.c.l.b16 %v5098
        %v5166 = vunpack.c.h.b16 %v5098
        %v5167 = vunpack.c.l.b16 %v5099
        %v5168 = vunpack.c.h.b16 %v5099
        %v5169 = vunpack.c.l.b16 %v5100
        %v5170 = vunpack.c.h.b16 %v5100
        %v5171 = vunpack.c.l.b16 %v5101
        %v5172 = vunpack.c.h.b16 %v5101
        %v5173 = vunpack.c.l.b16 %v5102
        %v5174 = vunpack.c.h.b16 %v5102
        %v5175 = vunpack.c.l.b16 %v5103
        %v5176 = vunpack.c.h.b16 %v5103
        %v5177 = vunpack.c.l.b16 %v5104
        %v5178 = vunpack.c.h.b16 %v5104
        %v5179 = vunpack.c.l.b16 %v5105
        %v5180 = vunpack.c.h.b16 %v5105
        %v5181 = vunpack.c.l.b16 %v5106
        %v5182 = vunpack.c.h.b16 %v5106
        %v5183 = vunpack.c.l.b16 %v5107
        %v5184 = vunpack.c.h.b16 %v5107
        %v5185 = vunpack.c.l.b16 %v5108
        %v5186 = vunpack.c.h.b16 %v5108
        %v5187 = vunpack.c.l.b16 %v5109
        %v5188 = vunpack.c.h.b16 %v5109
        %v5189 = vunpack.c.l.b16 %v5110
        %v5190 = vunpack.c.h.b16 %v5110
        %v5191 = vunpack.c.l.b16 %v5111
        %v5192 = vunpack.c.h.b16 %v5111
        %v5193 = vunpack.c.l.b16 %v5112
        %v5194 = vunpack.c.h.b16 %v5112
        %v5195 = vunpack.c.l.b16 %v5113
        %v5196 = vunpack.c.h.b16 %v5113
        %v5197 = vunpack.c.l.b16 %v5114
        %v5198 = vunpack.c.h.b16 %v5114
        %v5199 = vunpack.c.l.b16 %v5115
        %v5200 = vunpack.c.h.b16 %v5115
        %v5201 = vunpack.c.l.b16 %v5116
        %v5202 = vunpack.c.h.b16 %v5116
        %v5203 = vunpack.c.l.b16 %v5117
        %v5204 = vunpack.c.h.b16 %v5117
        %v5205 = vunpack.c.l.b16 %v5118
        %v5206 = vunpack.c.h.b16 %v5118
        %v5207 = vunpack.c.l.b16 %v5119
        %v5208 = vunpack.c.h.b16 %v5119
        %v5209 = vunpack.c.l.b16 %v5120
        %v5210 = vunpack.c.h.b16 %v5120
        %v5211 = vunpack.c.l.b16 %v5121
        %v5212 = vunpack.c.h.b16 %v5121
        %v5213 = vunpack.c.l.b16 %v5122
        %v5214 = vunpack.c.h.b16 %v5122
        %v5215 = vunpack.c.l.b16 %v5123
        %v5216 = vunpack.c.h.b16 %v5123
        %v5217 = vunpack.c.l.b16 %v5124
        %v5218 = vunpack.c.h.b16 %v5124
        %v5219 = vunpack.c.l.b16 %v5125
        %v5220 = vunpack.c.h.b16 %v5125
        %v5221 = vunpack.c.l.b16 %v5126
        %v5222 = vunpack.c.h.b16 %v5126
        %v5223 = vpack.c.b16 %v5161, %v5159
        %v5224 = vpack.c.b16 %v5162, %v5160
        %v5225 = vpack.c.b16 %v5165, %v5163
        %v5226 = vpack.c.b16 %v5166, %v5164
        %v5227 = vpack.c.b16 %v5169, %v5167
        %v5228 = vpack.c.b16 %v5170, %v5168
        %v5229 = vpack.c.b16 %v5173, %v5171
        %v5230 = vpack.c.b16 %v5174, %v5172
        %v5231 = vpack.c.b16 %v5177, %v5175
        %v5232 = vpack.c.b16 %v5178, %v5176
        %v5233 = vpack.c.b16 %v5181, %v5179
        %v5234 = vpack.c.b16 %v5182, %v5180
        %v5235 = vpack.c.b16 %v5185, %v5183
        %v5236 = vpack.c.b16 %v5186, %v5184
        %v5237 = vpack.c.b16 %v5189, %v5187
        %v5238 = vpack.c.b16 %v5190, %v5188
        %v5239 = vpack.c.b16 %v5193, %v5191
        %v5240 = vpack.c.b16 %v5194, %v5192
        %v5241 = vpack.c.b16 %v5197, %v5195
        %v5242 = vpack.c.b16 %v5198, %v5196
        %v5243 = vpack.c.b16 %v5201, %v5199
        %v5244 = vpack.c.b16 %v5202, %v5200
        %v5245 = vpack.c.b16 %v5205, %v5203
        %v5246 = vpack.c.b16 %v5206, %v5204
        %v5247 = vpack.c.b16 %v5209, %v5207
        %v5248 = vpack.c.b16 %v5210, %v5208
        %v5249 = vpack.c.b16 %v5213, %v5211
        %v5250 = vpack.c.b16 %v5214, %v5212
        %v5251 = vpack.c.b16 %v5217, %v5215
        %v5252 = vpack.c.b16 %v5218, %v5216
        %v5253 = vpack.c.b16 %v5221, %v5219
        %v5254 = vpack.c.b16 %v5222, %v5220
        %5287 = vmatprep.subr.bf16.mxu0 %v5224
        %5288 = vmatpush1.bf16.msra.mxu0 %v5223
        %5289 = vmatprep.subr.bf16.mxu0 %v5226
        %5290 = vmatpush1.bf16.msra.mxu0 %v5225
        %5291 = vmatprep.subr.bf16.mxu0 %v5228
        %5292 = vmatpush1.bf16.msra.mxu0 %v5227
        %5293 = vmatprep.subr.bf16.mxu0 %v5230
        %5294 = vmatpush1.bf16.msra.mxu0 %v5229
        %5295 = vmatprep.subr.bf16.mxu0 %v5232
        %5296 = vmatpush1.bf16.msra.mxu0 %v5231
        %5297 = vmatprep.subr.bf16.mxu0 %v5234
        %5298 = vmatpush1.bf16.msra.mxu0 %v5233
        %5299 = vmatprep.subr.bf16.mxu0 %v5236
        %5300 = vmatpush1.bf16.msra.mxu0 %v5235
        %5301 = vmatprep.subr.bf16.mxu0 %v5238
        %5302 = vmatpush1.bf16.msra.mxu0 %v5237
        %5303 = vmatprep.subr.bf16.mxu0 %v5240
        %5304 = vmatpush1.bf16.msra.mxu0 %v5239
        %5305 = vmatprep.subr.bf16.mxu0 %v5242
        %5306 = vmatpush1.bf16.msra.mxu0 %v5241
        %5307 = vmatprep.subr.bf16.mxu0 %v5244
        %5308 = vmatpush1.bf16.msra.mxu0 %v5243
        %5309 = vmatprep.subr.bf16.mxu0 %v5246
        %5310 = vmatpush1.bf16.msra.mxu0 %v5245
        %5311 = vmatprep.subr.bf16.mxu0 %v5248
        %5312 = vmatpush1.bf16.msra.mxu0 %v5247
        %5313 = vmatprep.subr.bf16.mxu0 %v5250
        %5314 = vmatpush1.bf16.msra.mxu0 %v5249
        %5315 = vmatprep.subr.bf16.mxu0 %v5252
        %5316 = vmatpush1.bf16.msra.mxu0 %v5251
        %5317 = vmatprep.subr.bf16.mxu0 %v5254
        %5318 = vmatpush1.bf16.msra.mxu0 %v5253
        %5319 = vmatprep.mubr.bf16.mxu0 %v5093
        %5320 = vmatmul.mubr.bf16.gmra.mrb[0].mxu0 %v5092
        %v5321 = vpop.f32.mrb[0].mxu0
        %v5322 = vadd.f32 0.0, %v5321
        %v5323 = vpop.f32.mrb[0].mxu0
        %v5324 = vadd.f32 0.0, %v5323
        %v5325 = vpop.f32.mrb[0].mxu0
        %v5326 = vpop.f32.mrb[0].mxu0
        %5327 = vdwg.mxu0
        %v5328 = vadd.f32 %v5044, %v5322
        %v5329 = vadd.f32 %v5045, %v5324
        %vm5330 = vcmp.gt.f32.partialorder %v5328, 0.0
        %vm5331 = vcmp.gt.f32.partialorder %v5329, 0.0
        %v5332 = vmul.f32 %v5328, 0.2
        %v5333 = vmul.f32 %v5329, 0.2
        %v5334 = vsel %vm5330, %v5328, %v5332
        %v5335 = vsel %vm5331, %v5329, %v5333
        %v5336 = vpack.c.bf16 %v5334, %v5334
        %v5337 = vpack.c.bf16 %v5335, %v5335
        %v5338 = vunpack.c.l.bf16 %v5336
        %v5339 = vunpack.c.l.bf16 %v5337
        %v5340 = vld [vmem:[%s10] sm:$0xff]
        %v5342 = vcombine.high %v5340, %v5340
        %v5344 = vmul.f32 %v5338, %v5340
        %v5345 = vmul.f32 %v5339, %v5342
        %v5346 = vsel %vm4197, %v5344, 0.0
        %v5347 = vsel %vm4197, %v5345, 0.0
        %v5348 = vadd.f32 %v5346, %v5347
        %5349 = vadd.xlane.f32.xlu0 %v5348
        %v5350 = vpop.xlane.xlu0 %5349
        %v5351 = vrot.slane %v5350, 4
        %v5352 = vadd.f32 %v5350, %v5351
        %v5353 = vrot.slane %v5352, 2
        %v5354 = vadd.f32 %v5352, %v5353
        %v5355 = vrot.slane %v5354, 1
        %v5356 = vadd.f32 %v5354, %v5355
        %s5357 = vtos %v5356
        %v5358 = vstv %s5357
        %v5359 = vld [vmem:[#allocation2] sm:$0x1]
        %v5360 = vadd.f32 %v5358, %v5359
        %v5361 = vxor.u32 %v5360, 2147483648
        %v5362 = vmul.f32 %v5361, 1.442695
        %v5363 = vpow.pop %v5362
        %v5364 = vadd.f32 %v5363, 1.0
        %v5365 = vrcp.pop %v5364
        %v5366 = vmul.f32 1.0, %v5365
        %vm5367 = vcmask 0
        %5368 = vst.msk [vmem:[%s455] sm:$0x1] %vm5367, %v5366
        %p5369 = scmp.lt.s32.totalorder %s27, 1
        %s5370 = scalar_select %p5369, %s27, 1
        %s5371 = scalar_lea.vmem %s12, %s5370
        // Predicated region
        $region81: #{discriminator_forward.1} parent=67 // pred_check
          %p5372 = pneg %p302
        $region82: #{discriminator_forward.1} parent=67 // pred_check_branch
          %5374 = sbr.rel (%p5372) target = $region84
        $region83: #{discriminator_forward.1} parent=67 // pred_region
          _
        $region84: #{discriminator_forward.1} parent=67 // pred_fallthru
          _
      $region68: #{discriminator_forward.1} parent=5 // pred_fallthru
        _
      %p5375 = scmp.le.s32.totalorder 2, %s22
      // Predicated region
      $region85: #{discriminator_forward.1} parent=5 // pred_check
        %p5376 = pneg %p5375
      $region86: #{discriminator_forward.1} parent=5 // pred_check_branch
        %5378 = sbr.rel (%p5376) target = $region88
      $region87: #{discriminator_forward.1} parent=5 // pred_region
        %s5379 = ssub.s32 %s22, 2
        // Predicated region
        $region89: #{discriminator_forward.1} parent=87 // pred_check
          %p5380 = pneg %p308
        $region90: #{discriminator_forward.1} parent=87 // pred_check_branch
          %5382 = sbr.rel (%p5380) target = $region92
        $region91: #{discriminator_forward.1} parent=87 // pred_region
          %p5383 = scmp.lt.s32.totalorder %s28, 1
          %s5384 = scalar_select %p5383, %s28, 1
          %s5385 = scalar_lea.vmem %s12, %s5384
        $region92: #{discriminator_forward.1} parent=87 // pred_fallthru
          _
      $region88: #{discriminator_forward.1} parent=5 // pred_fallthru
        _
    $region6: #{discriminator_forward.1} parent=1 // loop_footer
      %s26 = sadd.s32 1, %s22
    $region7: #{discriminator_forward.1} parent=1 // loop_footer_branch
      %21 = sbr.rel target = $region3
    $region8: #{discriminator_forward.1} parent=1 // loop_exit
      _
    %5386 = vsyncpa [#allocation4], 1
    %s5387 = scalar_lea.sflag [#allocation4], 1
    %5388 = vsyncpa %s5387, 1
    %5389 = vsyncpa [#allocation6], 1

</llo_original>
